<compile_context>
chip_gen: v7x
topology: tpu7x:2x2x1
jax: 0.10.0
libtpu: 0.0.40
codegen_flags: <defaults>
</compile_context>

<pallas_src>
import functools

import jax
import jax.numpy as jnp
from jax.experimental import pallas as pl
from jax.experimental.pallas import tpu as pltpu

EPS = 1e-5
LANE = 128
SUBLANE = 8


def _round_up(x, m):
    return (x + m - 1) // m * m


# ---------------------------------------------------------------------------
# In-kernel helpers
# ---------------------------------------------------------------------------
def _shift_rows(x, d):
    """y[q] = x[(q + d) % M] along the row (sublane) axis; d is a Python int.

    The circular wrap only touches rows that are masked out downstream
    (padding border, alignment tail, padded batch images), so it is harmless.
    Static slice + concat always lowers on Mosaic (no roll-direction probe).
    """
    m = x.shape[0]
    d = d % m
    if d == 0:
        return x
    return jnp.concatenate([x[d:, :], x[:d, :]], axis=0)


def _conv3x3(x_cdt, w_ref, taps):
    """3x3 conv of a flattened (M, Cin_p) slab vs w_ref (9, Cin_p, Cout_p).

    One lane-dense MXU matmul per tap, f32 accumulation.  Rows outside the
    image interior contain wrap garbage and must be masked by the caller.
    The slab is already in compute dtype (cast hoisted out of this loop).
    """
    acc = jnp.zeros((x_cdt.shape[0], w_ref.shape[-1]), jnp.float32)
    for t, d in enumerate(taps):
        acc = acc + jnp.dot(_shift_rows(x_cdt, d), w_ref[t],
                            preferred_element_type=jnp.float32)
    return acc


def _interior_mask(nb, lpad, wp, h, w, n_real):
    """(nb*lpad, 1) f32 mask: 1 on interior rows of valid images, else 0.

    Built in-kernel from an iota (no DMA'd mask block).  Row/col indices are
    recovered with exact f32 divide+floor to avoid vector integer div/mod
    (all values << 2^24 and quotients are multiples of 1/lpad resp. 1/wp, so
    the floors are exact).
    """
    m = nb * lpad
    q = jax.lax.broadcasted_iota(jnp.int32, (m, 1), 0).astype(jnp.float32)
    img = jnp.floor(q / float(lpad))             # image index within the block
    p = q - img * float(lpad)                    # flat position within image
    r = jnp.floor(p / float(wp))
    c = p - r * float(wp)
    interior = (r >= 1.0) & (r <= float(h)) & (c >= 1.0) & (c <= float(w))
    gimg = img + (pl.program_id(0) * nb).astype(jnp.float32)
    valid = gimg < float(n_real)                 # mask zero-padded batch images
    return (interior & valid).astype(jnp.float32)


# ---------------------------------------------------------------------------
# Kernels
# ---------------------------------------------------------------------------
def _conv1_stats_kernel(x_ref, w1_ref, stats_ref, *,
                        taps, nb, lpad, wp, h, w, n_real):
    """conv1 -> per-step (sum, sum_sq) BN1 partials.  No raw output to HBM."""
    mask = _interior_mask(nb, lpad, wp, h, w, n_real)
    acc = _conv3x3(x_ref[...], w1_ref, taps) * mask
    s = jnp.sum(acc, axis=0, keepdims=True)
    sq = jnp.sum(acc * acc, axis=0, keepdims=True)
    stats_ref[0] = jnp.concatenate([s, sq], axis=0)          # (2, Co)


def _fused_block_kernel(x_ref, w1_ref, s1_ref, b1_ref, w2_ref,
                        raw2_ref, stats_ref, *,
                        taps, nb, lpad, wp, h, w, n_real, cdt):
    """Recompute conv1 -> folded BN1 + ReLU -> conv2 -> raw2 + BN2 partials."""
    mask = _interior_mask(nb, lpad, wp, h, w, n_real)
    acc1 = _conv3x3(x_ref[...], w1_ref, taps)                # garbage rows OK...
    z1 = jnp.maximum(acc1 * s1_ref[...] + b1_ref[...], 0.0) * mask   # ...masked here
    acc2 = _conv3x3(z1.astype(cdt), w2_ref, taps) * mask     # one cast, hoisted
    raw2_ref[...] = acc2.astype(raw2_ref.dtype)
    s = jnp.sum(acc2, axis=0, keepdims=True)
    sq = jnp.sum(acc2 * acc2, axis=0, keepdims=True)
    stats_ref[0] = jnp.concatenate([s, sq], axis=0)


# ---------------------------------------------------------------------------
# Wrapper
# ---------------------------------------------------------------------------
def _folded_bn(stats, gamma, beta, count):
    """Fold batch stats + affine into per-channel (scale, bias); f32 math."""
    tot = jnp.sum(stats, axis=0)                              # (2, Co)
    mean = tot[0] / count
    var = jnp.maximum(tot[1] / count - mean * mean, 0.0)      # clamp cancellation
    scale = gamma * jax.lax.rsqrt(var + EPS)
    bias = beta - mean * scale
    return scale[None, :], bias[None, :]                      # (1, Co)


def conv_block_forward(x_nchw, w1_hwio, g1, b1, w2_hwio, g2, b2,
                       compute_dtype=jnp.float32, images_per_step=None):
    """ConvBlock forward: (N, Cin, H, W) -> (N, Cout, H, W), training-mode BN."""
    N, Cin, H, W = x_nchw.shape
    Cout = w1_hwio.shape[-1]
    Hp, Wp = H + 2, W + 2
    L = Hp * Wp
    Lpad = _round_up(L, SUBLANE)
    Ci = _round_up(Cin, LANE)
    Co = _round_up(Cout, LANE)
    taps = tuple((ky - 1) * Wp + (kx - 1) for ky in range(3) for kx in range(3))

    # Images per grid step: amortize per-step overhead / enlarge DMAs, but keep
    # >=2 grid steps when possible so both v7x TensorCores see work.
    if images_per_step is None:
        images_per_step = max(1, min(8, N // 2)) if N >= 2 else 1
    Nb = max(1, min(int(images_per_step), N))
    G = (N + Nb - 1) // Nb
    N_pad = G * Nb                      # zero-padded images; masked via n_real
    Mb = Nb * Lpad

    # ---- layout prep (XLA glue): NCHW -> flattened zero-padded NHWC slab ----
    x = jnp.transpose(x_nchw, (0, 2, 3, 1)).astype(jnp.float32)
    xp = jnp.pad(x, ((0, N_pad - N), (1, 1), (1, 1), (0, Ci - Cin)))
    xflat = jnp.pad(xp.reshape(N_pad, L, Ci), ((0, 0), (0, Lpad - L), (0, 0)))
    xflat = xflat.reshape(N_pad * Lpad, Ci).astype(compute_dtype)   # bf16-able

    w1 = jnp.pad(w1_hwio.astype(jnp.float32),
                 ((0, 0), (0, 0), (0, Ci - Cin), (0, Co - Cout))
                 ).reshape(9, Ci, Co).astype(compute_dtype)
    w2 = jnp.pad(w2_hwio.astype(jnp.float32),
                 ((0, 0), (0, 0), (0, Co - Cout), (0, Co - Cout))
                 ).reshape(9, Co, Co).astype(compute_dtype)
    g1p = jnp.pad(g1.astype(jnp.float32), (0, Co - Cout))
    b1p = jnp.pad(b1.astype(jnp.float32), (0, Co - Cout))
    g2p = jnp.pad(g2.astype(jnp.float32), (0, Co - Cout))
    b2p = jnp.pad(b2.astype(jnp.float32), (0, Co - Cout))

    cparams = pltpu.CompilerParams(
        dimension_semantics=("parallel",),      # pipeline + megacore over steps
        vmem_limit_bytes=32 * 1024 * 1024,      # safe inside v7x's 64 MiB too
    )
    n_interior = N * H * W
    kw = dict(taps=taps, nb=Nb, lpad=Lpad, wp=Wp, h=H, w=W, n_real=N)

    x_spec = pl.BlockSpec((Mb, Ci), lambda g: (g, 0))
    raw_spec = pl.BlockSpec((Mb, Co), lambda g: (g, 0))
    stat_spec = pl.BlockSpec((1, 2, Co), lambda g: (g, 0, 0))
    vec_spec = pl.BlockSpec((1, Co), lambda g: (0, 0))          # resident
    w1_spec = pl.BlockSpec((9, Ci, Co), lambda g: (0, 0, 0))    # resident
    w2_spec = pl.BlockSpec((9, Co, Co), lambda g: (0, 0, 0))    # resident

    # ---- pass 1: conv1 -> BN1 batch-stat partials only (no raw1 in HBM) ----
    st1 = pl.pallas_call(
        functools.partial(_conv1_stats_kernel, **kw),
        grid=(G,),
        in_specs=[x_spec, w1_spec],
        out_specs=stat_spec,
        out_shape=jax.ShapeDtypeStruct((G, 2, Co), jnp.float32),
        compiler_params=cparams,
    )(xflat, w1)
    scale1, bias1 = _folded_bn(st1, g1p, b1p, n_interior)

    # ---- pass 2: recompute conv1 -> BN1+ReLU -> conv2 -> raw2 + partials ----
    raw2, st2 = pl.pallas_call(
        functools.partial(_fused_block_kernel, cdt=compute_dtype, **kw),
        grid=(G,),
        in_specs=[x_spec, w1_spec, vec_spec, vec_spec, w2_spec],
        out_specs=(raw_spec, stat_spec),
        out_shape=(jax.ShapeDtypeStruct((N_pad * Lpad, Co), compute_dtype),
                   jax.ShapeDtypeStruct((G, 2, Co), jnp.float32)),
        compiler_params=cparams,
    )(xflat, w1, scale1, bias1, w2)
    scale2, bias2 = _folded_bn(st2, g2p, b2p, n_interior)

    # ---- BN2 + ReLU fused into the XLA un-pad/transpose epilogue ----
    y = raw2.reshape(N_pad, Lpad, Co)[:N, :L, :].reshape(N, Hp, Wp, Co)
    y = y[:, 1:H + 1, 1:W + 1, :Cout].astype(jnp.float32)
    out = jnp.maximum(y * scale2[0, :Cout] + bias2[0, :Cout], 0.0)
    return jnp.transpose(out, (0, 3, 1, 2))


# ---------------------------------------------------------------------------
# Pure-JAX reference (identical semantics: SAME conv + training-mode BN + ReLU)
# TODO(synk): PyTorch BatchNorm2d also mutates running_mean/var buffers during
# training; that stateful side-effect has no functional analogue here.
# ---------------------------------------------------------------------------
def conv_block_reference(x_nchw, w1_hwio, g1, b1, w2_hwio, g2, b2):
    x = jnp.transpose(x_nchw, (0, 2, 3, 1)).astype(jnp.float32)

    def conv(x, w):
        return jax.lax.conv_general_dilated(
            x, w, (1, 1), 'SAME',
            dimension_numbers=('NHWC', 'HWIO', 'NHWC'))

    def bn_relu(x, g, b):
        m = jnp.mean(x, axis=(0, 1, 2))
        v = jnp.var(x, axis=(0, 1, 2))
        return jnp.maximum((x - m) * jax.lax.rsqrt(v + EPS) * g + b, 0.0)

    y = bn_relu(conv(x, w1_hwio), g1, b1)
    y = bn_relu(conv(y, w2_hwio), g2, b2)
    return jnp.transpose(y, (0, 3, 1, 2))


if __name__ == "__main__":
    # ConvBlock(in_channels=4, out_channels=8) on a small deterministic input.
    N, Cin, Cout, H, W = 2, 4, 8, 16, 16

    key = jax.random.PRNGKey(0)
    k_x, k_w1, k_w2, k_g1, k_b1, k_g2, k_b2 = jax.random.split(key, 7)

    x = jax.random.normal(k_x, (N, Cin, H, W), jnp.float32)
    # Conv weights in HWIO (PyTorch OIHW weights would just be transposed here).
    w1 = jax.random.normal(k_w1, (3, 3, Cin, Cout), jnp.float32) * (2.0 / (9 * Cin)) ** 0.5
    w2 = jax.random.normal(k_w2, (3, 3, Cout, Cout), jnp.float32) * (2.0 / (9 * Cout)) ** 0.5
    g1 = 1.0 + 0.1 * jax.random.normal(k_g1, (Cout,), jnp.float32)
    b1 = 0.1 * jax.random.normal(k_b1, (Cout,), jnp.float32)
    g2 = 1.0 + 0.1 * jax.random.normal(k_g2, (Cout,), jnp.float32)
    b2 = 0.1 * jax.random.normal(k_b2, (Cout,), jnp.float32)

    ref = jax.block_until_ready(conv_block_reference(x, w1, g1, b1, w2, g2, b2))

    # f32 path: tight check against the pure-JAX reference.
    out = jax.block_until_ready(conv_block_forward(x, w1, g1, b1, w2, g2, b2))
    assert out.shape == (N, Cout, H, W)
    err = float(jnp.max(jnp.abs(out - ref)))
    assert jnp.allclose(out, ref, atol=1e-3, rtol=1e-3), err

    # bf16 storage/MXU-operand path: f32 accumulation + f32 BN statistics.
    out_bf16 = jax.block_until_ready(
        conv_block_forward(x, w1, g1, b1, w2, g2, b2, compute_dtype=jnp.bfloat16))
    err_bf16 = float(jnp.max(jnp.abs(out_bf16 - ref)))
    assert jnp.allclose(out_bf16, ref, atol=1e-1, rtol=1e-1), err_bf16

    # multi-image-per-step path (Nb > 1, no batch padding): same tight check.
    out_b = jax.block_until_ready(
        conv_block_forward(x, w1, g1, b1, w2, g2, b2, images_per_step=2))
    assert jnp.allclose(out_b, ref, atol=1e-3, rtol=1e-3)

    # batch-padding / validity-mask path (N=3 with Nb=2 -> one padded image).
    N2, Cin2, Cout2, H2, W2 = 3, 3, 5, 8, 8
    k2 = jax.random.split(jax.random.PRNGKey(0), 7)
    x2 = jax.random.normal(k2[0], (N2, Cin2, H2, W2), jnp.float32)
    v1 = jax.random.normal(k2[1], (3, 3, Cin2, Cout2), jnp.float32) * 0.3
    v2 = jax.random.normal(k2[2], (3, 3, Cout2, Cout2), jnp.float32) * 0.3
    gg1 = 1.0 + 0.1 * jax.random.normal(k2[3], (Cout2,), jnp.float32)
    bb1 = 0.1 * jax.random.normal(k2[4], (Cout2,), jnp.float32)
    gg2 = 1.0 + 0.1 * jax.random.normal(k2[5], (Cout2,), jnp.float32)
    bb2 = 0.1 * jax.random.normal(k2[6], (Cout2,), jnp.float32)
    ref2 = jax.block_until_ready(
        conv_block_reference(x2, v1, gg1, bb1, v2, gg2, bb2))
    out2 = jax.block_until_ready(
        conv_block_forward(x2, v1, gg1, bb1, v2, gg2, bb2, images_per_step=2))
    err2 = float(jnp.max(jnp.abs(out2 - ref2)))
    assert jnp.allclose(out2, ref2, atol=1e-3, rtol=1e-3), err2

    print("KERNEL_OK")
</pallas_src>

<mosaic_0001>
module attributes {stable_mosaic.version = 11 : i64} {
  func.func @_conv1_stats_kernel(%arg0: i32, %arg1: memref<328x128xf32, #tpu.memory_space<vmem>>, %arg2: memref<9x128x128xf32, #tpu.memory_space<vmem>>, %arg3: memref<1x2x128xf32, #tpu.memory_space<vmem>>) attributes {dimension_semantics = [#tpu.dimension_semantics<parallel>], iteration_bounds = array<i64: 2>, scalar_prefetch = 0 : i64, scratch_operands = 0 : i64, tpu.core_type = #tpu.core_type<tc>, window_params = [{transform_indices = @transform_0, window_bounds = array<i64: 328, 128>}, {pipeline_mode = #tpu.pipeline_mode<synchronous>, transform_indices = @transform_1, window_bounds = array<i64: 9, 128, 128>}, {transform_indices = @transform_2, window_bounds = array<i64: 1, 2, 128>}]} {
    %0 = tpu.iota {dimensions = array<i32: 0>} : vector<328x1xi32>
    %1 = arith.sitofp %0 : vector<328x1xi32> to vector<328x1xf32>
    %cst = arith.constant 3.280000e+02 : f32
    %2 = vector.broadcast %cst : f32 to vector<328x1xf32>
    %3 = arith.divf %1, %2 : vector<328x1xf32>
    %4 = math.floor %3 : vector<328x1xf32>
    %cst_0 = arith.constant 3.280000e+02 : f32
    %5 = vector.broadcast %cst_0 : f32 to vector<328x1xf32>
    %6 = arith.mulf %4, %5 : vector<328x1xf32>
    %7 = arith.subf %1, %6 : vector<328x1xf32>
    %cst_1 = arith.constant 1.800000e+01 : f32
    %8 = vector.broadcast %cst_1 : f32 to vector<328x1xf32>
    %9 = arith.divf %7, %8 : vector<328x1xf32>
    %10 = math.floor %9 : vector<328x1xf32>
    %cst_2 = arith.constant 1.800000e+01 : f32
    %11 = vector.broadcast %cst_2 : f32 to vector<328x1xf32>
    %12 = arith.mulf %10, %11 : vector<328x1xf32>
    %13 = arith.subf %7, %12 : vector<328x1xf32>
    %cst_3 = arith.constant 1.000000e+00 : f32
    %14 = vector.broadcast %cst_3 : f32 to vector<328x1xf32>
    %15 = arith.cmpf oge, %10, %14 : vector<328x1xf32>
    %cst_4 = arith.constant 1.600000e+01 : f32
    %16 = vector.broadcast %cst_4 : f32 to vector<328x1xf32>
    %17 = arith.cmpf ole, %10, %16 : vector<328x1xf32>
    %18 = arith.andi %15, %17 : vector<328x1xi1>
    %cst_5 = arith.constant 1.000000e+00 : f32
    %19 = vector.broadcast %cst_5 : f32 to vector<328x1xf32>
    %20 = arith.cmpf oge, %13, %19 : vector<328x1xf32>
    %21 = arith.andi %18, %20 : vector<328x1xi1>
    %cst_6 = arith.constant 1.600000e+01 : f32
    %22 = vector.broadcast %cst_6 : f32 to vector<328x1xf32>
    %23 = arith.cmpf ole, %13, %22 : vector<328x1xf32>
    %24 = arith.andi %21, %23 : vector<328x1xi1>
    %c1_i32 = arith.constant 1 : i32
    %25 = arith.muli %arg0, %c1_i32 : i32
    %26 = arith.sitofp %25 : i32 to f32
    %27 = vector.broadcast %26 : f32 to vector<328x1xf32>
    %28 = arith.addf %4, %27 : vector<328x1xf32>
    %cst_7 = arith.constant 2.000000e+00 : f32
    %29 = vector.broadcast %cst_7 : f32 to vector<328x1xf32>
    %30 = arith.cmpf olt, %28, %29 : vector<328x1xf32>
    %31 = arith.andi %24, %30 : vector<328x1xi1>
    %32 = arith.extui %31 : vector<328x1xi1> to vector<328x1xi32>
    %33 = arith.sitofp %32 : vector<328x1xi32> to vector<328x1xf32>
    %c0 = arith.constant 0 : index
    %c0_8 = arith.constant 0 : index
    %34 = vector.load %arg1[%c0, %c0_8] : memref<328x128xf32, #tpu.memory_space<vmem>>, vector<328x128xf32>
    %cst_9 = arith.constant 0.000000e+00 : f32
    %35 = vector.broadcast %cst_9 : f32 to vector<328x128xf32>
    %36 = vector.extract_strided_slice %34 {offsets = [309, 0], sizes = [19, 128], strides = [1, 1]} : vector<328x128xf32> to vector<19x128xf32>
    %37 = vector.extract_strided_slice %34 {offsets = [0, 0], sizes = [309, 128], strides = [1, 1]} : vector<328x128xf32> to vector<309x128xf32>
    %38 = tpu.concatenate %36, %37 in 0 : vector<19x128xf32>, vector<309x128xf32> -> vector<328x128xf32>
    %c0_10 = arith.constant 0 : index
    %c0_11 = arith.constant 0 : index
    %c0_12 = arith.constant 0 : index
    %39 = vector.load %arg2[%c0_10, %c0_11, %c0_12] : memref<9x128x128xf32, #tpu.memory_space<vmem>>, vector<1x128x128xf32>
    %40 = vector.shape_cast %39 : vector<1x128x128xf32> to vector<128x128xf32>
    %cst_13 = arith.constant dense<0.000000e+00> : vector<328x128xf32>
    %41 = tpu.matmul %38, %40, %cst_13 {dimension_numbers = #tpu.dot_dimension_numbers<[1], [0], [0], [1], [0, 0, 1, 1], [], []>} : vector<328x128xf32>, vector<128x128xf32>, vector<328x128xf32> -> vector<328x128xf32>
    %42 = arith.addf %35, %41 : vector<328x128xf32>
    %43 = vector.extract_strided_slice %34 {offsets = [310, 0], sizes = [18, 128], strides = [1, 1]} : vector<328x128xf32> to vector<18x128xf32>
    %44 = vector.extract_strided_slice %34 {offsets = [0, 0], sizes = [310, 128], strides = [1, 1]} : vector<328x128xf32> to vector<310x128xf32>
    %45 = tpu.concatenate %43, %44 in 0 : vector<18x128xf32>, vector<310x128xf32> -> vector<328x128xf32>
    %c1 = arith.constant 1 : index
    %c0_14 = arith.constant 0 : index
    %c0_15 = arith.constant 0 : index
    %46 = vector.load %arg2[%c1, %c0_14, %c0_15] : memref<9x128x128xf32, #tpu.memory_space<vmem>>, vector<1x128x128xf32>
    %47 = vector.shape_cast %46 : vector<1x128x128xf32> to vector<128x128xf32>
    %cst_16 = arith.constant dense<0.000000e+00> : vector<328x128xf32>
    %48 = tpu.matmul %45, %47, %cst_16 {dimension_numbers = #tpu.dot_dimension_numbers<[1], [0], [0], [1], [0, 0, 1, 1], [], []>} : vector<328x128xf32>, vector<128x128xf32>, vector<328x128xf32> -> vector<328x128xf32>
    %49 = arith.addf %42, %48 : vector<328x128xf32>
    %50 = vector.extract_strided_slice %34 {offsets = [311, 0], sizes = [17, 128], strides = [1, 1]} : vector<328x128xf32> to vector<17x128xf32>
    %51 = vector.extract_strided_slice %34 {offsets = [0, 0], sizes = [311, 128], strides = [1, 1]} : vector<328x128xf32> to vector<311x128xf32>
    %52 = tpu.concatenate %50, %51 in 0 : vector<17x128xf32>, vector<311x128xf32> -> vector<328x128xf32>
    %c2 = arith.constant 2 : index
    %c0_17 = arith.constant 0 : index
    %c0_18 = arith.constant 0 : index
    %53 = vector.load %arg2[%c2, %c0_17, %c0_18] : memref<9x128x128xf32, #tpu.memory_space<vmem>>, vector<1x128x128xf32>
    %54 = vector.shape_cast %53 : vector<1x128x128xf32> to vector<128x128xf32>
    %cst_19 = arith.constant dense<0.000000e+00> : vector<328x128xf32>
    %55 = tpu.matmul %52, %54, %cst_19 {dimension_numbers = #tpu.dot_dimension_numbers<[1], [0], [0], [1], [0, 0, 1, 1], [], []>} : vector<328x128xf32>, vector<128x128xf32>, vector<328x128xf32> -> vector<328x128xf32>
    %56 = arith.addf %49, %55 : vector<328x128xf32>
    %57 = vector.extract_strided_slice %34 {offsets = [327, 0], sizes = [1, 128], strides = [1, 1]} : vector<328x128xf32> to vector<1x128xf32>
    %58 = vector.extract_strided_slice %34 {offsets = [0, 0], sizes = [327, 128], strides = [1, 1]} : vector<328x128xf32> to vector<327x128xf32>
    %59 = tpu.concatenate %57, %58 in 0 : vector<1x128xf32>, vector<327x128xf32> -> vector<328x128xf32>
    %c3 = arith.constant 3 : index
    %c0_20 = arith.constant 0 : index
    %c0_21 = arith.constant 0 : index
    %60 = vector.load %arg2[%c3, %c0_20, %c0_21] : memref<9x128x128xf32, #tpu.memory_space<vmem>>, vector<1x128x128xf32>
    %61 = vector.shape_cast %60 : vector<1x128x128xf32> to vector<128x128xf32>
    %cst_22 = arith.constant dense<0.000000e+00> : vector<328x128xf32>
    %62 = tpu.matmul %59, %61, %cst_22 {dimension_numbers = #tpu.dot_dimension_numbers<[1], [0], [0], [1], [0, 0, 1, 1], [], []>} : vector<328x128xf32>, vector<128x128xf32>, vector<328x128xf32> -> vector<328x128xf32>
    %63 = arith.addf %56, %62 : vector<328x128xf32>
    %c4 = arith.constant 4 : index
    %c0_23 = arith.constant 0 : index
    %c0_24 = arith.constant 0 : index
    %64 = vector.load %arg2[%c4, %c0_23, %c0_24] : memref<9x128x128xf32, #tpu.memory_space<vmem>>, vector<1x128x128xf32>
    %65 = vector.shape_cast %64 : vector<1x128x128xf32> to vector<128x128xf32>
    %cst_25 = arith.constant dense<0.000000e+00> : vector<328x128xf32>
    %66 = tpu.matmul %34, %65, %cst_25 {dimension_numbers = #tpu.dot_dimension_numbers<[1], [0], [0], [1], [0, 0, 1, 1], [], []>} : vector<328x128xf32>, vector<128x128xf32>, vector<328x128xf32> -> vector<328x128xf32>
    %67 = arith.addf %63, %66 : vector<328x128xf32>
    %68 = vector.extract_strided_slice %34 {offsets = [1, 0], sizes = [327, 128], strides = [1, 1]} : vector<328x128xf32> to vector<327x128xf32>
    %69 = vector.extract_strided_slice %34 {offsets = [0, 0], sizes = [1, 128], strides = [1, 1]} : vector<328x128xf32> to vector<1x128xf32>
    %70 = tpu.concatenate %68, %69 in 0 : vector<327x128xf32>, vector<1x128xf32> -> vector<328x128xf32>
    %c5 = arith.constant 5 : index
    %c0_26 = arith.constant 0 : index
    %c0_27 = arith.constant 0 : index
    %71 = vector.load %arg2[%c5, %c0_26, %c0_27] : memref<9x128x128xf32, #tpu.memory_space<vmem>>, vector<1x128x128xf32>
    %72 = vector.shape_cast %71 : vector<1x128x128xf32> to vector<128x128xf32>
    %cst_28 = arith.constant dense<0.000000e+00> : vector<328x128xf32>
    %73 = tpu.matmul %70, %72, %cst_28 {dimension_numbers = #tpu.dot_dimension_numbers<[1], [0], [0], [1], [0, 0, 1, 1], [], []>} : vector<328x128xf32>, vector<128x128xf32>, vector<328x128xf32> -> vector<328x128xf32>
    %74 = arith.addf %67, %73 : vector<328x128xf32>
    %75 = vector.extract_strided_slice %34 {offsets = [17, 0], sizes = [311, 128], strides = [1, 1]} : vector<328x128xf32> to vector<311x128xf32>
    %76 = vector.extract_strided_slice %34 {offsets = [0, 0], sizes = [17, 128], strides = [1, 1]} : vector<328x128xf32> to vector<17x128xf32>
    %77 = tpu.concatenate %75, %76 in 0 : vector<311x128xf32>, vector<17x128xf32> -> vector<328x128xf32>
    %c6 = arith.constant 6 : index
    %c0_29 = arith.constant 0 : index
    %c0_30 = arith.constant 0 : index
    %78 = vector.load %arg2[%c6, %c0_29, %c0_30] : memref<9x128x128xf32, #tpu.memory_space<vmem>>, vector<1x128x128xf32>
    %79 = vector.shape_cast %78 : vector<1x128x128xf32> to vector<128x128xf32>
    %cst_31 = arith.constant dense<0.000000e+00> : vector<328x128xf32>
    %80 = tpu.matmul %77, %79, %cst_31 {dimension_numbers = #tpu.dot_dimension_numbers<[1], [0], [0], [1], [0, 0, 1, 1], [], []>} : vector<328x128xf32>, vector<128x128xf32>, vector<328x128xf32> -> vector<328x128xf32>
    %81 = arith.addf %74, %80 : vector<328x128xf32>
    %82 = vector.extract_strided_slice %34 {offsets = [18, 0], sizes = [310, 128], strides = [1, 1]} : vector<328x128xf32> to vector<310x128xf32>
    %83 = vector.extract_strided_slice %34 {offsets = [0, 0], sizes = [18, 128], strides = [1, 1]} : vector<328x128xf32> to vector<18x128xf32>
    %84 = tpu.concatenate %82, %83 in 0 : vector<310x128xf32>, vector<18x128xf32> -> vector<328x128xf32>
    %c7 = arith.constant 7 : index
    %c0_32 = arith.constant 0 : index
    %c0_33 = arith.constant 0 : index
    %85 = vector.load %arg2[%c7, %c0_32, %c0_33] : memref<9x128x128xf32, #tpu.memory_space<vmem>>, vector<1x128x128xf32>
    %86 = vector.shape_cast %85 : vector<1x128x128xf32> to vector<128x128xf32>
    %cst_34 = arith.constant dense<0.000000e+00> : vector<328x128xf32>
    %87 = tpu.matmul %84, %86, %cst_34 {dimension_numbers = #tpu.dot_dimension_numbers<[1], [0], [0], [1], [0, 0, 1, 1], [], []>} : vector<328x128xf32>, vector<128x128xf32>, vector<328x128xf32> -> vector<328x128xf32>
    %88 = arith.addf %81, %87 : vector<328x128xf32>
    %89 = vector.extract_strided_slice %34 {offsets = [19, 0], sizes = [309, 128], strides = [1, 1]} : vector<328x128xf32> to vector<309x128xf32>
    %90 = vector.extract_strided_slice %34 {offsets = [0, 0], sizes = [19, 128], strides = [1, 1]} : vector<328x128xf32> to vector<19x128xf32>
    %91 = tpu.concatenate %89, %90 in 0 : vector<309x128xf32>, vector<19x128xf32> -> vector<328x128xf32>
    %c8 = arith.constant 8 : index
    %c0_35 = arith.constant 0 : index
    %c0_36 = arith.constant 0 : index
    %92 = vector.load %arg2[%c8, %c0_35, %c0_36] : memref<9x128x128xf32, #tpu.memory_space<vmem>>, vector<1x128x128xf32>
    %93 = vector.shape_cast %92 : vector<1x128x128xf32> to vector<128x128xf32>
    %cst_37 = arith.constant dense<0.000000e+00> : vector<328x128xf32>
    %94 = tpu.matmul %91, %93, %cst_37 {dimension_numbers = #tpu.dot_dimension_numbers<[1], [0], [0], [1], [0, 0, 1, 1], [], []>} : vector<328x128xf32>, vector<128x128xf32>, vector<328x128xf32> -> vector<328x128xf32>
    %95 = arith.addf %88, %94 : vector<328x128xf32>
    %96 = vector.broadcast %33 : vector<328x1xf32> to vector<328x128xf32>
    %97 = arith.mulf %95, %96 : vector<328x128xf32>
    %cst_38 = arith.constant dense<0.000000e+00> : vector<128xf32>
    %98 = vector.multi_reduction <add>, %97, %cst_38 [0] : vector<328x128xf32> to vector<128xf32>
    %99 = vector.shape_cast %98 : vector<128xf32> to vector<1x128xf32>
    %100 = arith.mulf %97, %97 : vector<328x128xf32>
    %cst_39 = arith.constant dense<0.000000e+00> : vector<128xf32>
    %101 = vector.multi_reduction <add>, %100, %cst_39 [0] : vector<328x128xf32> to vector<128xf32>
    %102 = vector.shape_cast %101 : vector<128xf32> to vector<1x128xf32>
    %103 = tpu.concatenate %99, %102 in 0 : vector<1x128xf32>, vector<1x128xf32> -> vector<2x128xf32>
    %c0_40 = arith.constant 0 : index
    %c0_41 = arith.constant 0 : index
    %c0_42 = arith.constant 0 : index
    %104 = vector.load %arg3[%c0_40, %c0_41, %c0_42] : memref<1x2x128xf32, #tpu.memory_space<vmem>>, vector<1x2x128xf32>
    %105 = vector.shape_cast %104 : vector<1x2x128xf32> to vector<2x128xf32>
    %106 = vector.shape_cast %103 : vector<2x128xf32> to vector<1x2x128xf32>
    tpu.vector_store %arg3[%c0_40, %c0_41, %c0_42], %106 {strides = array<i32>} : memref<1x2x128xf32, #tpu.memory_space<vmem>>, vector<1x2x128xf32>,
    return
  }
  func.func @transform_0(%arg0: i32) -> (i32, i32) {
    %c0_i32 = arith.constant 0 : i32
    %c0_i32_0 = arith.constant 0 : i32
    return %arg0, %c0_i32 : i32, i32
  }
  func.func @transform_1(%arg0: i32) -> (i32, i32, i32) {
    %c0_i32 = arith.constant 0 : i32
    %c0_i32_0 = arith.constant 0 : i32
    %c0_i32_1 = arith.constant 0 : i32
    %c0_i32_2 = arith.constant 0 : i32
    return %c0_i32, %c0_i32_0, %c0_i32_1 : i32, i32, i32
  }
  func.func @transform_2(%arg0: i32) -> (i32, i32, i32) {
    %c0_i32 = arith.constant 0 : i32
    %c0_i32_0 = arith.constant 0 : i32
    %c0_i32_1 = arith.constant 0 : i32
    return %arg0, %c0_i32, %c0_i32_0 : i32, i32, i32
  }
}

</mosaic_0001>

<llo_original>
// kernel: tpu_custom_call.1
$region0: #{tpu_custom_call.1}
  #allocation0 [shape = 'u32[]', space=smem, size = 0x4, offset = 0x4, fixed_abs, tag = 'smem constant byte address 0x4 - core index']
  #allocation1 [shape = 'u32[144,128]{1,0:T(1,128)}', space=vmem, size = 0x12000, scoped, tag = 'internal scratch']
  %s0 = inlined_call_operand.hbm [shape: f32[656,128], index: 0, kind: input, shape index: {}]
  %s1 = inlined_call_operand.hbm [shape: f32[9,128,128], index: 1, kind: input, shape index: {}]
  %s2 = inlined_call_operand.hbm [shape: f32[2,2,128], index: 2, kind: output, shape index: {}]
  %s3 = sld [smem:[#allocation0]]
  $region49: #{tpu_custom_call.1} parent=0
    _
  %s5 = ssub.s32 1, %s3
  %s6 = scalar_select 0, %s5, %s3
  $region1: #{tpu_custom_call.1} parent=0
    #allocation2 [shape = 'u8[335872]{0}', space=vmem, size = 0x52000, scoped, tag = 'input window, operand 0']
    #allocation3 [shape = 's32[2]{0}', space=sflag, size = 0x8, scoped, tag = 'scoped memory for tpu_custom_call.1']
    #allocation4 [shape = 's32[2]{0}', space=sflag, size = 0x8, scoped, tag = 'scoped memory for tpu_custom_call.1']
    #allocation5 [shape = 'u8[589824]{0}', space=vmem, size = 0x90000, scoped, tag = 'input window, operand 1, single buffered']
    #allocation6 [shape = 's32[1]{0}', space=sflag, size = 0x4, scoped, tag = 'scoped memory for tpu_custom_call.1']
    #allocation7 [shape = 'u8[2048]{0}', space=vmem, size = 0x800, scoped, tag = 'output window, operand 0']
    %7 = vsyncpa [#allocation3], 0
    %s8 = scalar_lea.sflag [#allocation3], 1
    %9 = vsyncpa %s8, 0
    %10 = vsyncpa [#allocation6], 0
    %11 = vsyncpa [#allocation4], 0
    %s12 = scalar_lea.sflag [#allocation4], 1
    %13 = vsyncpa %s12, 0
    loop: start=0, step=1, limit=4
    $region2: #{tpu_custom_call.1} parent=1 // loop_pre_header
      _
    $region3: #{tpu_custom_call.1} parent=1 // loop_header
      %s15 = sphi 0, %s19
      %p16 = scmp.ge.s32.totalorder %s15, 4
      %s25 = sphi 0, %s27
      %s28 = sphi 0, %s25
      %s29 = sphi 0, %s28
      %s45 = sphi 0, %s29
      %s49 = sphi 0, %s49
      %s51 = sphi 0, %s49
      %s52 = sphi 0, %s51
      %s66 = sphi 0, %s52
      %s72 = sphi 0, %s74
      %s75 = sphi 0, %s72
      %s76 = sphi 0, %s75
      %s92 = sphi 0, %s76
    $region4: #{tpu_custom_call.1} parent=1 // loop_header_branch
      %18 = sbr.rel (%p16) target = $region8
    $region5: #{tpu_custom_call.1} parent=1 // loop_body
      %s20 = ssub.s32 %s15, 1
      %s21 = ssub.s32 %s15, 2
      %s22 = sadd.s32 %s15, 1
      %s23 = ssub.s32 %s15, %s22
      %p24 = scmp.eq.s32.totalorder %s23, 0
      %s26 = sadd.s32 %s25, 1
      %s27 = scalar_select %p24, %s25, %s26
      %p30 = pneg %p24
      %p31 = scmp.eq.s32.totalorder %s15, 1
      %p32 = por %p30, %p31
      %p33 = scmp.ne.s32.totalorder %s25, %s28
      %p34 = scmp.eq.s32.totalorder %s15, 0
      %p35 = por %p33, %p34
      %p36 = scmp.ne.s32.totalorder %s25, %s28
      %p37 = scmp.eq.s32.totalorder %s20, 1
      %p38 = por %p36, %p37
      %p39 = scmp.ne.s32.totalorder %s28, %s29
      %p40 = scmp.eq.s32.totalorder %s20, 0
      %p41 = por %p39, %p40
      %p42 = scmp.ne.s32.totalorder %s28, %s29
      %p43 = scmp.eq.s32.totalorder %s21, 1
      %p44 = por %p42, %p43
      %p46 = scmp.ne.s32.totalorder %s29, %s45
      %p47 = scmp.eq.s32.totalorder %s21, 0
      %p48 = por %p46, %p47
      %s50 = sadd.s32 %s49, 1
      %p53 = scmp.eq.s32.totalorder %s15, 1
      %p54 = scmp.ne.s32.totalorder %s49, %s51
      %p55 = scmp.eq.s32.totalorder %s15, 0
      %p56 = por %p54, %p55
      %p57 = scmp.ne.s32.totalorder %s49, %s51
      %p58 = scmp.eq.s32.totalorder %s20, 1
      %p59 = por %p57, %p58
      %p60 = scmp.ne.s32.totalorder %s51, %s52
      %p61 = scmp.eq.s32.totalorder %s20, 0
      %p62 = por %p60, %p61
      %p63 = scmp.ne.s32.totalorder %s51, %s52
      %p64 = scmp.eq.s32.totalorder %s21, 1
      %p65 = por %p63, %p64
      %p67 = scmp.ne.s32.totalorder %s52, %s66
      %p68 = scmp.eq.s32.totalorder %s21, 0
      %p69 = por %p67, %p68
      %s70 = ssub.s32 %s15, %s22
      %p71 = scmp.eq.s32.totalorder %s70, 0
      %s73 = sadd.s32 %s72, 1
      %s74 = scalar_select %p71, %s72, %s73
      %p77 = pneg %p71
      %p78 = scmp.eq.s32.totalorder %s15, 1
      %p79 = por %p77, %p78
      %p80 = scmp.ne.s32.totalorder %s72, %s75
      %p81 = scmp.eq.s32.totalorder %s15, 0
      %p82 = por %p80, %p81
      %p83 = scmp.ne.s32.totalorder %s72, %s75
      %p84 = scmp.eq.s32.totalorder %s20, 1
      %p85 = por %p83, %p84
      %p86 = scmp.ne.s32.totalorder %s75, %s76
      %p87 = scmp.eq.s32.totalorder %s20, 0
      %p88 = por %p86, %p87
      %p89 = scmp.ne.s32.totalorder %s75, %s76
      %p90 = scmp.eq.s32.totalorder %s21, 1
      %p91 = por %p89, %p90
      %p93 = scmp.ne.s32.totalorder %s76, %s92
      %p94 = scmp.eq.s32.totalorder %s21, 0
      %p95 = por %p93, %p94
      %p96 = scmp.le.s32.totalorder 1, %s15
      %p97 = scmp.lt.s32.totalorder %s15, 3
      %p98 = pnand %p96, %p97
      %p99 = pneg %p98
      // Predicated region
      $region9: #{tpu_custom_call.1} parent=5 // pred_check
        _
      $region10: #{tpu_custom_call.1} parent=5 // pred_check_branch
        %101 = sbr.rel (%p98) target = $region12
      $region11: #{tpu_custom_call.1} parent=5 // pred_region
        %s102 = ssub.s32 %s15, 1
        // Predicated region
        $region13: #{tpu_custom_call.1} parent=11 // pred_check
          %p103 = pneg %p62
        $region14: #{tpu_custom_call.1} parent=11 // pred_check_branch
          %105 = sbr.rel (%p103) target = $region16
        $region15: #{tpu_custom_call.1} parent=11 // pred_region
          %s107 = ssub.s32 18432, 18432
          %108 = vsyncadd [#allocation6], %s107
          %s109 = sshll.u32 [#allocation5], 4
          %s110 = int_to_ptr.vmem [resolvable:$true] %s109
          %115 = dma.hbm_to_vmem [thread:$0]  %s1, 18432, %s110, [#allocation6], 128, 128, 8
        $region16: #{tpu_custom_call.1} parent=11 // pred_fallthru
          _
      $region12: #{tpu_custom_call.1} parent=5 // pred_fallthru
        _
      %p116 = scmp.lt.s32.totalorder %s15, 2
      // Predicated region
      $region17: #{tpu_custom_call.1} parent=5 // pred_check
        %p117 = pneg %p116
      $region18: #{tpu_custom_call.1} parent=5 // pred_check_branch
        %119 = sbr.rel (%p117) target = $region20
      $region19: #{tpu_custom_call.1} parent=5 // pred_region
        // Predicated region
        $region21: #{tpu_custom_call.1} parent=19 // pred_check
          %p120 = pneg %p35
        $region22: #{tpu_custom_call.1} parent=19 // pred_check_branch
          %122 = sbr.rel (%p120) target = $region24
        $region23: #{tpu_custom_call.1} parent=19 // pred_region
          %s123 = sand.u32 %s25, 1
          %s124 = scalar_lea.sflag [#allocation3], %s123
          %s125 = sand.u32 %s25, 1
          %s126 = smul.addr %s125, 328
          %s127 = scalar_lea.vmem [#allocation2], %s126
          %s128 = smul.u32 41, %s15
          %s130 = ssub.s32 5248, 5248
          %131 = vsyncadd %s124, %s130
          %s132 = smul.addr %s128, 128
          %s133 = scalar_lea.hbm %s0, %s132
          %s134 = sshll.u32 %s127, 4
          %s135 = int_to_ptr.vmem [resolvable:$true] %s134
          %140 = dma.hbm_to_vmem [thread:$0]  %s133, 5248, %s135, %s124, 128, 128, 8
        $region24: #{tpu_custom_call.1} parent=19 // pred_fallthru
          _
      $region20: #{tpu_custom_call.1} parent=5 // pred_fallthru
        _
      %p141 = scmp.le.s32.totalorder 1, %s15
      %p142 = scmp.lt.s32.totalorder %s15, 3
      %p143 = pnand %p141, %p142
      %p144 = pneg %p143
      // Predicated region
      $region25: #{tpu_custom_call.1} parent=5 // pred_check
        _
      $region26: #{tpu_custom_call.1} parent=5 // pred_check_branch
        %146 = sbr.rel (%p143) target = $region28
      $region27: #{tpu_custom_call.1} parent=5 // pred_region
        %s147 = ssub.s32 %s15, 1
        %s148 = sand.u32 %s28, 1
        %s149 = scalar_lea.sflag [#allocation3], %s148
        %s150 = sand.u32 %s28, 1
        %s151 = smul.addr %s150, 328
        %s152 = scalar_lea.vmem [#allocation2], %s151
        // Predicated region
        $region29: #{tpu_custom_call.1} parent=27 // pred_check
          %p153 = pneg %p41
        $region30: #{tpu_custom_call.1} parent=27 // pred_check_branch
          %155 = sbr.rel (%p153) target = $region32
        $region31: #{tpu_custom_call.1} parent=27 // pred_region
          %156 = dma.done %s149, 5248
        $region32: #{tpu_custom_call.1} parent=27 // pred_fallthru
          _
        // Predicated region
        $region33: #{tpu_custom_call.1} parent=27 // pred_check
          %p157 = pneg %p62
        $region34: #{tpu_custom_call.1} parent=27 // pred_check_branch
          %159 = sbr.rel (%p157) target = $region36
        $region35: #{tpu_custom_call.1} parent=27 // pred_region
          %160 = dma.done [#allocation6], 18432
        $region36: #{tpu_custom_call.1} parent=27 // pred_fallthru
          _
        %s161 = sand.u32 %s28, 1
        %s162 = scalar_lea.sflag [#allocation3], %s161
        %s163 = sand.u32 %s28, 1
        %s164 = smul.addr %s163, 328
        %s165 = scalar_lea.vmem [#allocation2], %s164
        %p166 = pneg %p41
        %p167 = pneg %p38
        %p168 = pneg %p62
        %p169 = pneg %p59
        %p170 = pneg %p88
        %p171 = pneg %p85
        %s172 = sand.u32 %s75, 1
        %s173 = scalar_lea.sflag [#allocation4], %s172
        %s174 = sand.u32 %s75, 1
        %s175 = smul.addr %s174, 2
        %s176 = scalar_lea.vmem [#allocation7], %s175
        %s177 = smul.u32 41, %s20
        %v178 = vlaneseq
        %v179 = vshrl.u32 %v178, 7
        %v180 = vadd.s32 %v179, 8
        %v181 = vadd.s32 %v179, 16
        %v182 = vadd.s32 %v179, 24
        %v183 = vadd.s32 %v179, 32
        %v184 = vadd.s32 %v179, 40
        %v185 = vadd.s32 %v179, 48
        %v186 = vadd.s32 %v179, 56
        %v187 = vadd.s32 %v179, 64
        %v188 = vadd.s32 %v179, 72
        %v189 = vadd.s32 %v179, 80
        %v190 = vadd.s32 %v179, 88
        %v191 = vadd.s32 %v179, 96
        %v192 = vadd.s32 %v179, 104
        %v193 = vadd.s32 %v179, 112
        %v194 = vadd.s32 %v179, 120
        %v195 = vadd.s32 %v179, 128
        %v196 = vadd.s32 %v179, 136
        %v197 = vadd.s32 %v179, 144
        %v198 = vadd.s32 %v179, 152
        %v199 = vadd.s32 %v179, 160
        %v200 = vadd.s32 %v179, 168
        %v201 = vadd.s32 %v179, 176
        %v202 = vadd.s32 %v179, 184
        %v203 = vadd.s32 %v179, 192
        %v204 = vadd.s32 %v179, 200
        %v205 = vadd.s32 %v179, 208
        %v206 = vadd.s32 %v179, 216
        %v207 = vadd.s32 %v179, 224
        %v208 = vadd.s32 %v179, 232
        %v209 = vadd.s32 %v179, 240
        %v210 = vadd.s32 %v179, 248
        %v211 = vadd.s32 %v179, 256
        %v212 = vadd.s32 %v179, 264
        %v213 = vadd.s32 %v179, 272
        %v214 = vadd.s32 %v179, 280
        %v215 = vadd.s32 %v179, 288
        %v216 = vadd.s32 %v179, 296
        %v217 = vadd.s32 %v179, 304
        %v218 = vadd.s32 %v179, 312
        %v219 = vadd.s32 %v179, 320
        %v220 = vcvt.s32.f32 %v179
        %v221 = vcvt.s32.f32 %v180
        %v222 = vcvt.s32.f32 %v181
        %v223 = vcvt.s32.f32 %v182
        %v224 = vcvt.s32.f32 %v183
        %v225 = vcvt.s32.f32 %v184
        %v226 = vcvt.s32.f32 %v185
        %v227 = vcvt.s32.f32 %v186
        %v228 = vcvt.s32.f32 %v187
        %v229 = vcvt.s32.f32 %v188
        %v230 = vcvt.s32.f32 %v189
        %v231 = vcvt.s32.f32 %v190
        %v232 = vcvt.s32.f32 %v191
        %v233 = vcvt.s32.f32 %v192
        %v234 = vcvt.s32.f32 %v193
        %v235 = vcvt.s32.f32 %v194
        %v236 = vcvt.s32.f32 %v195
        %v237 = vcvt.s32.f32 %v196
        %v238 = vcvt.s32.f32 %v197
        %v239 = vcvt.s32.f32 %v198
        %v240 = vcvt.s32.f32 %v199
        %v241 = vcvt.s32.f32 %v200
        %v242 = vcvt.s32.f32 %v201
        %v243 = vcvt.s32.f32 %v202
        %v244 = vcvt.s32.f32 %v203
        %v245 = vcvt.s32.f32 %v204
        %v246 = vcvt.s32.f32 %v205
        %v247 = vcvt.s32.f32 %v206
        %v248 = vcvt.s32.f32 %v207
        %v249 = vcvt.s32.f32 %v208
        %v250 = vcvt.s32.f32 %v209
        %v251 = vcvt.s32.f32 %v210
        %v252 = vcvt.s32.f32 %v211
        %v253 = vcvt.s32.f32 %v212
        %v254 = vcvt.s32.f32 %v213
        %v255 = vcvt.s32.f32 %v214
        %v256 = vcvt.s32.f32 %v215
        %v257 = vcvt.s32.f32 %v216
        %v258 = vcvt.s32.f32 %v217
        %v259 = vcvt.s32.f32 %v218
        %v260 = vcvt.s32.f32 %v219
        %v261 = vrcp.pop 328.0
        %v262 = vmul.f32 %v220, %v261
        %v263 = vmul.f32 %v221, %v261
        %v264 = vmul.f32 %v222, %v261
        %v265 = vmul.f32 %v223, %v261
        %v266 = vmul.f32 %v224, %v261
        %v267 = vmul.f32 %v225, %v261
        %v268 = vmul.f32 %v226, %v261
        %v269 = vmul.f32 %v227, %v261
        %v270 = vmul.f32 %v228, %v261
        %v271 = vmul.f32 %v229, %v261
        %v272 = vmul.f32 %v230, %v261
        %v273 = vmul.f32 %v231, %v261
        %v274 = vmul.f32 %v232, %v261
        %v275 = vmul.f32 %v233, %v261
        %v276 = vmul.f32 %v234, %v261
        %v277 = vmul.f32 %v235, %v261
        %v278 = vmul.f32 %v236, %v261
        %v279 = vmul.f32 %v237, %v261
        %v280 = vmul.f32 %v238, %v261
        %v281 = vmul.f32 %v239, %v261
        %v282 = vmul.f32 %v240, %v261
        %v283 = vmul.f32 %v241, %v261
        %v284 = vmul.f32 %v242, %v261
        %v285 = vmul.f32 %v243, %v261
        %v286 = vmul.f32 %v244, %v261
        %v287 = vmul.f32 %v245, %v261
        %v288 = vmul.f32 %v246, %v261
        %v289 = vmul.f32 %v247, %v261
        %v290 = vmul.f32 %v248, %v261
        %v291 = vmul.f32 %v249, %v261
        %v292 = vmul.f32 %v250, %v261
        %v293 = vmul.f32 %v251, %v261
        %v294 = vmul.f32 %v252, %v261
        %v295 = vmul.f32 %v253, %v261
        %v296 = vmul.f32 %v254, %v261
        %v297 = vmul.f32 %v255, %v261
        %v298 = vmul.f32 %v256, %v261
        %v299 = vmul.f32 %v257, %v261
        %v300 = vmul.f32 %v258, %v261
        %v301 = vmul.f32 %v259, %v261
        %v302 = vmul.f32 %v260, %v261
        %v303 = vfloor.f32 %v262
        %v304 = vfloor.f32 %v263
        %v305 = vfloor.f32 %v264
        %v306 = vfloor.f32 %v265
        %v307 = vfloor.f32 %v266
        %v308 = vfloor.f32 %v267
        %v309 = vfloor.f32 %v268
        %v310 = vfloor.f32 %v269
        %v311 = vfloor.f32 %v270
        %v312 = vfloor.f32 %v271
        %v313 = vfloor.f32 %v272
        %v314 = vfloor.f32 %v273
        %v315 = vfloor.f32 %v274
        %v316 = vfloor.f32 %v275
        %v317 = vfloor.f32 %v276
        %v318 = vfloor.f32 %v277
        %v319 = vfloor.f32 %v278
        %v320 = vfloor.f32 %v279
        %v321 = vfloor.f32 %v280
        %v322 = vfloor.f32 %v281
        %v323 = vfloor.f32 %v282
        %v324 = vfloor.f32 %v283
        %v325 = vfloor.f32 %v284
        %v326 = vfloor.f32 %v285
        %v327 = vfloor.f32 %v286
        %v328 = vfloor.f32 %v287
        %v329 = vfloor.f32 %v288
        %v330 = vfloor.f32 %v289
        %v331 = vfloor.f32 %v290
        %v332 = vfloor.f32 %v291
        %v333 = vfloor.f32 %v292
        %v334 = vfloor.f32 %v293
        %v335 = vfloor.f32 %v294
        %v336 = vfloor.f32 %v295
        %v337 = vfloor.f32 %v296
        %v338 = vfloor.f32 %v297
        %v339 = vfloor.f32 %v298
        %v340 = vfloor.f32 %v299
        %v341 = vfloor.f32 %v300
        %v342 = vfloor.f32 %v301
        %v343 = vfloor.f32 %v302
        %v344 = vmul.f32 %v303, 328.0
        %v345 = vmul.f32 %v304, 328.0
        %v346 = vmul.f32 %v305, 328.0
        %v347 = vmul.f32 %v306, 328.0
        %v348 = vmul.f32 %v307, 328.0
        %v349 = vmul.f32 %v308, 328.0
        %v350 = vmul.f32 %v309, 328.0
        %v351 = vmul.f32 %v310, 328.0
        %v352 = vmul.f32 %v311, 328.0
        %v353 = vmul.f32 %v312, 328.0
        %v354 = vmul.f32 %v313, 328.0
        %v355 = vmul.f32 %v314, 328.0
        %v356 = vmul.f32 %v315, 328.0
        %v357 = vmul.f32 %v316, 328.0
        %v358 = vmul.f32 %v317, 328.0
        %v359 = vmul.f32 %v318, 328.0
        %v360 = vmul.f32 %v319, 328.0
        %v361 = vmul.f32 %v320, 328.0
        %v362 = vmul.f32 %v321, 328.0
        %v363 = vmul.f32 %v322, 328.0
        %v364 = vmul.f32 %v323, 328.0
        %v365 = vmul.f32 %v324, 328.0
        %v366 = vmul.f32 %v325, 328.0
        %v367 = vmul.f32 %v326, 328.0
        %v368 = vmul.f32 %v327, 328.0
        %v369 = vmul.f32 %v328, 328.0
        %v370 = vmul.f32 %v329, 328.0
        %v371 = vmul.f32 %v330, 328.0
        %v372 = vmul.f32 %v331, 328.0
        %v373 = vmul.f32 %v332, 328.0
        %v374 = vmul.f32 %v333, 328.0
        %v375 = vmul.f32 %v334, 328.0
        %v376 = vmul.f32 %v335, 328.0
        %v377 = vmul.f32 %v336, 328.0
        %v378 = vmul.f32 %v337, 328.0
        %v379 = vmul.f32 %v338, 328.0
        %v380 = vmul.f32 %v339, 328.0
        %v381 = vmul.f32 %v340, 328.0
        %v382 = vmul.f32 %v341, 328.0
        %v383 = vmul.f32 %v342, 328.0
        %v384 = vmul.f32 %v343, 328.0
        %v385 = vsub.f32 %v220, %v344
        %v386 = vsub.f32 %v221, %v345
        %v387 = vsub.f32 %v222, %v346
        %v388 = vsub.f32 %v223, %v347
        %v389 = vsub.f32 %v224, %v348
        %v390 = vsub.f32 %v225, %v349
        %v391 = vsub.f32 %v226, %v350
        %v392 = vsub.f32 %v227, %v351
        %v393 = vsub.f32 %v228, %v352
        %v394 = vsub.f32 %v229, %v353
        %v395 = vsub.f32 %v230, %v354
        %v396 = vsub.f32 %v231, %v355
        %v397 = vsub.f32 %v232, %v356
        %v398 = vsub.f32 %v233, %v357
        %v399 = vsub.f32 %v234, %v358
        %v400 = vsub.f32 %v235, %v359
        %v401 = vsub.f32 %v236, %v360
        %v402 = vsub.f32 %v237, %v361
        %v403 = vsub.f32 %v238, %v362
        %v404 = vsub.f32 %v239, %v363
        %v405 = vsub.f32 %v240, %v364
        %v406 = vsub.f32 %v241, %v365
        %v407 = vsub.f32 %v242, %v366
        %v408 = vsub.f32 %v243, %v367
        %v409 = vsub.f32 %v244, %v368
        %v410 = vsub.f32 %v245, %v369
        %v411 = vsub.f32 %v246, %v370
        %v412 = vsub.f32 %v247, %v371
        %v413 = vsub.f32 %v248, %v372
        %v414 = vsub.f32 %v249, %v373
        %v415 = vsub.f32 %v250, %v374
        %v416 = vsub.f32 %v251, %v375
        %v417 = vsub.f32 %v252, %v376
        %v418 = vsub.f32 %v253, %v377
        %v419 = vsub.f32 %v254, %v378
        %v420 = vsub.f32 %v255, %v379
        %v421 = vsub.f32 %v256, %v380
        %v422 = vsub.f32 %v257, %v381
        %v423 = vsub.f32 %v258, %v382
        %v424 = vsub.f32 %v259, %v383
        %v425 = vsub.f32 %v260, %v384
        %v426 = vrcp.pop 18.0
        %v427 = vmul.f32 %v385, %v426
        %v428 = vmul.f32 %v386, %v426
        %v429 = vmul.f32 %v387, %v426
        %v430 = vmul.f32 %v388, %v426
        %v431 = vmul.f32 %v389, %v426
        %v432 = vmul.f32 %v390, %v426
        %v433 = vmul.f32 %v391, %v426
        %v434 = vmul.f32 %v392, %v426
        %v435 = vmul.f32 %v393, %v426
        %v436 = vmul.f32 %v394, %v426
        %v437 = vmul.f32 %v395, %v426
        %v438 = vmul.f32 %v396, %v426
        %v439 = vmul.f32 %v397, %v426
        %v440 = vmul.f32 %v398, %v426
        %v441 = vmul.f32 %v399, %v426
        %v442 = vmul.f32 %v400, %v426
        %v443 = vmul.f32 %v401, %v426
        %v444 = vmul.f32 %v402, %v426
        %v445 = vmul.f32 %v403, %v426
        %v446 = vmul.f32 %v404, %v426
        %v447 = vmul.f32 %v405, %v426
        %v448 = vmul.f32 %v406, %v426
        %v449 = vmul.f32 %v407, %v426
        %v450 = vmul.f32 %v408, %v426
        %v451 = vmul.f32 %v409, %v426
        %v452 = vmul.f32 %v410, %v426
        %v453 = vmul.f32 %v411, %v426
        %v454 = vmul.f32 %v412, %v426
        %v455 = vmul.f32 %v413, %v426
        %v456 = vmul.f32 %v414, %v426
        %v457 = vmul.f32 %v415, %v426
        %v458 = vmul.f32 %v416, %v426
        %v459 = vmul.f32 %v417, %v426
        %v460 = vmul.f32 %v418, %v426
        %v461 = vmul.f32 %v419, %v426
        %v462 = vmul.f32 %v420, %v426
        %v463 = vmul.f32 %v421, %v426
        %v464 = vmul.f32 %v422, %v426
        %v465 = vmul.f32 %v423, %v426
        %v466 = vmul.f32 %v424, %v426
        %v467 = vmul.f32 %v425, %v426
        %v468 = vfloor.f32 %v427
        %v469 = vfloor.f32 %v428
        %v470 = vfloor.f32 %v429
        %v471 = vfloor.f32 %v430
        %v472 = vfloor.f32 %v431
        %v473 = vfloor.f32 %v432
        %v474 = vfloor.f32 %v433
        %v475 = vfloor.f32 %v434
        %v476 = vfloor.f32 %v435
        %v477 = vfloor.f32 %v436
        %v478 = vfloor.f32 %v437
        %v479 = vfloor.f32 %v438
        %v480 = vfloor.f32 %v439
        %v481 = vfloor.f32 %v440
        %v482 = vfloor.f32 %v441
        %v483 = vfloor.f32 %v442
        %v484 = vfloor.f32 %v443
        %v485 = vfloor.f32 %v444
        %v486 = vfloor.f32 %v445
        %v487 = vfloor.f32 %v446
        %v488 = vfloor.f32 %v447
        %v489 = vfloor.f32 %v448
        %v490 = vfloor.f32 %v449
        %v491 = vfloor.f32 %v450
        %v492 = vfloor.f32 %v451
        %v493 = vfloor.f32 %v452
        %v494 = vfloor.f32 %v453
        %v495 = vfloor.f32 %v454
        %v496 = vfloor.f32 %v455
        %v497 = vfloor.f32 %v456
        %v498 = vfloor.f32 %v457
        %v499 = vfloor.f32 %v458
        %v500 = vfloor.f32 %v459
        %v501 = vfloor.f32 %v460
        %v502 = vfloor.f32 %v461
        %v503 = vfloor.f32 %v462
        %v504 = vfloor.f32 %v463
        %v505 = vfloor.f32 %v464
        %v506 = vfloor.f32 %v465
        %v507 = vfloor.f32 %v466
        %v508 = vfloor.f32 %v467
        %v509 = vmul.f32 %v468, 18.0
        %v510 = vmul.f32 %v469, 18.0
        %v511 = vmul.f32 %v470, 18.0
        %v512 = vmul.f32 %v471, 18.0
        %v513 = vmul.f32 %v472, 18.0
        %v514 = vmul.f32 %v473, 18.0
        %v515 = vmul.f32 %v474, 18.0
        %v516 = vmul.f32 %v475, 18.0
        %v517 = vmul.f32 %v476, 18.0
        %v518 = vmul.f32 %v477, 18.0
        %v519 = vmul.f32 %v478, 18.0
        %v520 = vmul.f32 %v479, 18.0
        %v521 = vmul.f32 %v480, 18.0
        %v522 = vmul.f32 %v481, 18.0
        %v523 = vmul.f32 %v482, 18.0
        %v524 = vmul.f32 %v483, 18.0
        %v525 = vmul.f32 %v484, 18.0
        %v526 = vmul.f32 %v485, 18.0
        %v527 = vmul.f32 %v486, 18.0
        %v528 = vmul.f32 %v487, 18.0
        %v529 = vmul.f32 %v488, 18.0
        %v530 = vmul.f32 %v489, 18.0
        %v531 = vmul.f32 %v490, 18.0
        %v532 = vmul.f32 %v491, 18.0
        %v533 = vmul.f32 %v492, 18.0
        %v534 = vmul.f32 %v493, 18.0
        %v535 = vmul.f32 %v494, 18.0
        %v536 = vmul.f32 %v495, 18.0
        %v537 = vmul.f32 %v496, 18.0
        %v538 = vmul.f32 %v497, 18.0
        %v539 = vmul.f32 %v498, 18.0
        %v540 = vmul.f32 %v499, 18.0
        %v541 = vmul.f32 %v500, 18.0
        %v542 = vmul.f32 %v501, 18.0
        %v543 = vmul.f32 %v502, 18.0
        %v544 = vmul.f32 %v503, 18.0
        %v545 = vmul.f32 %v504, 18.0
        %v546 = vmul.f32 %v505, 18.0
        %v547 = vmul.f32 %v506, 18.0
        %v548 = vmul.f32 %v507, 18.0
        %v549 = vmul.f32 %v508, 18.0
        %v550 = vsub.f32 %v385, %v509
        %v551 = vsub.f32 %v386, %v510
        %v552 = vsub.f32 %v387, %v511
        %v553 = vsub.f32 %v388, %v512
        %v554 = vsub.f32 %v389, %v513
        %v555 = vsub.f32 %v390, %v514
        %v556 = vsub.f32 %v391, %v515
        %v557 = vsub.f32 %v392, %v516
        %v558 = vsub.f32 %v393, %v517
        %v559 = vsub.f32 %v394, %v518
        %v560 = vsub.f32 %v395, %v519
        %v561 = vsub.f32 %v396, %v520
        %v562 = vsub.f32 %v397, %v521
        %v563 = vsub.f32 %v398, %v522
        %v564 = vsub.f32 %v399, %v523
        %v565 = vsub.f32 %v400, %v524
        %v566 = vsub.f32 %v401, %v525
        %v567 = vsub.f32 %v402, %v526
        %v568 = vsub.f32 %v403, %v527
        %v569 = vsub.f32 %v404, %v528
        %v570 = vsub.f32 %v405, %v529
        %v571 = vsub.f32 %v406, %v530
        %v572 = vsub.f32 %v407, %v531
        %v573 = vsub.f32 %v408, %v532
        %v574 = vsub.f32 %v409, %v533
        %v575 = vsub.f32 %v410, %v534
        %v576 = vsub.f32 %v411, %v535
        %v577 = vsub.f32 %v412, %v536
        %v578 = vsub.f32 %v413, %v537
        %v579 = vsub.f32 %v414, %v538
        %v580 = vsub.f32 %v415, %v539
        %v581 = vsub.f32 %v416, %v540
        %v582 = vsub.f32 %v417, %v541
        %v583 = vsub.f32 %v418, %v542
        %v584 = vsub.f32 %v419, %v543
        %v585 = vsub.f32 %v420, %v544
        %v586 = vsub.f32 %v421, %v545
        %v587 = vsub.f32 %v422, %v546
        %v588 = vsub.f32 %v423, %v547
        %v589 = vsub.f32 %v424, %v548
        %v590 = vsub.f32 %v425, %v549
        %vm591 = vcmp.ge.f32.partialorder %v468, 1.0
        %vm592 = vcmp.ge.f32.partialorder %v469, 1.0
        %vm593 = vcmp.ge.f32.partialorder %v470, 1.0
        %vm594 = vcmp.ge.f32.partialorder %v471, 1.0
        %vm595 = vcmp.ge.f32.partialorder %v472, 1.0
        %vm596 = vcmp.ge.f32.partialorder %v473, 1.0
        %vm597 = vcmp.ge.f32.partialorder %v474, 1.0
        %vm598 = vcmp.ge.f32.partialorder %v475, 1.0
        %vm599 = vcmp.ge.f32.partialorder %v476, 1.0
        %vm600 = vcmp.ge.f32.partialorder %v477, 1.0
        %vm601 = vcmp.ge.f32.partialorder %v478, 1.0
        %vm602 = vcmp.ge.f32.partialorder %v479, 1.0
        %vm603 = vcmp.ge.f32.partialorder %v480, 1.0
        %vm604 = vcmp.ge.f32.partialorder %v481, 1.0
        %vm605 = vcmp.ge.f32.partialorder %v482, 1.0
        %vm606 = vcmp.ge.f32.partialorder %v483, 1.0
        %vm607 = vcmp.ge.f32.partialorder %v484, 1.0
        %vm608 = vcmp.ge.f32.partialorder %v485, 1.0
        %vm609 = vcmp.ge.f32.partialorder %v486, 1.0
        %vm610 = vcmp.ge.f32.partialorder %v487, 1.0
        %vm611 = vcmp.ge.f32.partialorder %v488, 1.0
        %vm612 = vcmp.ge.f32.partialorder %v489, 1.0
        %vm613 = vcmp.ge.f32.partialorder %v490, 1.0
        %vm614 = vcmp.ge.f32.partialorder %v491, 1.0
        %vm615 = vcmp.ge.f32.partialorder %v492, 1.0
        %vm616 = vcmp.ge.f32.partialorder %v493, 1.0
        %vm617 = vcmp.ge.f32.partialorder %v494, 1.0
        %vm618 = vcmp.ge.f32.partialorder %v495, 1.0
        %vm619 = vcmp.ge.f32.partialorder %v496, 1.0
        %vm620 = vcmp.ge.f32.partialorder %v497, 1.0
        %vm621 = vcmp.ge.f32.partialorder %v498, 1.0
        %vm622 = vcmp.ge.f32.partialorder %v499, 1.0
        %vm623 = vcmp.ge.f32.partialorder %v500, 1.0
        %vm624 = vcmp.ge.f32.partialorder %v501, 1.0
        %vm625 = vcmp.ge.f32.partialorder %v502, 1.0
        %vm626 = vcmp.ge.f32.partialorder %v503, 1.0
        %vm627 = vcmp.ge.f32.partialorder %v504, 1.0
        %vm628 = vcmp.ge.f32.partialorder %v505, 1.0
        %vm629 = vcmp.ge.f32.partialorder %v506, 1.0
        %vm630 = vcmp.ge.f32.partialorder %v507, 1.0
        %vm631 = vcmp.ge.f32.partialorder %v508, 1.0
        %vm632 = vcmp.le.f32.partialorder %v468, 16.0
        %vm633 = vcmp.le.f32.partialorder %v469, 16.0
        %vm634 = vcmp.le.f32.partialorder %v470, 16.0
        %vm635 = vcmp.le.f32.partialorder %v471, 16.0
        %vm636 = vcmp.le.f32.partialorder %v472, 16.0
        %vm637 = vcmp.le.f32.partialorder %v473, 16.0
        %vm638 = vcmp.le.f32.partialorder %v474, 16.0
        %vm639 = vcmp.le.f32.partialorder %v475, 16.0
        %vm640 = vcmp.le.f32.partialorder %v476, 16.0
        %vm641 = vcmp.le.f32.partialorder %v477, 16.0
        %vm642 = vcmp.le.f32.partialorder %v478, 16.0
        %vm643 = vcmp.le.f32.partialorder %v479, 16.0
        %vm644 = vcmp.le.f32.partialorder %v480, 16.0
        %vm645 = vcmp.le.f32.partialorder %v481, 16.0
        %vm646 = vcmp.le.f32.partialorder %v482, 16.0
        %vm647 = vcmp.le.f32.partialorder %v483, 16.0
        %vm648 = vcmp.le.f32.partialorder %v484, 16.0
        %vm649 = vcmp.le.f32.partialorder %v485, 16.0
        %vm650 = vcmp.le.f32.partialorder %v486, 16.0
        %vm651 = vcmp.le.f32.partialorder %v487, 16.0
        %vm652 = vcmp.le.f32.partialorder %v488, 16.0
        %vm653 = vcmp.le.f32.partialorder %v489, 16.0
        %vm654 = vcmp.le.f32.partialorder %v490, 16.0
        %vm655 = vcmp.le.f32.partialorder %v491, 16.0
        %vm656 = vcmp.le.f32.partialorder %v492, 16.0
        %vm657 = vcmp.le.f32.partialorder %v493, 16.0
        %vm658 = vcmp.le.f32.partialorder %v494, 16.0
        %vm659 = vcmp.le.f32.partialorder %v495, 16.0
        %vm660 = vcmp.le.f32.partialorder %v496, 16.0
        %vm661 = vcmp.le.f32.partialorder %v497, 16.0
        %vm662 = vcmp.le.f32.partialorder %v498, 16.0
        %vm663 = vcmp.le.f32.partialorder %v499, 16.0
        %vm664 = vcmp.le.f32.partialorder %v500, 16.0
        %vm665 = vcmp.le.f32.partialorder %v501, 16.0
        %vm666 = vcmp.le.f32.partialorder %v502, 16.0
        %vm667 = vcmp.le.f32.partialorder %v503, 16.0
        %vm668 = vcmp.le.f32.partialorder %v504, 16.0
        %vm669 = vcmp.le.f32.partialorder %v505, 16.0
        %vm670 = vcmp.le.f32.partialorder %v506, 16.0
        %vm671 = vcmp.le.f32.partialorder %v507, 16.0
        %vm672 = vcmp.le.f32.partialorder %v508, 16.0
        %vm673 = vmand %vm591, %vm632
        %vm674 = vmand %vm592, %vm633
        %vm675 = vmand %vm593, %vm634
        %vm676 = vmand %vm594, %vm635
        %vm677 = vmand %vm595, %vm636
        %vm678 = vmand %vm596, %vm637
        %vm679 = vmand %vm597, %vm638
        %vm680 = vmand %vm598, %vm639
        %vm681 = vmand %vm599, %vm640
        %vm682 = vmand %vm600, %vm641
        %vm683 = vmand %vm601, %vm642
        %vm684 = vmand %vm602, %vm643
        %vm685 = vmand %vm603, %vm644
        %vm686 = vmand %vm604, %vm645
        %vm687 = vmand %vm605, %vm646
        %vm688 = vmand %vm606, %vm647
        %vm689 = vmand %vm607, %vm648
        %vm690 = vmand %vm608, %vm649
        %vm691 = vmand %vm609, %vm650
        %vm692 = vmand %vm610, %vm651
        %vm693 = vmand %vm611, %vm652
        %vm694 = vmand %vm612, %vm653
        %vm695 = vmand %vm613, %vm654
        %vm696 = vmand %vm614, %vm655
        %vm697 = vmand %vm615, %vm656
        %vm698 = vmand %vm616, %vm657
        %vm699 = vmand %vm617, %vm658
        %vm700 = vmand %vm618, %vm659
        %vm701 = vmand %vm619, %vm660
        %vm702 = vmand %vm620, %vm661
        %vm703 = vmand %vm621, %vm662
        %vm704 = vmand %vm622, %vm663
        %vm705 = vmand %vm623, %vm664
        %vm706 = vmand %vm624, %vm665
        %vm707 = vmand %vm625, %vm666
        %vm708 = vmand %vm626, %vm667
        %vm709 = vmand %vm627, %vm668
        %vm710 = vmand %vm628, %vm669
        %vm711 = vmand %vm629, %vm670
        %vm712 = vmand %vm630, %vm671
        %vm713 = vmand %vm631, %vm672
        %vm714 = vcmp.ge.f32.partialorder %v550, 1.0
        %vm715 = vcmp.ge.f32.partialorder %v551, 1.0
        %vm716 = vcmp.ge.f32.partialorder %v552, 1.0
        %vm717 = vcmp.ge.f32.partialorder %v553, 1.0
        %vm718 = vcmp.ge.f32.partialorder %v554, 1.0
        %vm719 = vcmp.ge.f32.partialorder %v555, 1.0
        %vm720 = vcmp.ge.f32.partialorder %v556, 1.0
        %vm721 = vcmp.ge.f32.partialorder %v557, 1.0
        %vm722 = vcmp.ge.f32.partialorder %v558, 1.0
        %vm723 = vcmp.ge.f32.partialorder %v559, 1.0
        %vm724 = vcmp.ge.f32.partialorder %v560, 1.0
        %vm725 = vcmp.ge.f32.partialorder %v561, 1.0
        %vm726 = vcmp.ge.f32.partialorder %v562, 1.0
        %vm727 = vcmp.ge.f32.partialorder %v563, 1.0
        %vm728 = vcmp.ge.f32.partialorder %v564, 1.0
        %vm729 = vcmp.ge.f32.partialorder %v565, 1.0
        %vm730 = vcmp.ge.f32.partialorder %v566, 1.0
        %vm731 = vcmp.ge.f32.partialorder %v567, 1.0
        %vm732 = vcmp.ge.f32.partialorder %v568, 1.0
        %vm733 = vcmp.ge.f32.partialorder %v569, 1.0
        %vm734 = vcmp.ge.f32.partialorder %v570, 1.0
        %vm735 = vcmp.ge.f32.partialorder %v571, 1.0
        %vm736 = vcmp.ge.f32.partialorder %v572, 1.0
        %vm737 = vcmp.ge.f32.partialorder %v573, 1.0
        %vm738 = vcmp.ge.f32.partialorder %v574, 1.0
        %vm739 = vcmp.ge.f32.partialorder %v575, 1.0
        %vm740 = vcmp.ge.f32.partialorder %v576, 1.0
        %vm741 = vcmp.ge.f32.partialorder %v577, 1.0
        %vm742 = vcmp.ge.f32.partialorder %v578, 1.0
        %vm743 = vcmp.ge.f32.partialorder %v579, 1.0
        %vm744 = vcmp.ge.f32.partialorder %v580, 1.0
        %vm745 = vcmp.ge.f32.partialorder %v581, 1.0
        %vm746 = vcmp.ge.f32.partialorder %v582, 1.0
        %vm747 = vcmp.ge.f32.partialorder %v583, 1.0
        %vm748 = vcmp.ge.f32.partialorder %v584, 1.0
        %vm749 = vcmp.ge.f32.partialorder %v585, 1.0
        %vm750 = vcmp.ge.f32.partialorder %v586, 1.0
        %vm751 = vcmp.ge.f32.partialorder %v587, 1.0
        %vm752 = vcmp.ge.f32.partialorder %v588, 1.0
        %vm753 = vcmp.ge.f32.partialorder %v589, 1.0
        %vm754 = vcmp.ge.f32.partialorder %v590, 1.0
        %vm755 = vmand %vm673, %vm714
        %vm756 = vmand %vm674, %vm715
        %vm757 = vmand %vm675, %vm716
        %vm758 = vmand %vm676, %vm717
        %vm759 = vmand %vm677, %vm718
        %vm760 = vmand %vm678, %vm719
        %vm761 = vmand %vm679, %vm720
        %vm762 = vmand %vm680, %vm721
        %vm763 = vmand %vm681, %vm722
        %vm764 = vmand %vm682, %vm723
        %vm765 = vmand %vm683, %vm724
        %vm766 = vmand %vm684, %vm725
        %vm767 = vmand %vm685, %vm726
        %vm768 = vmand %vm686, %vm727
        %vm769 = vmand %vm687, %vm728
        %vm770 = vmand %vm688, %vm729
        %vm771 = vmand %vm689, %vm730
        %vm772 = vmand %vm690, %vm731
        %vm773 = vmand %vm691, %vm732
        %vm774 = vmand %vm692, %vm733
        %vm775 = vmand %vm693, %vm734
        %vm776 = vmand %vm694, %vm735
        %vm777 = vmand %vm695, %vm736
        %vm778 = vmand %vm696, %vm737
        %vm779 = vmand %vm697, %vm738
        %vm780 = vmand %vm698, %vm739
        %vm781 = vmand %vm699, %vm740
        %vm782 = vmand %vm700, %vm741
        %vm783 = vmand %vm701, %vm742
        %vm784 = vmand %vm702, %vm743
        %vm785 = vmand %vm703, %vm744
        %vm786 = vmand %vm704, %vm745
        %vm787 = vmand %vm705, %vm746
        %vm788 = vmand %vm706, %vm747
        %vm789 = vmand %vm707, %vm748
        %vm790 = vmand %vm708, %vm749
        %vm791 = vmand %vm709, %vm750
        %vm792 = vmand %vm710, %vm751
        %vm793 = vmand %vm711, %vm752
        %vm794 = vmand %vm712, %vm753
        %vm795 = vmand %vm713, %vm754
        %vm796 = vcmp.le.f32.partialorder %v550, 16.0
        %vm797 = vcmp.le.f32.partialorder %v551, 16.0
        %vm798 = vcmp.le.f32.partialorder %v552, 16.0
        %vm799 = vcmp.le.f32.partialorder %v553, 16.0
        %vm800 = vcmp.le.f32.partialorder %v554, 16.0
        %vm801 = vcmp.le.f32.partialorder %v555, 16.0
        %vm802 = vcmp.le.f32.partialorder %v556, 16.0
        %vm803 = vcmp.le.f32.partialorder %v557, 16.0
        %vm804 = vcmp.le.f32.partialorder %v558, 16.0
        %vm805 = vcmp.le.f32.partialorder %v559, 16.0
        %vm806 = vcmp.le.f32.partialorder %v560, 16.0
        %vm807 = vcmp.le.f32.partialorder %v561, 16.0
        %vm808 = vcmp.le.f32.partialorder %v562, 16.0
        %vm809 = vcmp.le.f32.partialorder %v563, 16.0
        %vm810 = vcmp.le.f32.partialorder %v564, 16.0
        %vm811 = vcmp.le.f32.partialorder %v565, 16.0
        %vm812 = vcmp.le.f32.partialorder %v566, 16.0
        %vm813 = vcmp.le.f32.partialorder %v567, 16.0
        %vm814 = vcmp.le.f32.partialorder %v568, 16.0
        %vm815 = vcmp.le.f32.partialorder %v569, 16.0
        %vm816 = vcmp.le.f32.partialorder %v570, 16.0
        %vm817 = vcmp.le.f32.partialorder %v571, 16.0
        %vm818 = vcmp.le.f32.partialorder %v572, 16.0
        %vm819 = vcmp.le.f32.partialorder %v573, 16.0
        %vm820 = vcmp.le.f32.partialorder %v574, 16.0
        %vm821 = vcmp.le.f32.partialorder %v575, 16.0
        %vm822 = vcmp.le.f32.partialorder %v576, 16.0
        %vm823 = vcmp.le.f32.partialorder %v577, 16.0
        %vm824 = vcmp.le.f32.partialorder %v578, 16.0
        %vm825 = vcmp.le.f32.partialorder %v579, 16.0
        %vm826 = vcmp.le.f32.partialorder %v580, 16.0
        %vm827 = vcmp.le.f32.partialorder %v581, 16.0
        %vm828 = vcmp.le.f32.partialorder %v582, 16.0
        %vm829 = vcmp.le.f32.partialorder %v583, 16.0
        %vm830 = vcmp.le.f32.partialorder %v584, 16.0
        %vm831 = vcmp.le.f32.partialorder %v585, 16.0
        %vm832 = vcmp.le.f32.partialorder %v586, 16.0
        %vm833 = vcmp.le.f32.partialorder %v587, 16.0
        %vm834 = vcmp.le.f32.partialorder %v588, 16.0
        %vm835 = vcmp.le.f32.partialorder %v589, 16.0
        %vm836 = vcmp.le.f32.partialorder %v590, 16.0
        %vm837 = vmand %vm755, %vm796
        %vm838 = vmand %vm756, %vm797
        %vm839 = vmand %vm757, %vm798
        %vm840 = vmand %vm758, %vm799
        %vm841 = vmand %vm759, %vm800
        %vm842 = vmand %vm760, %vm801
        %vm843 = vmand %vm761, %vm802
        %vm844 = vmand %vm762, %vm803
        %vm845 = vmand %vm763, %vm804
        %vm846 = vmand %vm764, %vm805
        %vm847 = vmand %vm765, %vm806
        %vm848 = vmand %vm766, %vm807
        %vm849 = vmand %vm767, %vm808
        %vm850 = vmand %vm768, %vm809
        %vm851 = vmand %vm769, %vm810
        %vm852 = vmand %vm770, %vm811
        %vm853 = vmand %vm771, %vm812
        %vm854 = vmand %vm772, %vm813
        %vm855 = vmand %vm773, %vm814
        %vm856 = vmand %vm774, %vm815
        %vm857 = vmand %vm775, %vm816
        %vm858 = vmand %vm776, %vm817
        %vm859 = vmand %vm777, %vm818
        %vm860 = vmand %vm778, %vm819
        %vm861 = vmand %vm779, %vm820
        %vm862 = vmand %vm780, %vm821
        %vm863 = vmand %vm781, %vm822
        %vm864 = vmand %vm782, %vm823
        %vm865 = vmand %vm783, %vm824
        %vm866 = vmand %vm784, %vm825
        %vm867 = vmand %vm785, %vm826
        %vm868 = vmand %vm786, %vm827
        %vm869 = vmand %vm787, %vm828
        %vm870 = vmand %vm788, %vm829
        %vm871 = vmand %vm789, %vm830
        %vm872 = vmand %vm790, %vm831
        %vm873 = vmand %vm791, %vm832
        %vm874 = vmand %vm792, %vm833
        %vm875 = vmand %vm793, %vm834
        %vm876 = vmand %vm794, %vm835
        %vm877 = vmand %vm795, %vm836
        %s878 = scvt.s32.f32 %s20
        %v879 = vstv %s878
        %v880 = vadd.f32 %v303, %v879
        %v881 = vadd.f32 %v304, %v879
        %v882 = vadd.f32 %v305, %v879
        %v883 = vadd.f32 %v306, %v879
        %v884 = vadd.f32 %v307, %v879
        %v885 = vadd.f32 %v308, %v879
        %v886 = vadd.f32 %v309, %v879
        %v887 = vadd.f32 %v310, %v879
        %v888 = vadd.f32 %v311, %v879
        %v889 = vadd.f32 %v312, %v879
        %v890 = vadd.f32 %v313, %v879
        %v891 = vadd.f32 %v314, %v879
        %v892 = vadd.f32 %v315, %v879
        %v893 = vadd.f32 %v316, %v879
        %v894 = vadd.f32 %v317, %v879
        %v895 = vadd.f32 %v318, %v879
        %v896 = vadd.f32 %v319, %v879
        %v897 = vadd.f32 %v320, %v879
        %v898 = vadd.f32 %v321, %v879
        %v899 = vadd.f32 %v322, %v879
        %v900 = vadd.f32 %v323, %v879
        %v901 = vadd.f32 %v324, %v879
        %v902 = vadd.f32 %v325, %v879
        %v903 = vadd.f32 %v326, %v879
        %v904 = vadd.f32 %v327, %v879
        %v905 = vadd.f32 %v328, %v879
        %v906 = vadd.f32 %v329, %v879
        %v907 = vadd.f32 %v330, %v879
        %v908 = vadd.f32 %v331, %v879
        %v909 = vadd.f32 %v332, %v879
        %v910 = vadd.f32 %v333, %v879
        %v911 = vadd.f32 %v334, %v879
        %v912 = vadd.f32 %v335, %v879
        %v913 = vadd.f32 %v336, %v879
        %v914 = vadd.f32 %v337, %v879
        %v915 = vadd.f32 %v338, %v879
        %v916 = vadd.f32 %v339, %v879
        %v917 = vadd.f32 %v340, %v879
        %v918 = vadd.f32 %v341, %v879
        %v919 = vadd.f32 %v342, %v879
        %v920 = vadd.f32 %v343, %v879
        %vm921 = vcmp.lt.f32.partialorder %v880, 2.0
        %vm922 = vcmp.lt.f32.partialorder %v881, 2.0
        %vm923 = vcmp.lt.f32.partialorder %v882, 2.0
        %vm924 = vcmp.lt.f32.partialorder %v883, 2.0
        %vm925 = vcmp.lt.f32.partialorder %v884, 2.0
        %vm926 = vcmp.lt.f32.partialorder %v885, 2.0
        %vm927 = vcmp.lt.f32.partialorder %v886, 2.0
        %vm928 = vcmp.lt.f32.partialorder %v887, 2.0
        %vm929 = vcmp.lt.f32.partialorder %v888, 2.0
        %vm930 = vcmp.lt.f32.partialorder %v889, 2.0
        %vm931 = vcmp.lt.f32.partialorder %v890, 2.0
        %vm932 = vcmp.lt.f32.partialorder %v891, 2.0
        %vm933 = vcmp.lt.f32.partialorder %v892, 2.0
        %vm934 = vcmp.lt.f32.partialorder %v893, 2.0
        %vm935 = vcmp.lt.f32.partialorder %v894, 2.0
        %vm936 = vcmp.lt.f32.partialorder %v895, 2.0
        %vm937 = vcmp.lt.f32.partialorder %v896, 2.0
        %vm938 = vcmp.lt.f32.partialorder %v897, 2.0
        %vm939 = vcmp.lt.f32.partialorder %v898, 2.0
        %vm940 = vcmp.lt.f32.partialorder %v899, 2.0
        %vm941 = vcmp.lt.f32.partialorder %v900, 2.0
        %vm942 = vcmp.lt.f32.partialorder %v901, 2.0
        %vm943 = vcmp.lt.f32.partialorder %v902, 2.0
        %vm944 = vcmp.lt.f32.partialorder %v903, 2.0
        %vm945 = vcmp.lt.f32.partialorder %v904, 2.0
        %vm946 = vcmp.lt.f32.partialorder %v905, 2.0
        %vm947 = vcmp.lt.f32.partialorder %v906, 2.0
        %vm948 = vcmp.lt.f32.partialorder %v907, 2.0
        %vm949 = vcmp.lt.f32.partialorder %v908, 2.0
        %vm950 = vcmp.lt.f32.partialorder %v909, 2.0
        %vm951 = vcmp.lt.f32.partialorder %v910, 2.0
        %vm952 = vcmp.lt.f32.partialorder %v911, 2.0
        %vm953 = vcmp.lt.f32.partialorder %v912, 2.0
        %vm954 = vcmp.lt.f32.partialorder %v913, 2.0
        %vm955 = vcmp.lt.f32.partialorder %v914, 2.0
        %vm956 = vcmp.lt.f32.partialorder %v915, 2.0
        %vm957 = vcmp.lt.f32.partialorder %v916, 2.0
        %vm958 = vcmp.lt.f32.partialorder %v917, 2.0
        %vm959 = vcmp.lt.f32.partialorder %v918, 2.0
        %vm960 = vcmp.lt.f32.partialorder %v919, 2.0
        %vm961 = vcmp.lt.f32.partialorder %v920, 2.0
        %vm962 = vmand %vm837, %vm921
        %vm963 = vmand %vm838, %vm922
        %vm964 = vmand %vm839, %vm923
        %vm965 = vmand %vm840, %vm924
        %vm966 = vmand %vm841, %vm925
        %vm967 = vmand %vm842, %vm926
        %vm968 = vmand %vm843, %vm927
        %vm969 = vmand %vm844, %vm928
        %vm970 = vmand %vm845, %vm929
        %vm971 = vmand %vm846, %vm930
        %vm972 = vmand %vm847, %vm931
        %vm973 = vmand %vm848, %vm932
        %vm974 = vmand %vm849, %vm933
        %vm975 = vmand %vm850, %vm934
        %vm976 = vmand %vm851, %vm935
        %vm977 = vmand %vm852, %vm936
        %vm978 = vmand %vm853, %vm937
        %vm979 = vmand %vm854, %vm938
        %vm980 = vmand %vm855, %vm939
        %vm981 = vmand %vm856, %vm940
        %vm982 = vmand %vm857, %vm941
        %vm983 = vmand %vm858, %vm942
        %vm984 = vmand %vm859, %vm943
        %vm985 = vmand %vm860, %vm944
        %vm986 = vmand %vm861, %vm945
        %vm987 = vmand %vm862, %vm946
        %vm988 = vmand %vm863, %vm947
        %vm989 = vmand %vm864, %vm948
        %vm990 = vmand %vm865, %vm949
        %vm991 = vmand %vm866, %vm950
        %vm992 = vmand %vm867, %vm951
        %vm993 = vmand %vm868, %vm952
        %vm994 = vmand %vm869, %vm953
        %vm995 = vmand %vm870, %vm954
        %vm996 = vmand %vm871, %vm955
        %vm997 = vmand %vm872, %vm956
        %vm998 = vmand %vm873, %vm957
        %vm999 = vmand %vm874, %vm958
        %vm1000 = vmand %vm875, %vm959
        %vm1001 = vmand %vm876, %vm960
        %vm1002 = vmand %vm877, %vm961
        %v1003 = vsel %vm962, 1, 0
        %v1004 = vsel %vm963, 1, 0
        %v1005 = vsel %vm964, 1, 0
        %v1006 = vsel %vm965, 1, 0
        %v1007 = vsel %vm966, 1, 0
        %v1008 = vsel %vm967, 1, 0
        %v1009 = vsel %vm968, 1, 0
        %v1010 = vsel %vm969, 1, 0
        %v1011 = vsel %vm970, 1, 0
        %v1012 = vsel %vm971, 1, 0
        %v1013 = vsel %vm972, 1, 0
        %v1014 = vsel %vm973, 1, 0
        %v1015 = vsel %vm974, 1, 0
        %v1016 = vsel %vm975, 1, 0
        %v1017 = vsel %vm976, 1, 0
        %v1018 = vsel %vm977, 1, 0
        %v1019 = vsel %vm978, 1, 0
        %v1020 = vsel %vm979, 1, 0
        %v1021 = vsel %vm980, 1, 0
        %v1022 = vsel %vm981, 1, 0
        %v1023 = vsel %vm982, 1, 0
        %v1024 = vsel %vm983, 1, 0
        %v1025 = vsel %vm984, 1, 0
        %v1026 = vsel %vm985, 1, 0
        %v1027 = vsel %vm986, 1, 0
        %v1028 = vsel %vm987, 1, 0
        %v1029 = vsel %vm988, 1, 0
        %v1030 = vsel %vm989, 1, 0
        %v1031 = vsel %vm990, 1, 0
        %v1032 = vsel %vm991, 1, 0
        %v1033 = vsel %vm992, 1, 0
        %v1034 = vsel %vm993, 1, 0
        %v1035 = vsel %vm994, 1, 0
        %v1036 = vsel %vm995, 1, 0
        %v1037 = vsel %vm996, 1, 0
        %v1038 = vsel %vm997, 1, 0
        %v1039 = vsel %vm998, 1, 0
        %v1040 = vsel %vm999, 1, 0
        %v1041 = vsel %vm1000, 1, 0
        %v1042 = vsel %vm1001, 1, 0
        %v1043 = vsel %vm1002, 1, 0
        %v1044 = vcvt.s32.f32 %v1003
        %v1045 = vcvt.s32.f32 %v1004
        %v1046 = vcvt.s32.f32 %v1005
        %v1047 = vcvt.s32.f32 %v1006
        %v1048 = vcvt.s32.f32 %v1007
        %v1049 = vcvt.s32.f32 %v1008
        %v1050 = vcvt.s32.f32 %v1009
        %v1051 = vcvt.s32.f32 %v1010
        %v1052 = vcvt.s32.f32 %v1011
        %v1053 = vcvt.s32.f32 %v1012
        %v1054 = vcvt.s32.f32 %v1013
        %v1055 = vcvt.s32.f32 %v1014
        %v1056 = vcvt.s32.f32 %v1015
        %v1057 = vcvt.s32.f32 %v1016
        %v1058 = vcvt.s32.f32 %v1017
        %v1059 = vcvt.s32.f32 %v1018
        %v1060 = vcvt.s32.f32 %v1019
        %v1061 = vcvt.s32.f32 %v1020
        %v1062 = vcvt.s32.f32 %v1021
        %v1063 = vcvt.s32.f32 %v1022
        %v1064 = vcvt.s32.f32 %v1023
        %v1065 = vcvt.s32.f32 %v1024
        %v1066 = vcvt.s32.f32 %v1025
        %v1067 = vcvt.s32.f32 %v1026
        %v1068 = vcvt.s32.f32 %v1027
        %v1069 = vcvt.s32.f32 %v1028
        %v1070 = vcvt.s32.f32 %v1029
        %v1071 = vcvt.s32.f32 %v1030
        %v1072 = vcvt.s32.f32 %v1031
        %v1073 = vcvt.s32.f32 %v1032
        %v1074 = vcvt.s32.f32 %v1033
        %v1075 = vcvt.s32.f32 %v1034
        %v1076 = vcvt.s32.f32 %v1035
        %v1077 = vcvt.s32.f32 %v1036
        %v1078 = vcvt.s32.f32 %v1037
        %v1079 = vcvt.s32.f32 %v1038
        %v1080 = vcvt.s32.f32 %v1039
        %v1081 = vcvt.s32.f32 %v1040
        %v1082 = vcvt.s32.f32 %v1041
        %v1083 = vcvt.s32.f32 %v1042
        %v1084 = vcvt.s32.f32 %v1043
        %v1085 = vld [vmem:[%s152] sm:$0xff]
        %v1086 = vld [vmem:[%s152 + $0x8] sm:$0xff]
        %v1087 = vld [vmem:[%s152 + $0x10] sm:$0xff]
        %v1088 = vld [vmem:[%s152 + $0x18] sm:$0xff]
        %v1089 = vld [vmem:[%s152 + $0x20] sm:$0xff]
        %v1090 = vld [vmem:[%s152 + $0x28] sm:$0xff]
        %v1091 = vld [vmem:[%s152 + $0x30] sm:$0xff]
        %v1092 = vld [vmem:[%s152 + $0x38] sm:$0xff]
        %v1093 = vld [vmem:[%s152 + $0x40] sm:$0xff]
        %v1094 = vld [vmem:[%s152 + $0x48] sm:$0xff]
        %v1095 = vld [vmem:[%s152 + $0x50] sm:$0xff]
        %v1096 = vld [vmem:[%s152 + $0x58] sm:$0xff]
        %v1097 = vld [vmem:[%s152 + $0x60] sm:$0xff]
        %v1098 = vld [vmem:[%s152 + $0x68] sm:$0xff]
        %v1099 = vld [vmem:[%s152 + $0x70] sm:$0xff]
        %v1100 = vld [vmem:[%s152 + $0x78] sm:$0xff]
        %v1101 = vld [vmem:[%s152 + $0x80] sm:$0xff]
        %v1102 = vld [vmem:[%s152 + $0x88] sm:$0xff]
        %v1103 = vld [vmem:[%s152 + $0x90] sm:$0xff]
        %v1104 = vld [vmem:[%s152 + $0x98] sm:$0xff]
        %v1105 = vld [vmem:[%s152 + $0xa0] sm:$0xff]
        %v1106 = vld [vmem:[%s152 + $0xa8] sm:$0xff]
        %v1107 = vld [vmem:[%s152 + $0xb0] sm:$0xff]
        %v1108 = vld [vmem:[%s152 + $0xb8] sm:$0xff]
        %v1109 = vld [vmem:[%s152 + $0xc0] sm:$0xff]
        %v1110 = vld [vmem:[%s152 + $0xc8] sm:$0xff]
        %v1111 = vld [vmem:[%s152 + $0xd0] sm:$0xff]
        %v1112 = vld [vmem:[%s152 + $0xd8] sm:$0xff]
        %v1113 = vld [vmem:[%s152 + $0xe0] sm:$0xff]
        %v1114 = vld [vmem:[%s152 + $0xe8] sm:$0xff]
        %v1115 = vld [vmem:[%s152 + $0xf0] sm:$0xff]
        %v1116 = vld [vmem:[%s152 + $0xf8] sm:$0xff]
        %v1117 = vld [vmem:[%s152 + $0x100] sm:$0xff]
        %v1118 = vld [vmem:[%s152 + $0x108] sm:$0xff]
        %v1119 = vld [vmem:[%s152 + $0x110] sm:$0xff]
        %v1120 = vld [vmem:[%s152 + $0x118] sm:$0xff]
        %v1121 = vld [vmem:[%s152 + $0x120] sm:$0xff]
        %v1122 = vld [vmem:[%s152 + $0x128] sm:$0xff]
        %v1123 = vld [vmem:[%s152 + $0x130] sm:$0xff]
        %v1124 = vld [vmem:[%s152 + $0x138] sm:$0xff]
        %v1125 = vld [vmem:[%s152 + $0x140] sm:$0xff]
        %vm1129 = vcmask 1042432
        %v1130 = vrot.slane %v1123, 5
        %v1131 = vrot.slane %v1124, 5
        %v1132 = vsel %vm1129, %v1130, %v1131
        %v1133 = vrot.slane %v1125, 5
        %v1134 = vsel %vm1129, %v1131, %v1133
        %v1176 = vrot.slane %v1085, 5
        %v1177 = vrot.slane %v1086, 5
        %v1178 = vsel %vm1129, %v1176, %v1177
        %v1179 = vrot.slane %v1087, 5
        %v1180 = vsel %vm1129, %v1177, %v1179
        %v1181 = vrot.slane %v1088, 5
        %v1182 = vsel %vm1129, %v1179, %v1181
        %v1183 = vrot.slane %v1089, 5
        %v1184 = vsel %vm1129, %v1181, %v1183
        %v1185 = vrot.slane %v1090, 5
        %v1186 = vsel %vm1129, %v1183, %v1185
        %v1187 = vrot.slane %v1091, 5
        %v1188 = vsel %vm1129, %v1185, %v1187
        %v1189 = vrot.slane %v1092, 5
        %v1190 = vsel %vm1129, %v1187, %v1189
        %v1191 = vrot.slane %v1093, 5
        %v1192 = vsel %vm1129, %v1189, %v1191
        %v1193 = vrot.slane %v1094, 5
        %v1194 = vsel %vm1129, %v1191, %v1193
        %v1195 = vrot.slane %v1095, 5
        %v1196 = vsel %vm1129, %v1193, %v1195
        %v1197 = vrot.slane %v1096, 5
        %v1198 = vsel %vm1129, %v1195, %v1197
        %v1199 = vrot.slane %v1097, 5
        %v1200 = vsel %vm1129, %v1197, %v1199
        %v1201 = vrot.slane %v1098, 5
        %v1202 = vsel %vm1129, %v1199, %v1201
        %v1203 = vrot.slane %v1099, 5
        %v1204 = vsel %vm1129, %v1201, %v1203
        %v1205 = vrot.slane %v1100, 5
        %v1206 = vsel %vm1129, %v1203, %v1205
        %v1207 = vrot.slane %v1101, 5
        %v1208 = vsel %vm1129, %v1205, %v1207
        %v1209 = vrot.slane %v1102, 5
        %v1210 = vsel %vm1129, %v1207, %v1209
        %v1211 = vrot.slane %v1103, 5
        %v1212 = vsel %vm1129, %v1209, %v1211
        %v1213 = vrot.slane %v1104, 5
        %v1214 = vsel %vm1129, %v1211, %v1213
        %v1215 = vrot.slane %v1105, 5
        %v1216 = vsel %vm1129, %v1213, %v1215
        %v1217 = vrot.slane %v1106, 5
        %v1218 = vsel %vm1129, %v1215, %v1217
        %v1219 = vrot.slane %v1107, 5
        %v1220 = vsel %vm1129, %v1217, %v1219
        %v1221 = vrot.slane %v1108, 5
        %v1222 = vsel %vm1129, %v1219, %v1221
        %v1223 = vrot.slane %v1109, 5
        %v1224 = vsel %vm1129, %v1221, %v1223
        %v1225 = vrot.slane %v1110, 5
        %v1226 = vsel %vm1129, %v1223, %v1225
        %v1227 = vrot.slane %v1111, 5
        %v1228 = vsel %vm1129, %v1225, %v1227
        %v1229 = vrot.slane %v1112, 5
        %v1230 = vsel %vm1129, %v1227, %v1229
        %v1231 = vrot.slane %v1113, 5
        %v1232 = vsel %vm1129, %v1229, %v1231
        %v1233 = vrot.slane %v1114, 5
        %v1234 = vsel %vm1129, %v1231, %v1233
        %v1235 = vrot.slane %v1115, 5
        %v1236 = vsel %vm1129, %v1233, %v1235
        %v1237 = vrot.slane %v1116, 5
        %v1238 = vsel %vm1129, %v1235, %v1237
        %v1239 = vrot.slane %v1117, 5
        %v1240 = vsel %vm1129, %v1237, %v1239
        %v1241 = vrot.slane %v1118, 5
        %v1242 = vsel %vm1129, %v1239, %v1241
        %v1243 = vrot.slane %v1119, 5
        %v1244 = vsel %vm1129, %v1241, %v1243
        %v1245 = vrot.slane %v1120, 5
        %v1246 = vsel %vm1129, %v1243, %v1245
        %v1247 = vrot.slane %v1121, 5
        %v1248 = vsel %vm1129, %v1245, %v1247
        %v1249 = vrot.slane %v1122, 5
        %v1250 = vsel %vm1129, %v1247, %v1249
        %v1251 = vsel %vm1129, %v1249, %v1130
        %v1291 = vsel %vm1129, %v1133, %v1176
        %v1292 = vld [vmem:[#allocation5] sm:$0xff]
        %v1293 = vld [vmem:[#allocation5 + $0x8] sm:$0xff]
        %v1294 = vld [vmem:[#allocation5 + $0x10] sm:$0xff]
        %v1295 = vld [vmem:[#allocation5 + $0x18] sm:$0xff]
        %v1296 = vld [vmem:[#allocation5 + $0x20] sm:$0xff]
        %v1297 = vld [vmem:[#allocation5 + $0x28] sm:$0xff]
        %v1298 = vld [vmem:[#allocation5 + $0x30] sm:$0xff]
        %v1299 = vld [vmem:[#allocation5 + $0x38] sm:$0xff]
        %v1300 = vld [vmem:[#allocation5 + $0x40] sm:$0xff]
        %v1301 = vld [vmem:[#allocation5 + $0x48] sm:$0xff]
        %v1302 = vld [vmem:[#allocation5 + $0x50] sm:$0xff]
        %v1303 = vld [vmem:[#allocation5 + $0x58] sm:$0xff]
        %v1304 = vld [vmem:[#allocation5 + $0x60] sm:$0xff]
        %v1305 = vld [vmem:[#allocation5 + $0x68] sm:$0xff]
        %v1306 = vld [vmem:[#allocation5 + $0x70] sm:$0xff]
        %v1307 = vld [vmem:[#allocation5 + $0x78] sm:$0xff]
        %vm1308 = vcmask 1041408
        %v1309 = vrot.slane %v1123, 6
        %v1310 = vrot.slane %v1124, 6
        %v1311 = vsel %vm1308, %v1309, %v1310
        %v1312 = vrot.slane %v1125, 6
        %v1313 = vsel %vm1308, %v1310, %v1312
        %v1317 = vrot.slane %v1085, 6
        %v1318 = vrot.slane %v1086, 6
        %v1319 = vsel %vm1308, %v1317, %v1318
        %v1320 = vrot.slane %v1087, 6
        %v1321 = vsel %vm1308, %v1318, %v1320
        %v1322 = vrot.slane %v1088, 6
        %v1323 = vsel %vm1308, %v1320, %v1322
        %v1324 = vrot.slane %v1089, 6
        %v1325 = vsel %vm1308, %v1322, %v1324
        %v1326 = vrot.slane %v1090, 6
        %v1327 = vsel %vm1308, %v1324, %v1326
        %v1328 = vrot.slane %v1091, 6
        %v1329 = vsel %vm1308, %v1326, %v1328
        %v1330 = vrot.slane %v1092, 6
        %v1331 = vsel %vm1308, %v1328, %v1330
        %v1332 = vrot.slane %v1093, 6
        %v1333 = vsel %vm1308, %v1330, %v1332
        %v1334 = vrot.slane %v1094, 6
        %v1335 = vsel %vm1308, %v1332, %v1334
        %v1336 = vrot.slane %v1095, 6
        %v1337 = vsel %vm1308, %v1334, %v1336
        %v1338 = vrot.slane %v1096, 6
        %v1339 = vsel %vm1308, %v1336, %v1338
        %v1340 = vrot.slane %v1097, 6
        %v1341 = vsel %vm1308, %v1338, %v1340
        %v1342 = vrot.slane %v1098, 6
        %v1343 = vsel %vm1308, %v1340, %v1342
        %v1344 = vrot.slane %v1099, 6
        %v1345 = vsel %vm1308, %v1342, %v1344
        %v1346 = vrot.slane %v1100, 6
        %v1347 = vsel %vm1308, %v1344, %v1346
        %v1348 = vrot.slane %v1101, 6
        %v1349 = vsel %vm1308, %v1346, %v1348
        %v1350 = vrot.slane %v1102, 6
        %v1351 = vsel %vm1308, %v1348, %v1350
        %v1352 = vrot.slane %v1103, 6
        %v1353 = vsel %vm1308, %v1350, %v1352
        %v1354 = vrot.slane %v1104, 6
        %v1355 = vsel %vm1308, %v1352, %v1354
        %v1356 = vrot.slane %v1105, 6
        %v1357 = vsel %vm1308, %v1354, %v1356
        %v1358 = vrot.slane %v1106, 6
        %v1359 = vsel %vm1308, %v1356, %v1358
        %v1360 = vrot.slane %v1107, 6
        %v1361 = vsel %vm1308, %v1358, %v1360
        %v1362 = vrot.slane %v1108, 6
        %v1363 = vsel %vm1308, %v1360, %v1362
        %v1364 = vrot.slane %v1109, 6
        %v1365 = vsel %vm1308, %v1362, %v1364
        %v1366 = vrot.slane %v1110, 6
        %v1367 = vsel %vm1308, %v1364, %v1366
        %v1368 = vrot.slane %v1111, 6
        %v1369 = vsel %vm1308, %v1366, %v1368
        %v1370 = vrot.slane %v1112, 6
        %v1371 = vsel %vm1308, %v1368, %v1370
        %v1372 = vrot.slane %v1113, 6
        %v1373 = vsel %vm1308, %v1370, %v1372
        %v1374 = vrot.slane %v1114, 6
        %v1375 = vsel %vm1308, %v1372, %v1374
        %v1376 = vrot.slane %v1115, 6
        %v1377 = vsel %vm1308, %v1374, %v1376
        %v1378 = vrot.slane %v1116, 6
        %v1379 = vsel %vm1308, %v1376, %v1378
        %v1380 = vrot.slane %v1117, 6
        %v1381 = vsel %vm1308, %v1378, %v1380
        %v1382 = vrot.slane %v1118, 6
        %v1383 = vsel %vm1308, %v1380, %v1382
        %v1384 = vrot.slane %v1119, 6
        %v1385 = vsel %vm1308, %v1382, %v1384
        %v1386 = vrot.slane %v1120, 6
        %v1387 = vsel %vm1308, %v1384, %v1386
        %v1388 = vrot.slane %v1121, 6
        %v1389 = vsel %vm1308, %v1386, %v1388
        %v1390 = vrot.slane %v1122, 6
        %v1391 = vsel %vm1308, %v1388, %v1390
        %v1392 = vsel %vm1308, %v1390, %v1309
        %v1432 = vsel %vm1308, %v1312, %v1317
        %s1433 = scalar_lea.vmem [#allocation5], 128
        %v1434 = vld [vmem:[%s1433] sm:$0xff]
        %v1435 = vld [vmem:[%s1433 + $0x8] sm:$0xff]
        %v1436 = vld [vmem:[%s1433 + $0x10] sm:$0xff]
        %v1437 = vld [vmem:[%s1433 + $0x18] sm:$0xff]
        %v1438 = vld [vmem:[%s1433 + $0x20] sm:$0xff]
        %v1439 = vld [vmem:[%s1433 + $0x28] sm:$0xff]
        %v1440 = vld [vmem:[%s1433 + $0x30] sm:$0xff]
        %v1441 = vld [vmem:[%s1433 + $0x38] sm:$0xff]
        %v1442 = vld [vmem:[%s1433 + $0x40] sm:$0xff]
        %v1443 = vld [vmem:[%s1433 + $0x48] sm:$0xff]
        %v1444 = vld [vmem:[%s1433 + $0x50] sm:$0xff]
        %v1445 = vld [vmem:[%s1433 + $0x58] sm:$0xff]
        %v1446 = vld [vmem:[%s1433 + $0x60] sm:$0xff]
        %v1447 = vld [vmem:[%s1433 + $0x68] sm:$0xff]
        %v1448 = vld [vmem:[%s1433 + $0x70] sm:$0xff]
        %v1449 = vld [vmem:[%s1433 + $0x78] sm:$0xff]
        %1450 = vmatprep.subr.mxu0 0.0
        %1451 = vmatpush1.msra.mxu0 %v1434
        %1452 = vmatprep.subr.mxu0 0.0
        %1453 = vmatpush1.msra.mxu0 %v1435
        %1454 = vmatprep.subr.mxu0 0.0
        %1455 = vmatpush1.msra.mxu0 %v1436
        %1456 = vmatprep.subr.mxu0 0.0
        %1457 = vmatpush1.msra.mxu0 %v1437
        %1458 = vmatprep.subr.mxu0 0.0
        %1459 = vmatpush1.msra.mxu0 %v1438
        %1460 = vmatprep.subr.mxu0 0.0
        %1461 = vmatpush1.msra.mxu0 %v1439
        %1462 = vmatprep.subr.mxu0 0.0
        %1463 = vmatpush1.msra.mxu0 %v1440
        %1464 = vmatprep.subr.mxu0 0.0
        %1465 = vmatpush1.msra.mxu0 %v1441
        %1466 = vmatprep.subr.mxu0 0.0
        %1467 = vmatpush1.msra.mxu0 %v1442
        %1468 = vmatprep.subr.mxu0 0.0
        %1469 = vmatpush1.msra.mxu0 %v1443
        %1470 = vmatprep.subr.mxu0 0.0
        %1471 = vmatpush1.msra.mxu0 %v1444
        %1472 = vmatprep.subr.mxu0 0.0
        %1473 = vmatpush1.msra.mxu0 %v1445
        %1474 = vmatprep.subr.mxu0 0.0
        %1475 = vmatpush1.msra.mxu0 %v1446
        %1476 = vmatprep.subr.mxu0 0.0
        %1477 = vmatpush1.msra.mxu0 %v1447
        %1478 = vmatprep.subr.mxu0 0.0
        %1479 = vmatpush1.msra.mxu0 %v1448
        %1480 = vmatprep.subr.mxu0 0.0
        %1481 = vmatpush1.msra.mxu0 %v1449
        %1482 = vmatprep.subr.mxu0 0.0
        %1483 = vmatpush1.msra.mxu0 0.0
        %1484 = vmatprep.subr.mxu0 0.0
        %1485 = vmatpush1.msra.mxu0 0.0
        %1486 = vmatprep.subr.mxu0 0.0
        %1487 = vmatpush1.msra.mxu0 0.0
        %1488 = vmatprep.subr.mxu0 0.0
        %1489 = vmatpush1.msra.mxu0 0.0
        %1490 = vmatprep.subr.mxu0 0.0
        %1491 = vmatpush1.msra.mxu0 0.0
        %1492 = vmatprep.subr.mxu0 0.0
        %1493 = vmatpush1.msra.mxu0 0.0
        %1494 = vmatprep.subr.mxu0 0.0
        %1495 = vmatpush1.msra.mxu0 0.0
        %1496 = vmatprep.subr.mxu0 0.0
        %1497 = vmatpush1.msra.mxu0 0.0
        %1498 = vmatprep.subr.mxu0 0.0
        %1499 = vmatpush1.msra.mxu0 0.0
        %1500 = vmatprep.subr.mxu0 0.0
        %1501 = vmatpush1.msra.mxu0 0.0
        %1502 = vmatprep.subr.mxu0 0.0
        %1503 = vmatpush1.msra.mxu0 0.0
        %1504 = vmatprep.subr.mxu0 0.0
        %1505 = vmatpush1.msra.mxu0 0.0
        %1506 = vmatprep.subr.mxu0 0.0
        %1507 = vmatpush1.msra.mxu0 0.0
        %1508 = vmatprep.subr.mxu0 0.0
        %1509 = vmatpush1.msra.mxu0 0.0
        %1510 = vmatprep.subr.mxu0 0.0
        %1511 = vmatpush1.msra.mxu0 0.0
        %1512 = vmatprep.subr.mxu0 0.0
        %1513 = vmatpush1.msra.mxu0 0.0
        %1514 = vmatprep.mubr.f32.mxu0 0.0
        %1515 = vmatmul.mubr.f32.gmra.mrb[0].mxu0 %v1311
        %v1516 = vpop.f32.mrb[0].mxu0
        %v1517 = vadd.f32 0.0, %v1516
        %v1518 = vpop.f32.mrb[0].mxu0
        %1519 = vmatprep.mubr.f32.mxu0 0.0
        %1520 = vmatmul.mubr.f32.gmra.mrb[0].mxu0 %v1313
        %v1521 = vpop.f32.mrb[0].mxu0
        %v1522 = vadd.f32 0.0, %v1521
        %v1523 = vpop.f32.mrb[0].mxu0
        %1524 = vmatprep.mubr.f32.mxu0 0.0
        %1525 = vmatmul.mubr.f32.gmra.mrb[0].mxu0 %v1432
        %v1526 = vpop.f32.mrb[0].mxu0
        %v1527 = vadd.f32 0.0, %v1526
        %v1528 = vpop.f32.mrb[0].mxu0
        %1529 = vmatprep.mubr.f32.mxu0 0.0
        %1530 = vmatmul.mubr.f32.gmra.mrb[0].mxu0 %v1319
        %v1531 = vpop.f32.mrb[0].mxu0
        %v1532 = vadd.f32 0.0, %v1531
        %v1533 = vpop.f32.mrb[0].mxu0
        %1534 = vmatprep.mubr.f32.mxu0 0.0
        %1535 = vmatmul.mubr.f32.gmra.mrb[0].mxu0 %v1321
        %v1536 = vpop.f32.mrb[0].mxu0
        %v1537 = vadd.f32 0.0, %v1536
        %v1538 = vpop.f32.mrb[0].mxu0
        %1539 = vmatprep.mubr.f32.mxu0 0.0
        %1540 = vmatmul.mubr.f32.gmra.mrb[0].mxu0 %v1323
        %v1541 = vpop.f32.mrb[0].mxu0
        %v1542 = vadd.f32 0.0, %v1541
        %v1543 = vpop.f32.mrb[0].mxu0
        %1544 = vmatprep.mubr.f32.mxu0 0.0
        %1545 = vmatmul.mubr.f32.gmra.mrb[0].mxu0 %v1325
        %v1546 = vpop.f32.mrb[0].mxu0
        %v1547 = vadd.f32 0.0, %v1546
        %v1548 = vpop.f32.mrb[0].mxu0
        %1549 = vmatprep.mubr.f32.mxu0 0.0
        %1550 = vmatmul.mubr.f32.gmra.mrb[0].mxu0 %v1327
        %v1551 = vpop.f32.mrb[0].mxu0
        %v1552 = vadd.f32 0.0, %v1551
        %v1553 = vpop.f32.mrb[0].mxu0
        %1554 = vmatprep.mubr.f32.mxu0 0.0
        %1555 = vmatmul.mubr.f32.gmra.mrb[0].mxu0 %v1329
        %v1556 = vpop.f32.mrb[0].mxu0
        %v1557 = vadd.f32 0.0, %v1556
        %v1558 = vpop.f32.mrb[0].mxu0
        %1559 = vmatprep.mubr.f32.mxu0 0.0
        %1560 = vmatmul.mubr.f32.gmra.mrb[0].mxu0 %v1331
        %v1561 = vpop.f32.mrb[0].mxu0
        %v1562 = vadd.f32 0.0, %v1561
        %v1563 = vpop.f32.mrb[0].mxu0
        %1564 = vmatprep.mubr.f32.mxu0 0.0
        %1565 = vmatmul.mubr.f32.gmra.mrb[0].mxu0 %v1333
        %v1566 = vpop.f32.mrb[0].mxu0
        %v1567 = vadd.f32 0.0, %v1566
        %v1568 = vpop.f32.mrb[0].mxu0
        %1569 = vmatprep.mubr.f32.mxu0 0.0
        %1570 = vmatmul.mubr.f32.gmra.mrb[0].mxu0 %v1335
        %v1571 = vpop.f32.mrb[0].mxu0
        %v1572 = vadd.f32 0.0, %v1571
        %v1573 = vpop.f32.mrb[0].mxu0
        %1574 = vmatprep.mubr.f32.mxu0 0.0
        %1575 = vmatmul.mubr.f32.gmra.mrb[0].mxu0 %v1337
        %v1576 = vpop.f32.mrb[0].mxu0
        %v1577 = vadd.f32 0.0, %v1576
        %v1578 = vpop.f32.mrb[0].mxu0
        %1579 = vmatprep.mubr.f32.mxu0 0.0
        %1580 = vmatmul.mubr.f32.gmra.mrb[0].mxu0 %v1339
        %v1581 = vpop.f32.mrb[0].mxu0
        %v1582 = vadd.f32 0.0, %v1581
        %v1583 = vpop.f32.mrb[0].mxu0
        %1584 = vmatprep.mubr.f32.mxu0 0.0
        %1585 = vmatmul.mubr.f32.gmra.mrb[0].mxu0 %v1341
        %v1586 = vpop.f32.mrb[0].mxu0
        %v1587 = vadd.f32 0.0, %v1586
        %v1588 = vpop.f32.mrb[0].mxu0
        %1589 = vmatprep.mubr.f32.mxu0 0.0
        %1590 = vmatmul.mubr.f32.gmra.mrb[0].mxu0 %v1343
        %v1591 = vpop.f32.mrb[0].mxu0
        %v1592 = vadd.f32 0.0, %v1591
        %v1593 = vpop.f32.mrb[0].mxu0
        %1594 = vmatprep.mubr.f32.mxu0 0.0
        %1595 = vmatmul.mubr.f32.gmra.mrb[0].mxu0 %v1345
        %v1596 = vpop.f32.mrb[0].mxu0
        %v1597 = vadd.f32 0.0, %v1596
        %v1598 = vpop.f32.mrb[0].mxu0
        %1599 = vmatprep.mubr.f32.mxu0 0.0
        %1600 = vmatmul.mubr.f32.gmra.mrb[0].mxu0 %v1347
        %v1601 = vpop.f32.mrb[0].mxu0
        %v1602 = vadd.f32 0.0, %v1601
        %v1603 = vpop.f32.mrb[0].mxu0
        %1604 = vmatprep.mubr.f32.mxu0 0.0
        %1605 = vmatmul.mubr.f32.gmra.mrb[0].mxu0 %v1349
        %v1606 = vpop.f32.mrb[0].mxu0
        %v1607 = vadd.f32 0.0, %v1606
        %v1608 = vpop.f32.mrb[0].mxu0
        %1609 = vmatprep.mubr.f32.mxu0 0.0
        %1610 = vmatmul.mubr.f32.gmra.mrb[0].mxu0 %v1351
        %v1611 = vpop.f32.mrb[0].mxu0
        %v1612 = vadd.f32 0.0, %v1611
        %v1613 = vpop.f32.mrb[0].mxu0
        %1614 = vmatprep.mubr.f32.mxu0 0.0
        %1615 = vmatmul.mubr.f32.gmra.mrb[0].mxu0 %v1353
        %v1616 = vpop.f32.mrb[0].mxu0
        %v1617 = vadd.f32 0.0, %v1616
        %v1618 = vpop.f32.mrb[0].mxu0
        %1619 = vmatprep.mubr.f32.mxu0 0.0
        %1620 = vmatmul.mubr.f32.gmra.mrb[0].mxu0 %v1355
        %v1621 = vpop.f32.mrb[0].mxu0
        %v1622 = vadd.f32 0.0, %v1621
        %v1623 = vpop.f32.mrb[0].mxu0
        %1624 = vmatprep.mubr.f32.mxu0 0.0
        %1625 = vmatmul.mubr.f32.gmra.mrb[0].mxu0 %v1357
        %v1626 = vpop.f32.mrb[0].mxu0
        %v1627 = vadd.f32 0.0, %v1626
        %v1628 = vpop.f32.mrb[0].mxu0
        %1629 = vmatprep.mubr.f32.mxu0 0.0
        %1630 = vmatmul.mubr.f32.gmra.mrb[0].mxu0 %v1359
        %v1631 = vpop.f32.mrb[0].mxu0
        %v1632 = vadd.f32 0.0, %v1631
        %v1633 = vpop.f32.mrb[0].mxu0
        %1634 = vmatprep.mubr.f32.mxu0 0.0
        %1635 = vmatmul.mubr.f32.gmra.mrb[0].mxu0 %v1361
        %v1636 = vpop.f32.mrb[0].mxu0
        %v1637 = vadd.f32 0.0, %v1636
        %v1638 = vpop.f32.mrb[0].mxu0
        %1639 = vmatprep.mubr.f32.mxu0 0.0
        %1640 = vmatmul.mubr.f32.gmra.mrb[0].mxu0 %v1363
        %v1641 = vpop.f32.mrb[0].mxu0
        %v1642 = vadd.f32 0.0, %v1641
        %v1643 = vpop.f32.mrb[0].mxu0
        %1644 = vmatprep.mubr.f32.mxu0 0.0
        %1645 = vmatmul.mubr.f32.gmra.mrb[0].mxu0 %v1365
        %v1646 = vpop.f32.mrb[0].mxu0
        %v1647 = vadd.f32 0.0, %v1646
        %v1648 = vpop.f32.mrb[0].mxu0
        %1649 = vmatprep.mubr.f32.mxu0 0.0
        %1650 = vmatmul.mubr.f32.gmra.mrb[0].mxu0 %v1367
        %v1651 = vpop.f32.mrb[0].mxu0
        %v1652 = vadd.f32 0.0, %v1651
        %v1653 = vpop.f32.mrb[0].mxu0
        %1654 = vmatprep.mubr.f32.mxu0 0.0
        %1655 = vmatmul.mubr.f32.gmra.mrb[0].mxu0 %v1369
        %v1656 = vpop.f32.mrb[0].mxu0
        %v1657 = vadd.f32 0.0, %v1656
        %v1658 = vpop.f32.mrb[0].mxu0
        %1659 = vmatprep.mubr.f32.mxu0 0.0
        %1660 = vmatmul.mubr.f32.gmra.mrb[0].mxu0 %v1371
        %v1661 = vpop.f32.mrb[0].mxu0
        %v1662 = vadd.f32 0.0, %v1661
        %v1663 = vpop.f32.mrb[0].mxu0
        %1664 = vmatprep.mubr.f32.mxu0 0.0
        %1665 = vmatmul.mubr.f32.gmra.mrb[0].mxu0 %v1373
        %v1666 = vpop.f32.mrb[0].mxu0
        %v1667 = vadd.f32 0.0, %v1666
        %v1668 = vpop.f32.mrb[0].mxu0
        %1669 = vmatprep.mubr.f32.mxu0 0.0
        %1670 = vmatmul.mubr.f32.gmra.mrb[0].mxu0 %v1375
        %v1671 = vpop.f32.mrb[0].mxu0
        %v1672 = vadd.f32 0.0, %v1671
        %v1673 = vpop.f32.mrb[0].mxu0
        %1674 = vmatprep.mubr.f32.mxu0 0.0
        %1675 = vmatmul.mubr.f32.gmra.mrb[0].mxu0 %v1377
        %v1676 = vpop.f32.mrb[0].mxu0
        %v1677 = vadd.f32 0.0, %v1676
        %v1678 = vpop.f32.mrb[0].mxu0
        %1679 = vmatprep.mubr.f32.mxu0 0.0
        %1680 = vmatmul.mubr.f32.gmra.mrb[0].mxu0 %v1379
        %v1681 = vpop.f32.mrb[0].mxu0
        %v1682 = vadd.f32 0.0, %v1681
        %v1683 = vpop.f32.mrb[0].mxu0
        %1684 = vmatprep.mubr.f32.mxu0 0.0
        %1685 = vmatmul.mubr.f32.gmra.mrb[0].mxu0 %v1381
        %v1686 = vpop.f32.mrb[0].mxu0
        %v1687 = vadd.f32 0.0, %v1686
        %v1688 = vpop.f32.mrb[0].mxu0
        %1689 = vmatprep.mubr.f32.mxu0 0.0
        %1690 = vmatmul.mubr.f32.gmra.mrb[0].mxu0 %v1383
        %v1691 = vpop.f32.mrb[0].mxu0
        %v1692 = vadd.f32 0.0, %v1691
        %v1693 = vpop.f32.mrb[0].mxu0
        %1694 = vmatprep.mubr.f32.mxu0 0.0
        %1695 = vmatmul.mubr.f32.gmra.mrb[0].mxu0 %v1385
        %v1696 = vpop.f32.mrb[0].mxu0
        %v1697 = vadd.f32 0.0, %v1696
        %v1698 = vpop.f32.mrb[0].mxu0
        %1699 = vmatprep.mubr.f32.mxu0 0.0
        %1700 = vmatmul.mubr.f32.gmra.mrb[0].mxu0 %v1387
        %v1701 = vpop.f32.mrb[0].mxu0
        %v1702 = vadd.f32 0.0, %v1701
        %v1703 = vpop.f32.mrb[0].mxu0
        %1704 = vmatprep.mubr.f32.mxu0 0.0
        %1705 = vmatmul.mubr.f32.gmra.mrb[0].mxu0 %v1389
        %v1706 = vpop.f32.mrb[0].mxu0
        %v1707 = vadd.f32 0.0, %v1706
        %v1708 = vpop.f32.mrb[0].mxu0
        %1709 = vmatprep.mubr.f32.mxu0 0.0
        %1710 = vmatmul.mubr.f32.gmra.mrb[0].mxu0 %v1391
        %v1711 = vpop.f32.mrb[0].mxu0
        %v1712 = vadd.f32 0.0, %v1711
        %v1713 = vpop.f32.mrb[0].mxu0
        %1714 = vmatprep.mubr.f32.mxu0 0.0
        %1715 = vmatmul.mubr.f32.gmra.mrb[0].mxu0 %v1392
        %v1716 = vpop.f32.mrb[0].mxu0
        %v1717 = vadd.f32 0.0, %v1716
        %v1718 = vpop.f32.mrb[0].mxu0
        %1719 = vdwg.mxu0
        %1720 = vmatprep.subr.mxu0 0.0
        %1721 = vmatpush1.msra.mxu0 %v1292
        %1722 = vmatprep.subr.mxu0 0.0
        %1723 = vmatpush1.msra.mxu0 %v1293
        %1724 = vmatprep.subr.mxu0 0.0
        %1725 = vmatpush1.msra.mxu0 %v1294
        %1726 = vmatprep.subr.mxu0 0.0
        %1727 = vmatpush1.msra.mxu0 %v1295
        %1728 = vmatprep.subr.mxu0 0.0
        %1729 = vmatpush1.msra.mxu0 %v1296
        %1730 = vmatprep.subr.mxu0 0.0
        %1731 = vmatpush1.msra.mxu0 %v1297
        %1732 = vmatprep.subr.mxu0 0.0
        %1733 = vmatpush1.msra.mxu0 %v1298
        %1734 = vmatprep.subr.mxu0 0.0
        %1735 = vmatpush1.msra.mxu0 %v1299
        %1736 = vmatprep.subr.mxu0 0.0
        %1737 = vmatpush1.msra.mxu0 %v1300
        %1738 = vmatprep.subr.mxu0 0.0
        %1739 = vmatpush1.msra.mxu0 %v1301
        %1740 = vmatprep.subr.mxu0 0.0
        %1741 = vmatpush1.msra.mxu0 %v1302
        %1742 = vmatprep.subr.mxu0 0.0
        %1743 = vmatpush1.msra.mxu0 %v1303
        %1744 = vmatprep.subr.mxu0 0.0
        %1745 = vmatpush1.msra.mxu0 %v1304
        %1746 = vmatprep.subr.mxu0 0.0
        %1747 = vmatpush1.msra.mxu0 %v1305
        %1748 = vmatprep.subr.mxu0 0.0
        %1749 = vmatpush1.msra.mxu0 %v1306
        %1750 = vmatprep.subr.mxu0 0.0
        %1751 = vmatpush1.msra.mxu0 %v1307
        %1752 = vmatprep.subr.mxu0 0.0
        %1753 = vmatpush1.msra.mxu0 0.0
        %1754 = vmatprep.subr.mxu0 0.0
        %1755 = vmatpush1.msra.mxu0 0.0
        %1756 = vmatprep.subr.mxu0 0.0
        %1757 = vmatpush1.msra.mxu0 0.0
        %1758 = vmatprep.subr.mxu0 0.0
        %1759 = vmatpush1.msra.mxu0 0.0
        %1760 = vmatprep.subr.mxu0 0.0
        %1761 = vmatpush1.msra.mxu0 0.0
        %1762 = vmatprep.subr.mxu0 0.0
        %1763 = vmatpush1.msra.mxu0 0.0
        %1764 = vmatprep.subr.mxu0 0.0
        %1765 = vmatpush1.msra.mxu0 0.0
        %1766 = vmatprep.subr.mxu0 0.0
        %1767 = vmatpush1.msra.mxu0 0.0
        %1768 = vmatprep.subr.mxu0 0.0
        %1769 = vmatpush1.msra.mxu0 0.0
        %1770 = vmatprep.subr.mxu0 0.0
        %1771 = vmatpush1.msra.mxu0 0.0
        %1772 = vmatprep.subr.mxu0 0.0
        %1773 = vmatpush1.msra.mxu0 0.0
        %1774 = vmatprep.subr.mxu0 0.0
        %1775 = vmatpush1.msra.mxu0 0.0
        %1776 = vmatprep.subr.mxu0 0.0
        %1777 = vmatpush1.msra.mxu0 0.0
        %1778 = vmatprep.subr.mxu0 0.0
        %1779 = vmatpush1.msra.mxu0 0.0
        %1780 = vmatprep.subr.mxu0 0.0
        %1781 = vmatpush1.msra.mxu0 0.0
        %1782 = vmatprep.subr.mxu0 0.0
        %1783 = vmatpush1.msra.mxu0 0.0
        %1784 = vmatprep.mubr.f32.mxu0 0.0
        %1785 = vmatmul.mubr.f32.gmra.mrb[0].mxu0 %v1132
        %v1786 = vpop.f32.mrb[0].mxu0
        %v1787 = vadd.f32 %v1517, %v1786
        %v1788 = vpop.f32.mrb[0].mxu0
        %1789 = vmatprep.mubr.f32.mxu0 0.0
        %1790 = vmatmul.mubr.f32.gmra.mrb[0].mxu0 %v1134
        %v1791 = vpop.f32.mrb[0].mxu0
        %v1792 = vadd.f32 %v1522, %v1791
        %v1793 = vpop.f32.mrb[0].mxu0
        %1794 = vmatprep.mubr.f32.mxu0 0.0
        %1795 = vmatmul.mubr.f32.gmra.mrb[0].mxu0 %v1291
        %v1796 = vpop.f32.mrb[0].mxu0
        %v1797 = vadd.f32 %v1527, %v1796
        %v1798 = vpop.f32.mrb[0].mxu0
        %1799 = vmatprep.mubr.f32.mxu0 0.0
        %1800 = vmatmul.mubr.f32.gmra.mrb[0].mxu0 %v1178
        %v1801 = vpop.f32.mrb[0].mxu0
        %v1802 = vadd.f32 %v1532, %v1801
        %v1803 = vpop.f32.mrb[0].mxu0
        %1804 = vmatprep.mubr.f32.mxu0 0.0
        %1805 = vmatmul.mubr.f32.gmra.mrb[0].mxu0 %v1180
        %v1806 = vpop.f32.mrb[0].mxu0
        %v1807 = vadd.f32 %v1537, %v1806
        %v1808 = vpop.f32.mrb[0].mxu0
        %1809 = vmatprep.mubr.f32.mxu0 0.0
        %1810 = vmatmul.mubr.f32.gmra.mrb[0].mxu0 %v1182
        %v1811 = vpop.f32.mrb[0].mxu0
        %v1812 = vadd.f32 %v1542, %v1811
        %v1813 = vpop.f32.mrb[0].mxu0
        %1814 = vmatprep.mubr.f32.mxu0 0.0
        %1815 = vmatmul.mubr.f32.gmra.mrb[0].mxu0 %v1184
        %v1816 = vpop.f32.mrb[0].mxu0
        %v1817 = vadd.f32 %v1547, %v1816
        %v1818 = vpop.f32.mrb[0].mxu0
        %1819 = vmatprep.mubr.f32.mxu0 0.0
        %1820 = vmatmul.mubr.f32.gmra.mrb[0].mxu0 %v1186
        %v1821 = vpop.f32.mrb[0].mxu0
        %v1822 = vadd.f32 %v1552, %v1821
        %v1823 = vpop.f32.mrb[0].mxu0
        %1824 = vmatprep.mubr.f32.mxu0 0.0
        %1825 = vmatmul.mubr.f32.gmra.mrb[0].mxu0 %v1188
        %v1826 = vpop.f32.mrb[0].mxu0
        %v1827 = vadd.f32 %v1557, %v1826
        %v1828 = vpop.f32.mrb[0].mxu0
        %1829 = vmatprep.mubr.f32.mxu0 0.0
        %1830 = vmatmul.mubr.f32.gmra.mrb[0].mxu0 %v1190
        %v1831 = vpop.f32.mrb[0].mxu0
        %v1832 = vadd.f32 %v1562, %v1831
        %v1833 = vpop.f32.mrb[0].mxu0
        %1834 = vmatprep.mubr.f32.mxu0 0.0
        %1835 = vmatmul.mubr.f32.gmra.mrb[0].mxu0 %v1192
        %v1836 = vpop.f32.mrb[0].mxu0
        %v1837 = vadd.f32 %v1567, %v1836
        %v1838 = vpop.f32.mrb[0].mxu0
        %1839 = vmatprep.mubr.f32.mxu0 0.0
        %1840 = vmatmul.mubr.f32.gmra.mrb[0].mxu0 %v1194
        %v1841 = vpop.f32.mrb[0].mxu0
        %v1842 = vadd.f32 %v1572, %v1841
        %v1843 = vpop.f32.mrb[0].mxu0
        %1844 = vmatprep.mubr.f32.mxu0 0.0
        %1845 = vmatmul.mubr.f32.gmra.mrb[0].mxu0 %v1196
        %v1846 = vpop.f32.mrb[0].mxu0
        %v1847 = vadd.f32 %v1577, %v1846
        %v1848 = vpop.f32.mrb[0].mxu0
        %1849 = vmatprep.mubr.f32.mxu0 0.0
        %1850 = vmatmul.mubr.f32.gmra.mrb[0].mxu0 %v1198
        %v1851 = vpop.f32.mrb[0].mxu0
        %v1852 = vadd.f32 %v1582, %v1851
        %v1853 = vpop.f32.mrb[0].mxu0
        %1854 = vmatprep.mubr.f32.mxu0 0.0
        %1855 = vmatmul.mubr.f32.gmra.mrb[0].mxu0 %v1200
        %v1856 = vpop.f32.mrb[0].mxu0
        %v1857 = vadd.f32 %v1587, %v1856
        %v1858 = vpop.f32.mrb[0].mxu0
        %1859 = vmatprep.mubr.f32.mxu0 0.0
        %1860 = vmatmul.mubr.f32.gmra.mrb[0].mxu0 %v1202
        %v1861 = vpop.f32.mrb[0].mxu0
        %v1862 = vadd.f32 %v1592, %v1861
        %v1863 = vpop.f32.mrb[0].mxu0
        %1864 = vmatprep.mubr.f32.mxu0 0.0
        %1865 = vmatmul.mubr.f32.gmra.mrb[0].mxu0 %v1204
        %v1866 = vpop.f32.mrb[0].mxu0
        %v1867 = vadd.f32 %v1597, %v1866
        %v1868 = vpop.f32.mrb[0].mxu0
        %1869 = vmatprep.mubr.f32.mxu0 0.0
        %1870 = vmatmul.mubr.f32.gmra.mrb[0].mxu0 %v1206
        %v1871 = vpop.f32.mrb[0].mxu0
        %v1872 = vadd.f32 %v1602, %v1871
        %v1873 = vpop.f32.mrb[0].mxu0
        %1874 = vmatprep.mubr.f32.mxu0 0.0
        %1875 = vmatmul.mubr.f32.gmra.mrb[0].mxu0 %v1208
        %v1876 = vpop.f32.mrb[0].mxu0
        %v1877 = vadd.f32 %v1607, %v1876
        %v1878 = vpop.f32.mrb[0].mxu0
        %1879 = vmatprep.mubr.f32.mxu0 0.0
        %1880 = vmatmul.mubr.f32.gmra.mrb[0].mxu0 %v1210
        %v1881 = vpop.f32.mrb[0].mxu0
        %v1882 = vadd.f32 %v1612, %v1881
        %v1883 = vpop.f32.mrb[0].mxu0
        %1884 = vmatprep.mubr.f32.mxu0 0.0
        %1885 = vmatmul.mubr.f32.gmra.mrb[0].mxu0 %v1212
        %v1886 = vpop.f32.mrb[0].mxu0
        %v1887 = vadd.f32 %v1617, %v1886
        %v1888 = vpop.f32.mrb[0].mxu0
        %1889 = vmatprep.mubr.f32.mxu0 0.0
        %1890 = vmatmul.mubr.f32.gmra.mrb[0].mxu0 %v1214
        %v1891 = vpop.f32.mrb[0].mxu0
        %v1892 = vadd.f32 %v1622, %v1891
        %v1893 = vpop.f32.mrb[0].mxu0
        %1894 = vmatprep.mubr.f32.mxu0 0.0
        %1895 = vmatmul.mubr.f32.gmra.mrb[0].mxu0 %v1216
        %v1896 = vpop.f32.mrb[0].mxu0
        %v1897 = vadd.f32 %v1627, %v1896
        %v1898 = vpop.f32.mrb[0].mxu0
        %1899 = vmatprep.mubr.f32.mxu0 0.0
        %1900 = vmatmul.mubr.f32.gmra.mrb[0].mxu0 %v1218
        %v1901 = vpop.f32.mrb[0].mxu0
        %v1902 = vadd.f32 %v1632, %v1901
        %v1903 = vpop.f32.mrb[0].mxu0
        %1904 = vmatprep.mubr.f32.mxu0 0.0
        %1905 = vmatmul.mubr.f32.gmra.mrb[0].mxu0 %v1220
        %v1906 = vpop.f32.mrb[0].mxu0
        %v1907 = vadd.f32 %v1637, %v1906
        %v1908 = vpop.f32.mrb[0].mxu0
        %1909 = vmatprep.mubr.f32.mxu0 0.0
        %1910 = vmatmul.mubr.f32.gmra.mrb[0].mxu0 %v1222
        %v1911 = vpop.f32.mrb[0].mxu0
        %v1912 = vadd.f32 %v1642, %v1911
        %v1913 = vpop.f32.mrb[0].mxu0
        %1914 = vmatprep.mubr.f32.mxu0 0.0
        %1915 = vmatmul.mubr.f32.gmra.mrb[0].mxu0 %v1224
        %v1916 = vpop.f32.mrb[0].mxu0
        %v1917 = vadd.f32 %v1647, %v1916
        %v1918 = vpop.f32.mrb[0].mxu0
        %1919 = vmatprep.mubr.f32.mxu0 0.0
        %1920 = vmatmul.mubr.f32.gmra.mrb[0].mxu0 %v1226
        %v1921 = vpop.f32.mrb[0].mxu0
        %v1922 = vadd.f32 %v1652, %v1921
        %v1923 = vpop.f32.mrb[0].mxu0
        %1924 = vmatprep.mubr.f32.mxu0 0.0
        %1925 = vmatmul.mubr.f32.gmra.mrb[0].mxu0 %v1228
        %v1926 = vpop.f32.mrb[0].mxu0
        %v1927 = vadd.f32 %v1657, %v1926
        %v1928 = vpop.f32.mrb[0].mxu0
        %1929 = vmatprep.mubr.f32.mxu0 0.0
        %1930 = vmatmul.mubr.f32.gmra.mrb[0].mxu0 %v1230
        %v1931 = vpop.f32.mrb[0].mxu0
        %v1932 = vadd.f32 %v1662, %v1931
        %v1933 = vpop.f32.mrb[0].mxu0
        %1934 = vmatprep.mubr.f32.mxu0 0.0
        %1935 = vmatmul.mubr.f32.gmra.mrb[0].mxu0 %v1232
        %v1936 = vpop.f32.mrb[0].mxu0
        %v1937 = vadd.f32 %v1667, %v1936
        %v1938 = vpop.f32.mrb[0].mxu0
        %1939 = vmatprep.mubr.f32.mxu0 0.0
        %1940 = vmatmul.mubr.f32.gmra.mrb[0].mxu0 %v1234
        %v1941 = vpop.f32.mrb[0].mxu0
        %v1942 = vadd.f32 %v1672, %v1941
        %v1943 = vpop.f32.mrb[0].mxu0
        %1944 = vmatprep.mubr.f32.mxu0 0.0
        %1945 = vmatmul.mubr.f32.gmra.mrb[0].mxu0 %v1236
        %v1946 = vpop.f32.mrb[0].mxu0
        %v1947 = vadd.f32 %v1677, %v1946
        %v1948 = vpop.f32.mrb[0].mxu0
        %1949 = vmatprep.mubr.f32.mxu0 0.0
        %1950 = vmatmul.mubr.f32.gmra.mrb[0].mxu0 %v1238
        %v1951 = vpop.f32.mrb[0].mxu0
        %v1952 = vadd.f32 %v1682, %v1951
        %v1953 = vpop.f32.mrb[0].mxu0
        %1954 = vmatprep.mubr.f32.mxu0 0.0
        %1955 = vmatmul.mubr.f32.gmra.mrb[0].mxu0 %v1240
        %v1956 = vpop.f32.mrb[0].mxu0
        %v1957 = vadd.f32 %v1687, %v1956
        %v1958 = vpop.f32.mrb[0].mxu0
        %1959 = vmatprep.mubr.f32.mxu0 0.0
        %1960 = vmatmul.mubr.f32.gmra.mrb[0].mxu0 %v1242
        %v1961 = vpop.f32.mrb[0].mxu0
        %v1962 = vadd.f32 %v1692, %v1961
        %v1963 = vpop.f32.mrb[0].mxu0
        %1964 = vmatprep.mubr.f32.mxu0 0.0
        %1965 = vmatmul.mubr.f32.gmra.mrb[0].mxu0 %v1244
        %v1966 = vpop.f32.mrb[0].mxu0
        %v1967 = vadd.f32 %v1697, %v1966
        %v1968 = vpop.f32.mrb[0].mxu0
        %1969 = vmatprep.mubr.f32.mxu0 0.0
        %1970 = vmatmul.mubr.f32.gmra.mrb[0].mxu0 %v1246
        %v1971 = vpop.f32.mrb[0].mxu0
        %v1972 = vadd.f32 %v1702, %v1971
        %v1973 = vpop.f32.mrb[0].mxu0
        %1974 = vmatprep.mubr.f32.mxu0 0.0
        %1975 = vmatmul.mubr.f32.gmra.mrb[0].mxu0 %v1248
        %v1976 = vpop.f32.mrb[0].mxu0
        %v1977 = vadd.f32 %v1707, %v1976
        %v1978 = vpop.f32.mrb[0].mxu0
        %1979 = vmatprep.mubr.f32.mxu0 0.0
        %1980 = vmatmul.mubr.f32.gmra.mrb[0].mxu0 %v1250
        %v1981 = vpop.f32.mrb[0].mxu0
        %v1982 = vadd.f32 %v1712, %v1981
        %v1983 = vpop.f32.mrb[0].mxu0
        %1984 = vmatprep.mubr.f32.mxu0 0.0
        %1985 = vmatmul.mubr.f32.gmra.mrb[0].mxu0 %v1251
        %v1986 = vpop.f32.mrb[0].mxu0
        %v1987 = vadd.f32 %v1717, %v1986
        %v1988 = vpop.f32.mrb[0].mxu0
        %1989 = vdwg.mxu0
        %vm1990 = vcmask 1040384
        %v1991 = vrot.slane %v1123, 7
        %v1992 = vrot.slane %v1124, 7
        %v1993 = vsel %vm1990, %v1991, %v1992
        %v1994 = vrot.slane %v1125, 7
        %v1995 = vsel %vm1990, %v1992, %v1994
        %v1999 = vrot.slane %v1085, 7
        %v2000 = vrot.slane %v1086, 7
        %v2001 = vsel %vm1990, %v1999, %v2000
        %v2002 = vrot.slane %v1087, 7
        %v2003 = vsel %vm1990, %v2000, %v2002
        %v2004 = vrot.slane %v1088, 7
        %v2005 = vsel %vm1990, %v2002, %v2004
        %v2006 = vrot.slane %v1089, 7
        %v2007 = vsel %vm1990, %v2004, %v2006
        %v2008 = vrot.slane %v1090, 7
        %v2009 = vsel %vm1990, %v2006, %v2008
        %v2010 = vrot.slane %v1091, 7
        %v2011 = vsel %vm1990, %v2008, %v2010
        %v2012 = vrot.slane %v1092, 7
        %v2013 = vsel %vm1990, %v2010, %v2012
        %v2014 = vrot.slane %v1093, 7
        %v2015 = vsel %vm1990, %v2012, %v2014
        %v2016 = vrot.slane %v1094, 7
        %v2017 = vsel %vm1990, %v2014, %v2016
        %v2018 = vrot.slane %v1095, 7
        %v2019 = vsel %vm1990, %v2016, %v2018
        %v2020 = vrot.slane %v1096, 7
        %v2021 = vsel %vm1990, %v2018, %v2020
        %v2022 = vrot.slane %v1097, 7
        %v2023 = vsel %vm1990, %v2020, %v2022
        %v2024 = vrot.slane %v1098, 7
        %v2025 = vsel %vm1990, %v2022, %v2024
        %v2026 = vrot.slane %v1099, 7
        %v2027 = vsel %vm1990, %v2024, %v2026
        %v2028 = vrot.slane %v1100, 7
        %v2029 = vsel %vm1990, %v2026, %v2028
        %v2030 = vrot.slane %v1101, 7
        %v2031 = vsel %vm1990, %v2028, %v2030
        %v2032 = vrot.slane %v1102, 7
        %v2033 = vsel %vm1990, %v2030, %v2032
        %v2034 = vrot.slane %v1103, 7
        %v2035 = vsel %vm1990, %v2032, %v2034
        %v2036 = vrot.slane %v1104, 7
        %v2037 = vsel %vm1990, %v2034, %v2036
        %v2038 = vrot.slane %v1105, 7
        %v2039 = vsel %vm1990, %v2036, %v2038
        %v2040 = vrot.slane %v1106, 7
        %v2041 = vsel %vm1990, %v2038, %v2040
        %v2042 = vrot.slane %v1107, 7
        %v2043 = vsel %vm1990, %v2040, %v2042
        %v2044 = vrot.slane %v1108, 7
        %v2045 = vsel %vm1990, %v2042, %v2044
        %v2046 = vrot.slane %v1109, 7
        %v2047 = vsel %vm1990, %v2044, %v2046
        %v2048 = vrot.slane %v1110, 7
        %v2049 = vsel %vm1990, %v2046, %v2048
        %v2050 = vrot.slane %v1111, 7
        %v2051 = vsel %vm1990, %v2048, %v2050
        %v2052 = vrot.slane %v1112, 7
        %v2053 = vsel %vm1990, %v2050, %v2052
        %v2054 = vrot.slane %v1113, 7
        %v2055 = vsel %vm1990, %v2052, %v2054
        %v2056 = vrot.slane %v1114, 7
        %v2057 = vsel %vm1990, %v2054, %v2056
        %v2058 = vrot.slane %v1115, 7
        %v2059 = vsel %vm1990, %v2056, %v2058
        %v2060 = vrot.slane %v1116, 7
        %v2061 = vsel %vm1990, %v2058, %v2060
        %v2062 = vrot.slane %v1117, 7
        %v2063 = vsel %vm1990, %v2060, %v2062
        %v2064 = vrot.slane %v1118, 7
        %v2065 = vsel %vm1990, %v2062, %v2064
        %v2066 = vrot.slane %v1119, 7
        %v2067 = vsel %vm1990, %v2064, %v2066
        %v2068 = vrot.slane %v1120, 7
        %v2069 = vsel %vm1990, %v2066, %v2068
        %v2070 = vrot.slane %v1121, 7
        %v2071 = vsel %vm1990, %v2068, %v2070
        %v2072 = vrot.slane %v1122, 7
        %v2073 = vsel %vm1990, %v2070, %v2072
        %v2074 = vsel %vm1990, %v2072, %v1991
        %v2114 = vsel %vm1990, %v1994, %v1999
        %s2115 = scalar_lea.vmem [#allocation5], 256
        %v2116 = vld [vmem:[%s2115] sm:$0xff]
        %v2117 = vld [vmem:[%s2115 + $0x8] sm:$0xff]
        %v2118 = vld [vmem:[%s2115 + $0x10] sm:$0xff]
        %v2119 = vld [vmem:[%s2115 + $0x18] sm:$0xff]
        %v2120 = vld [vmem:[%s2115 + $0x20] sm:$0xff]
        %v2121 = vld [vmem:[%s2115 + $0x28] sm:$0xff]
        %v2122 = vld [vmem:[%s2115 + $0x30] sm:$0xff]
        %v2123 = vld [vmem:[%s2115 + $0x38] sm:$0xff]
        %v2124 = vld [vmem:[%s2115 + $0x40] sm:$0xff]
        %v2125 = vld [vmem:[%s2115 + $0x48] sm:$0xff]
        %v2126 = vld [vmem:[%s2115 + $0x50] sm:$0xff]
        %v2127 = vld [vmem:[%s2115 + $0x58] sm:$0xff]
        %v2128 = vld [vmem:[%s2115 + $0x60] sm:$0xff]
        %v2129 = vld [vmem:[%s2115 + $0x68] sm:$0xff]
        %v2130 = vld [vmem:[%s2115 + $0x70] sm:$0xff]
        %v2131 = vld [vmem:[%s2115 + $0x78] sm:$0xff]
        %2132 = vmatprep.subr.mxu0 0.0
        %2133 = vmatpush1.msra.mxu0 %v2116
        %2134 = vmatprep.subr.mxu0 0.0
        %2135 = vmatpush1.msra.mxu0 %v2117
        %2136 = vmatprep.subr.mxu0 0.0
        %2137 = vmatpush1.msra.mxu0 %v2118
        %2138 = vmatprep.subr.mxu0 0.0
        %2139 = vmatpush1.msra.mxu0 %v2119
        %2140 = vmatprep.subr.mxu0 0.0
        %2141 = vmatpush1.msra.mxu0 %v2120
        %2142 = vmatprep.subr.mxu0 0.0
        %2143 = vmatpush1.msra.mxu0 %v2121
        %2144 = vmatprep.subr.mxu0 0.0
        %2145 = vmatpush1.msra.mxu0 %v2122
        %2146 = vmatprep.subr.mxu0 0.0
        %2147 = vmatpush1.msra.mxu0 %v2123
        %2148 = vmatprep.subr.mxu0 0.0
        %2149 = vmatpush1.msra.mxu0 %v2124
        %2150 = vmatprep.subr.mxu0 0.0
        %2151 = vmatpush1.msra.mxu0 %v2125
        %2152 = vmatprep.subr.mxu0 0.0
        %2153 = vmatpush1.msra.mxu0 %v2126
        %2154 = vmatprep.subr.mxu0 0.0
        %2155 = vmatpush1.msra.mxu0 %v2127
        %2156 = vmatprep.subr.mxu0 0.0
        %2157 = vmatpush1.msra.mxu0 %v2128
        %2158 = vmatprep.subr.mxu0 0.0
        %2159 = vmatpush1.msra.mxu0 %v2129
        %2160 = vmatprep.subr.mxu0 0.0
        %2161 = vmatpush1.msra.mxu0 %v2130
        %2162 = vmatprep.subr.mxu0 0.0
        %2163 = vmatpush1.msra.mxu0 %v2131
        %2164 = vmatprep.subr.mxu0 0.0
        %2165 = vmatpush1.msra.mxu0 0.0
        %2166 = vmatprep.subr.mxu0 0.0
        %2167 = vmatpush1.msra.mxu0 0.0
        %2168 = vmatprep.subr.mxu0 0.0
        %2169 = vmatpush1.msra.mxu0 0.0
        %2170 = vmatprep.subr.mxu0 0.0
        %2171 = vmatpush1.msra.mxu0 0.0
        %2172 = vmatprep.subr.mxu0 0.0
        %2173 = vmatpush1.msra.mxu0 0.0
        %2174 = vmatprep.subr.mxu0 0.0
        %2175 = vmatpush1.msra.mxu0 0.0
        %2176 = vmatprep.subr.mxu0 0.0
        %2177 = vmatpush1.msra.mxu0 0.0
        %2178 = vmatprep.subr.mxu0 0.0
        %2179 = vmatpush1.msra.mxu0 0.0
        %2180 = vmatprep.subr.mxu0 0.0
        %2181 = vmatpush1.msra.mxu0 0.0
        %2182 = vmatprep.subr.mxu0 0.0
        %2183 = vmatpush1.msra.mxu0 0.0
        %2184 = vmatprep.subr.mxu0 0.0
        %2185 = vmatpush1.msra.mxu0 0.0
        %2186 = vmatprep.subr.mxu0 0.0
        %2187 = vmatpush1.msra.mxu0 0.0
        %2188 = vmatprep.subr.mxu0 0.0
        %2189 = vmatpush1.msra.mxu0 0.0
        %2190 = vmatprep.subr.mxu0 0.0
        %2191 = vmatpush1.msra.mxu0 0.0
        %2192 = vmatprep.subr.mxu0 0.0
        %2193 = vmatpush1.msra.mxu0 0.0
        %2194 = vmatprep.subr.mxu0 0.0
        %2195 = vmatpush1.msra.mxu0 0.0
        %2196 = vmatprep.mubr.f32.mxu0 0.0
        %2197 = vmatmul.mubr.f32.gmra.mrb[0].mxu0 %v1993
        %v2198 = vpop.f32.mrb[0].mxu0
        %v2199 = vadd.f32 0.0, %v2198
        %v2200 = vpop.f32.mrb[0].mxu0
        %2201 = vmatprep.mubr.f32.mxu0 0.0
        %2202 = vmatmul.mubr.f32.gmra.mrb[0].mxu0 %v1995
        %v2203 = vpop.f32.mrb[0].mxu0
        %v2204 = vadd.f32 0.0, %v2203
        %v2205 = vpop.f32.mrb[0].mxu0
        %2206 = vmatprep.mubr.f32.mxu0 0.0
        %2207 = vmatmul.mubr.f32.gmra.mrb[0].mxu0 %v2114
        %v2208 = vpop.f32.mrb[0].mxu0
        %v2209 = vadd.f32 0.0, %v2208
        %v2210 = vpop.f32.mrb[0].mxu0
        %2211 = vmatprep.mubr.f32.mxu0 0.0
        %2212 = vmatmul.mubr.f32.gmra.mrb[0].mxu0 %v2001
        %v2213 = vpop.f32.mrb[0].mxu0
        %v2214 = vadd.f32 0.0, %v2213
        %v2215 = vpop.f32.mrb[0].mxu0
        %2216 = vmatprep.mubr.f32.mxu0 0.0
        %2217 = vmatmul.mubr.f32.gmra.mrb[0].mxu0 %v2003
        %v2218 = vpop.f32.mrb[0].mxu0
        %v2219 = vadd.f32 0.0, %v2218
        %v2220 = vpop.f32.mrb[0].mxu0
        %2221 = vmatprep.mubr.f32.mxu0 0.0
        %2222 = vmatmul.mubr.f32.gmra.mrb[0].mxu0 %v2005
        %v2223 = vpop.f32.mrb[0].mxu0
        %v2224 = vadd.f32 0.0, %v2223
        %v2225 = vpop.f32.mrb[0].mxu0
        %2226 = vmatprep.mubr.f32.mxu0 0.0
        %2227 = vmatmul.mubr.f32.gmra.mrb[0].mxu0 %v2007
        %v2228 = vpop.f32.mrb[0].mxu0
        %v2229 = vadd.f32 0.0, %v2228
        %v2230 = vpop.f32.mrb[0].mxu0
        %2231 = vmatprep.mubr.f32.mxu0 0.0
        %2232 = vmatmul.mubr.f32.gmra.mrb[0].mxu0 %v2009
        %v2233 = vpop.f32.mrb[0].mxu0
        %v2234 = vadd.f32 0.0, %v2233
        %v2235 = vpop.f32.mrb[0].mxu0
        %2236 = vmatprep.mubr.f32.mxu0 0.0
        %2237 = vmatmul.mubr.f32.gmra.mrb[0].mxu0 %v2011
        %v2238 = vpop.f32.mrb[0].mxu0
        %v2239 = vadd.f32 0.0, %v2238
        %v2240 = vpop.f32.mrb[0].mxu0
        %2241 = vmatprep.mubr.f32.mxu0 0.0
        %2242 = vmatmul.mubr.f32.gmra.mrb[0].mxu0 %v2013
        %v2243 = vpop.f32.mrb[0].mxu0
        %v2244 = vadd.f32 0.0, %v2243
        %v2245 = vpop.f32.mrb[0].mxu0
        %2246 = vmatprep.mubr.f32.mxu0 0.0
        %2247 = vmatmul.mubr.f32.gmra.mrb[0].mxu0 %v2015
        %v2248 = vpop.f32.mrb[0].mxu0
        %v2249 = vadd.f32 0.0, %v2248
        %v2250 = vpop.f32.mrb[0].mxu0
        %2251 = vmatprep.mubr.f32.mxu0 0.0
        %2252 = vmatmul.mubr.f32.gmra.mrb[0].mxu0 %v2017
        %v2253 = vpop.f32.mrb[0].mxu0
        %v2254 = vadd.f32 0.0, %v2253
        %v2255 = vpop.f32.mrb[0].mxu0
        %2256 = vmatprep.mubr.f32.mxu0 0.0
        %2257 = vmatmul.mubr.f32.gmra.mrb[0].mxu0 %v2019
        %v2258 = vpop.f32.mrb[0].mxu0
        %v2259 = vadd.f32 0.0, %v2258
        %v2260 = vpop.f32.mrb[0].mxu0
        %2261 = vmatprep.mubr.f32.mxu0 0.0
        %2262 = vmatmul.mubr.f32.gmra.mrb[0].mxu0 %v2021
        %v2263 = vpop.f32.mrb[0].mxu0
        %v2264 = vadd.f32 0.0, %v2263
        %v2265 = vpop.f32.mrb[0].mxu0
        %2266 = vmatprep.mubr.f32.mxu0 0.0
        %2267 = vmatmul.mubr.f32.gmra.mrb[0].mxu0 %v2023
        %v2268 = vpop.f32.mrb[0].mxu0
        %v2269 = vadd.f32 0.0, %v2268
        %v2270 = vpop.f32.mrb[0].mxu0
        %2271 = vmatprep.mubr.f32.mxu0 0.0
        %2272 = vmatmul.mubr.f32.gmra.mrb[0].mxu0 %v2025
        %v2273 = vpop.f32.mrb[0].mxu0
        %v2274 = vadd.f32 0.0, %v2273
        %v2275 = vpop.f32.mrb[0].mxu0
        %2276 = vmatprep.mubr.f32.mxu0 0.0
        %2277 = vmatmul.mubr.f32.gmra.mrb[0].mxu0 %v2027
        %v2278 = vpop.f32.mrb[0].mxu0
        %v2279 = vadd.f32 0.0, %v2278
        %v2280 = vpop.f32.mrb[0].mxu0
        %2281 = vmatprep.mubr.f32.mxu0 0.0
        %2282 = vmatmul.mubr.f32.gmra.mrb[0].mxu0 %v2029
        %v2283 = vpop.f32.mrb[0].mxu0
        %v2284 = vadd.f32 0.0, %v2283
        %v2285 = vpop.f32.mrb[0].mxu0
        %2286 = vmatprep.mubr.f32.mxu0 0.0
        %2287 = vmatmul.mubr.f32.gmra.mrb[0].mxu0 %v2031
        %v2288 = vpop.f32.mrb[0].mxu0
        %v2289 = vadd.f32 0.0, %v2288
        %v2290 = vpop.f32.mrb[0].mxu0
        %2291 = vmatprep.mubr.f32.mxu0 0.0
        %2292 = vmatmul.mubr.f32.gmra.mrb[0].mxu0 %v2033
        %v2293 = vpop.f32.mrb[0].mxu0
        %v2294 = vadd.f32 0.0, %v2293
        %v2295 = vpop.f32.mrb[0].mxu0
        %2296 = vmatprep.mubr.f32.mxu0 0.0
        %2297 = vmatmul.mubr.f32.gmra.mrb[0].mxu0 %v2035
        %v2298 = vpop.f32.mrb[0].mxu0
        %v2299 = vadd.f32 0.0, %v2298
        %v2300 = vpop.f32.mrb[0].mxu0
        %2301 = vmatprep.mubr.f32.mxu0 0.0
        %2302 = vmatmul.mubr.f32.gmra.mrb[0].mxu0 %v2037
        %v2303 = vpop.f32.mrb[0].mxu0
        %v2304 = vadd.f32 0.0, %v2303
        %v2305 = vpop.f32.mrb[0].mxu0
        %2306 = vmatprep.mubr.f32.mxu0 0.0
        %2307 = vmatmul.mubr.f32.gmra.mrb[0].mxu0 %v2039
        %v2308 = vpop.f32.mrb[0].mxu0
        %v2309 = vadd.f32 0.0, %v2308
        %v2310 = vpop.f32.mrb[0].mxu0
        %2311 = vmatprep.mubr.f32.mxu0 0.0
        %2312 = vmatmul.mubr.f32.gmra.mrb[0].mxu0 %v2041
        %v2313 = vpop.f32.mrb[0].mxu0
        %v2314 = vadd.f32 0.0, %v2313
        %v2315 = vpop.f32.mrb[0].mxu0
        %2316 = vmatprep.mubr.f32.mxu0 0.0
        %2317 = vmatmul.mubr.f32.gmra.mrb[0].mxu0 %v2043
        %v2318 = vpop.f32.mrb[0].mxu0
        %v2319 = vadd.f32 0.0, %v2318
        %v2320 = vpop.f32.mrb[0].mxu0
        %2321 = vmatprep.mubr.f32.mxu0 0.0
        %2322 = vmatmul.mubr.f32.gmra.mrb[0].mxu0 %v2045
        %v2323 = vpop.f32.mrb[0].mxu0
        %v2324 = vadd.f32 0.0, %v2323
        %v2325 = vpop.f32.mrb[0].mxu0
        %2326 = vmatprep.mubr.f32.mxu0 0.0
        %2327 = vmatmul.mubr.f32.gmra.mrb[0].mxu0 %v2047
        %v2328 = vpop.f32.mrb[0].mxu0
        %v2329 = vadd.f32 0.0, %v2328
        %v2330 = vpop.f32.mrb[0].mxu0
        %2331 = vmatprep.mubr.f32.mxu0 0.0
        %2332 = vmatmul.mubr.f32.gmra.mrb[0].mxu0 %v2049
        %v2333 = vpop.f32.mrb[0].mxu0
        %v2334 = vadd.f32 0.0, %v2333
        %v2335 = vpop.f32.mrb[0].mxu0
        %2336 = vmatprep.mubr.f32.mxu0 0.0
        %2337 = vmatmul.mubr.f32.gmra.mrb[0].mxu0 %v2051
        %v2338 = vpop.f32.mrb[0].mxu0
        %v2339 = vadd.f32 0.0, %v2338
        %v2340 = vpop.f32.mrb[0].mxu0
        %2341 = vmatprep.mubr.f32.mxu0 0.0
        %2342 = vmatmul.mubr.f32.gmra.mrb[0].mxu0 %v2053
        %v2343 = vpop.f32.mrb[0].mxu0
        %v2344 = vadd.f32 0.0, %v2343
        %v2345 = vpop.f32.mrb[0].mxu0
        %2346 = vmatprep.mubr.f32.mxu0 0.0
        %2347 = vmatmul.mubr.f32.gmra.mrb[0].mxu0 %v2055
        %v2348 = vpop.f32.mrb[0].mxu0
        %v2349 = vadd.f32 0.0, %v2348
        %v2350 = vpop.f32.mrb[0].mxu0
        %2351 = vmatprep.mubr.f32.mxu0 0.0
        %2352 = vmatmul.mubr.f32.gmra.mrb[0].mxu0 %v2057
        %v2353 = vpop.f32.mrb[0].mxu0
        %v2354 = vadd.f32 0.0, %v2353
        %v2355 = vpop.f32.mrb[0].mxu0
        %2356 = vmatprep.mubr.f32.mxu0 0.0
        %2357 = vmatmul.mubr.f32.gmra.mrb[0].mxu0 %v2059
        %v2358 = vpop.f32.mrb[0].mxu0
        %v2359 = vadd.f32 0.0, %v2358
        %v2360 = vpop.f32.mrb[0].mxu0
        %2361 = vmatprep.mubr.f32.mxu0 0.0
        %2362 = vmatmul.mubr.f32.gmra.mrb[0].mxu0 %v2061
        %v2363 = vpop.f32.mrb[0].mxu0
        %v2364 = vadd.f32 0.0, %v2363
        %v2365 = vpop.f32.mrb[0].mxu0
        %2366 = vmatprep.mubr.f32.mxu0 0.0
        %2367 = vmatmul.mubr.f32.gmra.mrb[0].mxu0 %v2063
        %v2368 = vpop.f32.mrb[0].mxu0
        %v2369 = vadd.f32 0.0, %v2368
        %v2370 = vpop.f32.mrb[0].mxu0
        %2371 = vmatprep.mubr.f32.mxu0 0.0
        %2372 = vmatmul.mubr.f32.gmra.mrb[0].mxu0 %v2065
        %v2373 = vpop.f32.mrb[0].mxu0
        %v2374 = vadd.f32 0.0, %v2373
        %v2375 = vpop.f32.mrb[0].mxu0
        %2376 = vmatprep.mubr.f32.mxu0 0.0
        %2377 = vmatmul.mubr.f32.gmra.mrb[0].mxu0 %v2067
        %v2378 = vpop.f32.mrb[0].mxu0
        %v2379 = vadd.f32 0.0, %v2378
        %v2380 = vpop.f32.mrb[0].mxu0
        %2381 = vmatprep.mubr.f32.mxu0 0.0
        %2382 = vmatmul.mubr.f32.gmra.mrb[0].mxu0 %v2069
        %v2383 = vpop.f32.mrb[0].mxu0
        %v2384 = vadd.f32 0.0, %v2383
        %v2385 = vpop.f32.mrb[0].mxu0
        %2386 = vmatprep.mubr.f32.mxu0 0.0
        %2387 = vmatmul.mubr.f32.gmra.mrb[0].mxu0 %v2071
        %v2388 = vpop.f32.mrb[0].mxu0
        %v2389 = vadd.f32 0.0, %v2388
        %v2390 = vpop.f32.mrb[0].mxu0
        %2391 = vmatprep.mubr.f32.mxu0 0.0
        %2392 = vmatmul.mubr.f32.gmra.mrb[0].mxu0 %v2073
        %v2393 = vpop.f32.mrb[0].mxu0
        %v2394 = vadd.f32 0.0, %v2393
        %v2395 = vpop.f32.mrb[0].mxu0
        %2396 = vmatprep.mubr.f32.mxu0 0.0
        %2397 = vmatmul.mubr.f32.gmra.mrb[0].mxu0 %v2074
        %v2398 = vpop.f32.mrb[0].mxu0
        %v2399 = vadd.f32 0.0, %v2398
        %v2400 = vpop.f32.mrb[0].mxu0
        %2401 = vdwg.mxu0
        %v2402 = vadd.f32 %v1787, %v2199
        %v2403 = vadd.f32 %v1792, %v2204
        %v2404 = vadd.f32 %v1797, %v2209
        %v2405 = vadd.f32 %v1802, %v2214
        %v2406 = vadd.f32 %v1807, %v2219
        %v2407 = vadd.f32 %v1812, %v2224
        %v2408 = vadd.f32 %v1817, %v2229
        %v2409 = vadd.f32 %v1822, %v2234
        %v2410 = vadd.f32 %v1827, %v2239
        %v2411 = vadd.f32 %v1832, %v2244
        %v2412 = vadd.f32 %v1837, %v2249
        %v2413 = vadd.f32 %v1842, %v2254
        %v2414 = vadd.f32 %v1847, %v2259
        %v2415 = vadd.f32 %v1852, %v2264
        %v2416 = vadd.f32 %v1857, %v2269
        %v2417 = vadd.f32 %v1862, %v2274
        %v2418 = vadd.f32 %v1867, %v2279
        %v2419 = vadd.f32 %v1872, %v2284
        %v2420 = vadd.f32 %v1877, %v2289
        %v2421 = vadd.f32 %v1882, %v2294
        %v2422 = vadd.f32 %v1887, %v2299
        %v2423 = vadd.f32 %v1892, %v2304
        %v2424 = vadd.f32 %v1897, %v2309
        %v2425 = vadd.f32 %v1902, %v2314
        %v2426 = vadd.f32 %v1907, %v2319
        %v2427 = vadd.f32 %v1912, %v2324
        %v2428 = vadd.f32 %v1917, %v2329
        %v2429 = vadd.f32 %v1922, %v2334
        %v2430 = vadd.f32 %v1927, %v2339
        %v2431 = vadd.f32 %v1932, %v2344
        %v2432 = vadd.f32 %v1937, %v2349
        %v2433 = vadd.f32 %v1942, %v2354
        %v2434 = vadd.f32 %v1947, %v2359
        %v2435 = vadd.f32 %v1952, %v2364
        %v2436 = vadd.f32 %v1957, %v2369
        %v2437 = vadd.f32 %v1962, %v2374
        %v2438 = vadd.f32 %v1967, %v2379
        %v2439 = vadd.f32 %v1972, %v2384
        %v2440 = vadd.f32 %v1977, %v2389
        %v2441 = vadd.f32 %v1982, %v2394
        %v2442 = vadd.f32 %v1987, %v2399
        %s2443 = scalar_lea.vmem [#allocation5], 384
        %v2444 = vld [vmem:[%s2443] sm:$0xff]
        %v2445 = vld [vmem:[%s2443 + $0x8] sm:$0xff]
        %v2446 = vld [vmem:[%s2443 + $0x10] sm:$0xff]
        %v2447 = vld [vmem:[%s2443 + $0x18] sm:$0xff]
        %v2448 = vld [vmem:[%s2443 + $0x20] sm:$0xff]
        %v2449 = vld [vmem:[%s2443 + $0x28] sm:$0xff]
        %v2450 = vld [vmem:[%s2443 + $0x30] sm:$0xff]
        %v2451 = vld [vmem:[%s2443 + $0x38] sm:$0xff]
        %v2452 = vld [vmem:[%s2443 + $0x40] sm:$0xff]
        %v2453 = vld [vmem:[%s2443 + $0x48] sm:$0xff]
        %v2454 = vld [vmem:[%s2443 + $0x50] sm:$0xff]
        %v2455 = vld [vmem:[%s2443 + $0x58] sm:$0xff]
        %v2456 = vld [vmem:[%s2443 + $0x60] sm:$0xff]
        %v2457 = vld [vmem:[%s2443 + $0x68] sm:$0xff]
        %v2458 = vld [vmem:[%s2443 + $0x70] sm:$0xff]
        %v2459 = vld [vmem:[%s2443 + $0x78] sm:$0xff]
        %2460 = vmatprep.subr.mxu0 0.0
        %2461 = vmatpush1.msra.mxu0 %v2444
        %2462 = vmatprep.subr.mxu0 0.0
        %2463 = vmatpush1.msra.mxu0 %v2445
        %2464 = vmatprep.subr.mxu0 0.0
        %2465 = vmatpush1.msra.mxu0 %v2446
        %2466 = vmatprep.subr.mxu0 0.0
        %2467 = vmatpush1.msra.mxu0 %v2447
        %2468 = vmatprep.subr.mxu0 0.0
        %2469 = vmatpush1.msra.mxu0 %v2448
        %2470 = vmatprep.subr.mxu0 0.0
        %2471 = vmatpush1.msra.mxu0 %v2449
        %2472 = vmatprep.subr.mxu0 0.0
        %2473 = vmatpush1.msra.mxu0 %v2450
        %2474 = vmatprep.subr.mxu0 0.0
        %2475 = vmatpush1.msra.mxu0 %v2451
        %2476 = vmatprep.subr.mxu0 0.0
        %2477 = vmatpush1.msra.mxu0 %v2452
        %2478 = vmatprep.subr.mxu0 0.0
        %2479 = vmatpush1.msra.mxu0 %v2453
        %2480 = vmatprep.subr.mxu0 0.0
        %2481 = vmatpush1.msra.mxu0 %v2454
        %2482 = vmatprep.subr.mxu0 0.0
        %2483 = vmatpush1.msra.mxu0 %v2455
        %2484 = vmatprep.subr.mxu0 0.0
        %2485 = vmatpush1.msra.mxu0 %v2456
        %2486 = vmatprep.subr.mxu0 0.0
        %2487 = vmatpush1.msra.mxu0 %v2457
        %2488 = vmatprep.subr.mxu0 0.0
        %2489 = vmatpush1.msra.mxu0 %v2458
        %2490 = vmatprep.subr.mxu0 0.0
        %2491 = vmatpush1.msra.mxu0 %v2459
        %2492 = vmatprep.subr.mxu0 0.0
        %2493 = vmatpush1.msra.mxu0 0.0
        %2494 = vmatprep.subr.mxu0 0.0
        %2495 = vmatpush1.msra.mxu0 0.0
        %2496 = vmatprep.subr.mxu0 0.0
        %2497 = vmatpush1.msra.mxu0 0.0
        %2498 = vmatprep.subr.mxu0 0.0
        %2499 = vmatpush1.msra.mxu0 0.0
        %2500 = vmatprep.subr.mxu0 0.0
        %2501 = vmatpush1.msra.mxu0 0.0
        %2502 = vmatprep.subr.mxu0 0.0
        %2503 = vmatpush1.msra.mxu0 0.0
        %2504 = vmatprep.subr.mxu0 0.0
        %2505 = vmatpush1.msra.mxu0 0.0
        %2506 = vmatprep.subr.mxu0 0.0
        %2507 = vmatpush1.msra.mxu0 0.0
        %2508 = vmatprep.subr.mxu0 0.0
        %2509 = vmatpush1.msra.mxu0 0.0
        %2510 = vmatprep.subr.mxu0 0.0
        %2511 = vmatpush1.msra.mxu0 0.0
        %2512 = vmatprep.subr.mxu0 0.0
        %2513 = vmatpush1.msra.mxu0 0.0
        %2514 = vmatprep.subr.mxu0 0.0
        %2515 = vmatpush1.msra.mxu0 0.0
        %2516 = vmatprep.subr.mxu0 0.0
        %2517 = vmatpush1.msra.mxu0 0.0
        %2518 = vmatprep.subr.mxu0 0.0
        %2519 = vmatpush1.msra.mxu0 0.0
        %2520 = vmatprep.subr.mxu0 0.0
        %2521 = vmatpush1.msra.mxu0 0.0
        %2522 = vmatprep.subr.mxu0 0.0
        %2523 = vmatpush1.msra.mxu0 0.0
        %2524 = vmatprep.mubr.f32.mxu0 0.0
        %2525 = vmatmul.mubr.f32.gmra.mrb[0].mxu0 %v2114
        %v2526 = vpop.f32.mrb[0].mxu0
        %v2527 = vadd.f32 0.0, %v2526
        %v2528 = vpop.f32.mrb[0].mxu0
        %2529 = vmatprep.mubr.f32.mxu0 0.0
        %2530 = vmatmul.mubr.f32.gmra.mrb[0].mxu0 %v2001
        %v2531 = vpop.f32.mrb[0].mxu0
        %v2532 = vadd.f32 0.0, %v2531
        %v2533 = vpop.f32.mrb[0].mxu0
        %2534 = vmatprep.mubr.f32.mxu0 0.0
        %2535 = vmatmul.mubr.f32.gmra.mrb[0].mxu0 %v2003
        %v2536 = vpop.f32.mrb[0].mxu0
        %v2537 = vadd.f32 0.0, %v2536
        %v2538 = vpop.f32.mrb[0].mxu0
        %2539 = vmatprep.mubr.f32.mxu0 0.0
        %2540 = vmatmul.mubr.f32.gmra.mrb[0].mxu0 %v2005
        %v2541 = vpop.f32.mrb[0].mxu0
        %v2542 = vadd.f32 0.0, %v2541
        %v2543 = vpop.f32.mrb[0].mxu0
        %2544 = vmatprep.mubr.f32.mxu0 0.0
        %2545 = vmatmul.mubr.f32.gmra.mrb[0].mxu0 %v2007
        %v2546 = vpop.f32.mrb[0].mxu0
        %v2547 = vadd.f32 0.0, %v2546
        %v2548 = vpop.f32.mrb[0].mxu0
        %2549 = vmatprep.mubr.f32.mxu0 0.0
        %2550 = vmatmul.mubr.f32.gmra.mrb[0].mxu0 %v2009
        %v2551 = vpop.f32.mrb[0].mxu0
        %v2552 = vadd.f32 0.0, %v2551
        %v2553 = vpop.f32.mrb[0].mxu0
        %2554 = vmatprep.mubr.f32.mxu0 0.0
        %2555 = vmatmul.mubr.f32.gmra.mrb[0].mxu0 %v2011
        %v2556 = vpop.f32.mrb[0].mxu0
        %v2557 = vadd.f32 0.0, %v2556
        %v2558 = vpop.f32.mrb[0].mxu0
        %2559 = vmatprep.mubr.f32.mxu0 0.0
        %2560 = vmatmul.mubr.f32.gmra.mrb[0].mxu0 %v2013
        %v2561 = vpop.f32.mrb[0].mxu0
        %v2562 = vadd.f32 0.0, %v2561
        %v2563 = vpop.f32.mrb[0].mxu0
        %2564 = vmatprep.mubr.f32.mxu0 0.0
        %2565 = vmatmul.mubr.f32.gmra.mrb[0].mxu0 %v2015
        %v2566 = vpop.f32.mrb[0].mxu0
        %v2567 = vadd.f32 0.0, %v2566
        %v2568 = vpop.f32.mrb[0].mxu0
        %2569 = vmatprep.mubr.f32.mxu0 0.0
        %2570 = vmatmul.mubr.f32.gmra.mrb[0].mxu0 %v2017
        %v2571 = vpop.f32.mrb[0].mxu0
        %v2572 = vadd.f32 0.0, %v2571
        %v2573 = vpop.f32.mrb[0].mxu0
        %2574 = vmatprep.mubr.f32.mxu0 0.0
        %2575 = vmatmul.mubr.f32.gmra.mrb[0].mxu0 %v2019
        %v2576 = vpop.f32.mrb[0].mxu0
        %v2577 = vadd.f32 0.0, %v2576
        %v2578 = vpop.f32.mrb[0].mxu0
        %2579 = vmatprep.mubr.f32.mxu0 0.0
        %2580 = vmatmul.mubr.f32.gmra.mrb[0].mxu0 %v2021
        %v2581 = vpop.f32.mrb[0].mxu0
        %v2582 = vadd.f32 0.0, %v2581
        %v2583 = vpop.f32.mrb[0].mxu0
        %2584 = vmatprep.mubr.f32.mxu0 0.0
        %2585 = vmatmul.mubr.f32.gmra.mrb[0].mxu0 %v2023
        %v2586 = vpop.f32.mrb[0].mxu0
        %v2587 = vadd.f32 0.0, %v2586
        %v2588 = vpop.f32.mrb[0].mxu0
        %2589 = vmatprep.mubr.f32.mxu0 0.0
        %2590 = vmatmul.mubr.f32.gmra.mrb[0].mxu0 %v2025
        %v2591 = vpop.f32.mrb[0].mxu0
        %v2592 = vadd.f32 0.0, %v2591
        %v2593 = vpop.f32.mrb[0].mxu0
        %2594 = vmatprep.mubr.f32.mxu0 0.0
        %2595 = vmatmul.mubr.f32.gmra.mrb[0].mxu0 %v2027
        %v2596 = vpop.f32.mrb[0].mxu0
        %v2597 = vadd.f32 0.0, %v2596
        %v2598 = vpop.f32.mrb[0].mxu0
        %2599 = vmatprep.mubr.f32.mxu0 0.0
        %2600 = vmatmul.mubr.f32.gmra.mrb[0].mxu0 %v2029
        %v2601 = vpop.f32.mrb[0].mxu0
        %v2602 = vadd.f32 0.0, %v2601
        %v2603 = vpop.f32.mrb[0].mxu0
        %2604 = vmatprep.mubr.f32.mxu0 0.0
        %2605 = vmatmul.mubr.f32.gmra.mrb[0].mxu0 %v2031
        %v2606 = vpop.f32.mrb[0].mxu0
        %v2607 = vadd.f32 0.0, %v2606
        %v2608 = vpop.f32.mrb[0].mxu0
        %2609 = vmatprep.mubr.f32.mxu0 0.0
        %2610 = vmatmul.mubr.f32.gmra.mrb[0].mxu0 %v2033
        %v2611 = vpop.f32.mrb[0].mxu0
        %v2612 = vadd.f32 0.0, %v2611
        %v2613 = vpop.f32.mrb[0].mxu0
        %2614 = vmatprep.mubr.f32.mxu0 0.0
        %2615 = vmatmul.mubr.f32.gmra.mrb[0].mxu0 %v2035
        %v2616 = vpop.f32.mrb[0].mxu0
        %v2617 = vadd.f32 0.0, %v2616
        %v2618 = vpop.f32.mrb[0].mxu0
        %2619 = vmatprep.mubr.f32.mxu0 0.0
        %2620 = vmatmul.mubr.f32.gmra.mrb[0].mxu0 %v2037
        %v2621 = vpop.f32.mrb[0].mxu0
        %v2622 = vadd.f32 0.0, %v2621
        %v2623 = vpop.f32.mrb[0].mxu0
        %2624 = vmatprep.mubr.f32.mxu0 0.0
        %2625 = vmatmul.mubr.f32.gmra.mrb[0].mxu0 %v2039
        %v2626 = vpop.f32.mrb[0].mxu0
        %v2627 = vadd.f32 0.0, %v2626
        %v2628 = vpop.f32.mrb[0].mxu0
        %2629 = vmatprep.mubr.f32.mxu0 0.0
        %2630 = vmatmul.mubr.f32.gmra.mrb[0].mxu0 %v2041
        %v2631 = vpop.f32.mrb[0].mxu0
        %v2632 = vadd.f32 0.0, %v2631
        %v2633 = vpop.f32.mrb[0].mxu0
        %2634 = vmatprep.mubr.f32.mxu0 0.0
        %2635 = vmatmul.mubr.f32.gmra.mrb[0].mxu0 %v2043
        %v2636 = vpop.f32.mrb[0].mxu0
        %v2637 = vadd.f32 0.0, %v2636
        %v2638 = vpop.f32.mrb[0].mxu0
        %2639 = vmatprep.mubr.f32.mxu0 0.0
        %2640 = vmatmul.mubr.f32.gmra.mrb[0].mxu0 %v2045
        %v2641 = vpop.f32.mrb[0].mxu0
        %v2642 = vadd.f32 0.0, %v2641
        %v2643 = vpop.f32.mrb[0].mxu0
        %2644 = vmatprep.mubr.f32.mxu0 0.0
        %2645 = vmatmul.mubr.f32.gmra.mrb[0].mxu0 %v2047
        %v2646 = vpop.f32.mrb[0].mxu0
        %v2647 = vadd.f32 0.0, %v2646
        %v2648 = vpop.f32.mrb[0].mxu0
        %2649 = vmatprep.mubr.f32.mxu0 0.0
        %2650 = vmatmul.mubr.f32.gmra.mrb[0].mxu0 %v2049
        %v2651 = vpop.f32.mrb[0].mxu0
        %v2652 = vadd.f32 0.0, %v2651
        %v2653 = vpop.f32.mrb[0].mxu0
        %2654 = vmatprep.mubr.f32.mxu0 0.0
        %2655 = vmatmul.mubr.f32.gmra.mrb[0].mxu0 %v2051
        %v2656 = vpop.f32.mrb[0].mxu0
        %v2657 = vadd.f32 0.0, %v2656
        %v2658 = vpop.f32.mrb[0].mxu0
        %2659 = vmatprep.mubr.f32.mxu0 0.0
        %2660 = vmatmul.mubr.f32.gmra.mrb[0].mxu0 %v2053
        %v2661 = vpop.f32.mrb[0].mxu0
        %v2662 = vadd.f32 0.0, %v2661
        %v2663 = vpop.f32.mrb[0].mxu0
        %2664 = vmatprep.mubr.f32.mxu0 0.0
        %2665 = vmatmul.mubr.f32.gmra.mrb[0].mxu0 %v2055
        %v2666 = vpop.f32.mrb[0].mxu0
        %v2667 = vadd.f32 0.0, %v2666
        %v2668 = vpop.f32.mrb[0].mxu0
        %2669 = vmatprep.mubr.f32.mxu0 0.0
        %2670 = vmatmul.mubr.f32.gmra.mrb[0].mxu0 %v2057
        %v2671 = vpop.f32.mrb[0].mxu0
        %v2672 = vadd.f32 0.0, %v2671
        %v2673 = vpop.f32.mrb[0].mxu0
        %2674 = vmatprep.mubr.f32.mxu0 0.0
        %2675 = vmatmul.mubr.f32.gmra.mrb[0].mxu0 %v2059
        %v2676 = vpop.f32.mrb[0].mxu0
        %v2677 = vadd.f32 0.0, %v2676
        %v2678 = vpop.f32.mrb[0].mxu0
        %2679 = vmatprep.mubr.f32.mxu0 0.0
        %2680 = vmatmul.mubr.f32.gmra.mrb[0].mxu0 %v2061
        %v2681 = vpop.f32.mrb[0].mxu0
        %v2682 = vadd.f32 0.0, %v2681
        %v2683 = vpop.f32.mrb[0].mxu0
        %2684 = vmatprep.mubr.f32.mxu0 0.0
        %2685 = vmatmul.mubr.f32.gmra.mrb[0].mxu0 %v2063
        %v2686 = vpop.f32.mrb[0].mxu0
        %v2687 = vadd.f32 0.0, %v2686
        %v2688 = vpop.f32.mrb[0].mxu0
        %2689 = vmatprep.mubr.f32.mxu0 0.0
        %2690 = vmatmul.mubr.f32.gmra.mrb[0].mxu0 %v2065
        %v2691 = vpop.f32.mrb[0].mxu0
        %v2692 = vadd.f32 0.0, %v2691
        %v2693 = vpop.f32.mrb[0].mxu0
        %2694 = vmatprep.mubr.f32.mxu0 0.0
        %2695 = vmatmul.mubr.f32.gmra.mrb[0].mxu0 %v2067
        %v2696 = vpop.f32.mrb[0].mxu0
        %v2697 = vadd.f32 0.0, %v2696
        %v2698 = vpop.f32.mrb[0].mxu0
        %2699 = vmatprep.mubr.f32.mxu0 0.0
        %2700 = vmatmul.mubr.f32.gmra.mrb[0].mxu0 %v2069
        %v2701 = vpop.f32.mrb[0].mxu0
        %v2702 = vadd.f32 0.0, %v2701
        %v2703 = vpop.f32.mrb[0].mxu0
        %2704 = vmatprep.mubr.f32.mxu0 0.0
        %2705 = vmatmul.mubr.f32.gmra.mrb[0].mxu0 %v2071
        %v2706 = vpop.f32.mrb[0].mxu0
        %v2707 = vadd.f32 0.0, %v2706
        %v2708 = vpop.f32.mrb[0].mxu0
        %2709 = vmatprep.mubr.f32.mxu0 0.0
        %2710 = vmatmul.mubr.f32.gmra.mrb[0].mxu0 %v2073
        %v2711 = vpop.f32.mrb[0].mxu0
        %v2712 = vadd.f32 0.0, %v2711
        %v2713 = vpop.f32.mrb[0].mxu0
        %2714 = vmatprep.mubr.f32.mxu0 0.0
        %2715 = vmatmul.mubr.f32.gmra.mrb[0].mxu0 %v2074
        %v2716 = vpop.f32.mrb[0].mxu0
        %v2717 = vadd.f32 0.0, %v2716
        %v2718 = vpop.f32.mrb[0].mxu0
        %2719 = vmatprep.mubr.f32.mxu0 0.0
        %2720 = vmatmul.mubr.f32.gmra.mrb[0].mxu0 %v1993
        %v2721 = vpop.f32.mrb[0].mxu0
        %v2722 = vadd.f32 0.0, %v2721
        %v2723 = vpop.f32.mrb[0].mxu0
        %2724 = vmatprep.mubr.f32.mxu0 0.0
        %2725 = vmatmul.mubr.f32.gmra.mrb[0].mxu0 %v1995
        %v2726 = vpop.f32.mrb[0].mxu0
        %v2727 = vadd.f32 0.0, %v2726
        %v2728 = vpop.f32.mrb[0].mxu0
        %2729 = vdwg.mxu0
        %v2730 = vadd.f32 %v2402, %v2527
        %v2731 = vadd.f32 %v2403, %v2532
        %v2732 = vadd.f32 %v2404, %v2537
        %v2733 = vadd.f32 %v2405, %v2542
        %v2734 = vadd.f32 %v2406, %v2547
        %v2735 = vadd.f32 %v2407, %v2552
        %v2736 = vadd.f32 %v2408, %v2557
        %v2737 = vadd.f32 %v2409, %v2562
        %v2738 = vadd.f32 %v2410, %v2567
        %v2739 = vadd.f32 %v2411, %v2572
        %v2740 = vadd.f32 %v2412, %v2577
        %v2741 = vadd.f32 %v2413, %v2582
        %v2742 = vadd.f32 %v2414, %v2587
        %v2743 = vadd.f32 %v2415, %v2592
        %v2744 = vadd.f32 %v2416, %v2597
        %v2745 = vadd.f32 %v2417, %v2602
        %v2746 = vadd.f32 %v2418, %v2607
        %v2747 = vadd.f32 %v2419, %v2612
        %v2748 = vadd.f32 %v2420, %v2617
        %v2749 = vadd.f32 %v2421, %v2622
        %v2750 = vadd.f32 %v2422, %v2627
        %v2751 = vadd.f32 %v2423, %v2632
        %v2752 = vadd.f32 %v2424, %v2637
        %v2753 = vadd.f32 %v2425, %v2642
        %v2754 = vadd.f32 %v2426, %v2647
        %v2755 = vadd.f32 %v2427, %v2652
        %v2756 = vadd.f32 %v2428, %v2657
        %v2757 = vadd.f32 %v2429, %v2662
        %v2758 = vadd.f32 %v2430, %v2667
        %v2759 = vadd.f32 %v2431, %v2672
        %v2760 = vadd.f32 %v2432, %v2677
        %v2761 = vadd.f32 %v2433, %v2682
        %v2762 = vadd.f32 %v2434, %v2687
        %v2763 = vadd.f32 %v2435, %v2692
        %v2764 = vadd.f32 %v2436, %v2697
        %v2765 = vadd.f32 %v2437, %v2702
        %v2766 = vadd.f32 %v2438, %v2707
        %v2767 = vadd.f32 %v2439, %v2712
        %v2768 = vadd.f32 %v2440, %v2717
        %v2769 = vadd.f32 %v2441, %v2722
        %v2770 = vadd.f32 %v2442, %v2727
        %s2771 = scalar_lea.vmem [#allocation5], 512
        %v2772 = vld [vmem:[%s2771] sm:$0xff]
        %v2773 = vld [vmem:[%s2771 + $0x8] sm:$0xff]
        %v2774 = vld [vmem:[%s2771 + $0x10] sm:$0xff]
        %v2775 = vld [vmem:[%s2771 + $0x18] sm:$0xff]
        %v2776 = vld [vmem:[%s2771 + $0x20] sm:$0xff]
        %v2777 = vld [vmem:[%s2771 + $0x28] sm:$0xff]
        %v2778 = vld [vmem:[%s2771 + $0x30] sm:$0xff]
        %v2779 = vld [vmem:[%s2771 + $0x38] sm:$0xff]
        %v2780 = vld [vmem:[%s2771 + $0x40] sm:$0xff]
        %v2781 = vld [vmem:[%s2771 + $0x48] sm:$0xff]
        %v2782 = vld [vmem:[%s2771 + $0x50] sm:$0xff]
        %v2783 = vld [vmem:[%s2771 + $0x58] sm:$0xff]
        %v2784 = vld [vmem:[%s2771 + $0x60] sm:$0xff]
        %v2785 = vld [vmem:[%s2771 + $0x68] sm:$0xff]
        %v2786 = vld [vmem:[%s2771 + $0x70] sm:$0xff]
        %v2787 = vld [vmem:[%s2771 + $0x78] sm:$0xff]
        %2788 = vmatprep.subr.mxu0 0.0
        %2789 = vmatpush1.msra.mxu0 %v2772
        %2790 = vmatprep.subr.mxu0 0.0
        %2791 = vmatpush1.msra.mxu0 %v2773
        %2792 = vmatprep.subr.mxu0 0.0
        %2793 = vmatpush1.msra.mxu0 %v2774
        %2794 = vmatprep.subr.mxu0 0.0
        %2795 = vmatpush1.msra.mxu0 %v2775
        %2796 = vmatprep.subr.mxu0 0.0
        %2797 = vmatpush1.msra.mxu0 %v2776
        %2798 = vmatprep.subr.mxu0 0.0
        %2799 = vmatpush1.msra.mxu0 %v2777
        %2800 = vmatprep.subr.mxu0 0.0
        %2801 = vmatpush1.msra.mxu0 %v2778
        %2802 = vmatprep.subr.mxu0 0.0
        %2803 = vmatpush1.msra.mxu0 %v2779
        %2804 = vmatprep.subr.mxu0 0.0
        %2805 = vmatpush1.msra.mxu0 %v2780
        %2806 = vmatprep.subr.mxu0 0.0
        %2807 = vmatpush1.msra.mxu0 %v2781
        %2808 = vmatprep.subr.mxu0 0.0
        %2809 = vmatpush1.msra.mxu0 %v2782
        %2810 = vmatprep.subr.mxu0 0.0
        %2811 = vmatpush1.msra.mxu0 %v2783
        %2812 = vmatprep.subr.mxu0 0.0
        %2813 = vmatpush1.msra.mxu0 %v2784
        %2814 = vmatprep.subr.mxu0 0.0
        %2815 = vmatpush1.msra.mxu0 %v2785
        %2816 = vmatprep.subr.mxu0 0.0
        %2817 = vmatpush1.msra.mxu0 %v2786
        %2818 = vmatprep.subr.mxu0 0.0
        %2819 = vmatpush1.msra.mxu0 %v2787
        %2820 = vmatprep.subr.mxu0 0.0
        %2821 = vmatpush1.msra.mxu0 0.0
        %2822 = vmatprep.subr.mxu0 0.0
        %2823 = vmatpush1.msra.mxu0 0.0
        %2824 = vmatprep.subr.mxu0 0.0
        %2825 = vmatpush1.msra.mxu0 0.0
        %2826 = vmatprep.subr.mxu0 0.0
        %2827 = vmatpush1.msra.mxu0 0.0
        %2828 = vmatprep.subr.mxu0 0.0
        %2829 = vmatpush1.msra.mxu0 0.0
        %2830 = vmatprep.subr.mxu0 0.0
        %2831 = vmatpush1.msra.mxu0 0.0
        %2832 = vmatprep.subr.mxu0 0.0
        %2833 = vmatpush1.msra.mxu0 0.0
        %2834 = vmatprep.subr.mxu0 0.0
        %2835 = vmatpush1.msra.mxu0 0.0
        %2836 = vmatprep.subr.mxu0 0.0
        %2837 = vmatpush1.msra.mxu0 0.0
        %2838 = vmatprep.subr.mxu0 0.0
        %2839 = vmatpush1.msra.mxu0 0.0
        %2840 = vmatprep.subr.mxu0 0.0
        %2841 = vmatpush1.msra.mxu0 0.0
        %2842 = vmatprep.subr.mxu0 0.0
        %2843 = vmatpush1.msra.mxu0 0.0
        %2844 = vmatprep.subr.mxu0 0.0
        %2845 = vmatpush1.msra.mxu0 0.0
        %2846 = vmatprep.subr.mxu0 0.0
        %2847 = vmatpush1.msra.mxu0 0.0
        %2848 = vmatprep.subr.mxu0 0.0
        %2849 = vmatpush1.msra.mxu0 0.0
        %2850 = vmatprep.subr.mxu0 0.0
        %2851 = vmatpush1.msra.mxu0 0.0
        %2852 = vmatprep.mubr.f32.mxu0 0.0
        %2853 = vmatmul.mubr.f32.gmra.mrb[0].mxu0 %v1085
        %v2854 = vpop.f32.mrb[0].mxu0
        %v2855 = vadd.f32 0.0, %v2854
        %v2856 = vpop.f32.mrb[0].mxu0
        %2857 = vmatprep.mubr.f32.mxu0 0.0
        %2858 = vmatmul.mubr.f32.gmra.mrb[0].mxu0 %v1086
        %v2859 = vpop.f32.mrb[0].mxu0
        %v2860 = vadd.f32 0.0, %v2859
        %v2861 = vpop.f32.mrb[0].mxu0
        %2862 = vmatprep.mubr.f32.mxu0 0.0
        %2863 = vmatmul.mubr.f32.gmra.mrb[0].mxu0 %v1087
        %v2864 = vpop.f32.mrb[0].mxu0
        %v2865 = vadd.f32 0.0, %v2864
        %v2866 = vpop.f32.mrb[0].mxu0
        %2867 = vmatprep.mubr.f32.mxu0 0.0
        %2868 = vmatmul.mubr.f32.gmra.mrb[0].mxu0 %v1088
        %v2869 = vpop.f32.mrb[0].mxu0
        %v2870 = vadd.f32 0.0, %v2869
        %v2871 = vpop.f32.mrb[0].mxu0
        %2872 = vmatprep.mubr.f32.mxu0 0.0
        %2873 = vmatmul.mubr.f32.gmra.mrb[0].mxu0 %v1089
        %v2874 = vpop.f32.mrb[0].mxu0
        %v2875 = vadd.f32 0.0, %v2874
        %v2876 = vpop.f32.mrb[0].mxu0
        %2877 = vmatprep.mubr.f32.mxu0 0.0
        %2878 = vmatmul.mubr.f32.gmra.mrb[0].mxu0 %v1090
        %v2879 = vpop.f32.mrb[0].mxu0
        %v2880 = vadd.f32 0.0, %v2879
        %v2881 = vpop.f32.mrb[0].mxu0
        %2882 = vmatprep.mubr.f32.mxu0 0.0
        %2883 = vmatmul.mubr.f32.gmra.mrb[0].mxu0 %v1091
        %v2884 = vpop.f32.mrb[0].mxu0
        %v2885 = vadd.f32 0.0, %v2884
        %v2886 = vpop.f32.mrb[0].mxu0
        %2887 = vmatprep.mubr.f32.mxu0 0.0
        %2888 = vmatmul.mubr.f32.gmra.mrb[0].mxu0 %v1092
        %v2889 = vpop.f32.mrb[0].mxu0
        %v2890 = vadd.f32 0.0, %v2889
        %v2891 = vpop.f32.mrb[0].mxu0
        %2892 = vmatprep.mubr.f32.mxu0 0.0
        %2893 = vmatmul.mubr.f32.gmra.mrb[0].mxu0 %v1093
        %v2894 = vpop.f32.mrb[0].mxu0
        %v2895 = vadd.f32 0.0, %v2894
        %v2896 = vpop.f32.mrb[0].mxu0
        %2897 = vmatprep.mubr.f32.mxu0 0.0
        %2898 = vmatmul.mubr.f32.gmra.mrb[0].mxu0 %v1094
        %v2899 = vpop.f32.mrb[0].mxu0
        %v2900 = vadd.f32 0.0, %v2899
        %v2901 = vpop.f32.mrb[0].mxu0
        %2902 = vmatprep.mubr.f32.mxu0 0.0
        %2903 = vmatmul.mubr.f32.gmra.mrb[0].mxu0 %v1095
        %v2904 = vpop.f32.mrb[0].mxu0
        %v2905 = vadd.f32 0.0, %v2904
        %v2906 = vpop.f32.mrb[0].mxu0
        %2907 = vmatprep.mubr.f32.mxu0 0.0
        %2908 = vmatmul.mubr.f32.gmra.mrb[0].mxu0 %v1096
        %v2909 = vpop.f32.mrb[0].mxu0
        %v2910 = vadd.f32 0.0, %v2909
        %v2911 = vpop.f32.mrb[0].mxu0
        %2912 = vmatprep.mubr.f32.mxu0 0.0
        %2913 = vmatmul.mubr.f32.gmra.mrb[0].mxu0 %v1097
        %v2914 = vpop.f32.mrb[0].mxu0
        %v2915 = vadd.f32 0.0, %v2914
        %v2916 = vpop.f32.mrb[0].mxu0
        %2917 = vmatprep.mubr.f32.mxu0 0.0
        %2918 = vmatmul.mubr.f32.gmra.mrb[0].mxu0 %v1098
        %v2919 = vpop.f32.mrb[0].mxu0
        %v2920 = vadd.f32 0.0, %v2919
        %v2921 = vpop.f32.mrb[0].mxu0
        %2922 = vmatprep.mubr.f32.mxu0 0.0
        %2923 = vmatmul.mubr.f32.gmra.mrb[0].mxu0 %v1099
        %v2924 = vpop.f32.mrb[0].mxu0
        %v2925 = vadd.f32 0.0, %v2924
        %v2926 = vpop.f32.mrb[0].mxu0
        %2927 = vmatprep.mubr.f32.mxu0 0.0
        %2928 = vmatmul.mubr.f32.gmra.mrb[0].mxu0 %v1100
        %v2929 = vpop.f32.mrb[0].mxu0
        %v2930 = vadd.f32 0.0, %v2929
        %v2931 = vpop.f32.mrb[0].mxu0
        %2932 = vmatprep.mubr.f32.mxu0 0.0
        %2933 = vmatmul.mubr.f32.gmra.mrb[0].mxu0 %v1101
        %v2934 = vpop.f32.mrb[0].mxu0
        %v2935 = vadd.f32 0.0, %v2934
        %v2936 = vpop.f32.mrb[0].mxu0
        %2937 = vmatprep.mubr.f32.mxu0 0.0
        %2938 = vmatmul.mubr.f32.gmra.mrb[0].mxu0 %v1102
        %v2939 = vpop.f32.mrb[0].mxu0
        %v2940 = vadd.f32 0.0, %v2939
        %v2941 = vpop.f32.mrb[0].mxu0
        %2942 = vmatprep.mubr.f32.mxu0 0.0
        %2943 = vmatmul.mubr.f32.gmra.mrb[0].mxu0 %v1103
        %v2944 = vpop.f32.mrb[0].mxu0
        %v2945 = vadd.f32 0.0, %v2944
        %v2946 = vpop.f32.mrb[0].mxu0
        %2947 = vmatprep.mubr.f32.mxu0 0.0
        %2948 = vmatmul.mubr.f32.gmra.mrb[0].mxu0 %v1104
        %v2949 = vpop.f32.mrb[0].mxu0
        %v2950 = vadd.f32 0.0, %v2949
        %v2951 = vpop.f32.mrb[0].mxu0
        %2952 = vmatprep.mubr.f32.mxu0 0.0
        %2953 = vmatmul.mubr.f32.gmra.mrb[0].mxu0 %v1105
        %v2954 = vpop.f32.mrb[0].mxu0
        %v2955 = vadd.f32 0.0, %v2954
        %v2956 = vpop.f32.mrb[0].mxu0
        %2957 = vmatprep.mubr.f32.mxu0 0.0
        %2958 = vmatmul.mubr.f32.gmra.mrb[0].mxu0 %v1106
        %v2959 = vpop.f32.mrb[0].mxu0
        %v2960 = vadd.f32 0.0, %v2959
        %v2961 = vpop.f32.mrb[0].mxu0
        %2962 = vmatprep.mubr.f32.mxu0 0.0
        %2963 = vmatmul.mubr.f32.gmra.mrb[0].mxu0 %v1107
        %v2964 = vpop.f32.mrb[0].mxu0
        %v2965 = vadd.f32 0.0, %v2964
        %v2966 = vpop.f32.mrb[0].mxu0
        %2967 = vmatprep.mubr.f32.mxu0 0.0
        %2968 = vmatmul.mubr.f32.gmra.mrb[0].mxu0 %v1108
        %v2969 = vpop.f32.mrb[0].mxu0
        %v2970 = vadd.f32 0.0, %v2969
        %v2971 = vpop.f32.mrb[0].mxu0
        %2972 = vmatprep.mubr.f32.mxu0 0.0
        %2973 = vmatmul.mubr.f32.gmra.mrb[0].mxu0 %v1109
        %v2974 = vpop.f32.mrb[0].mxu0
        %v2975 = vadd.f32 0.0, %v2974
        %v2976 = vpop.f32.mrb[0].mxu0
        %2977 = vmatprep.mubr.f32.mxu0 0.0
        %2978 = vmatmul.mubr.f32.gmra.mrb[0].mxu0 %v1110
        %v2979 = vpop.f32.mrb[0].mxu0
        %v2980 = vadd.f32 0.0, %v2979
        %v2981 = vpop.f32.mrb[0].mxu0
        %2982 = vmatprep.mubr.f32.mxu0 0.0
        %2983 = vmatmul.mubr.f32.gmra.mrb[0].mxu0 %v1111
        %v2984 = vpop.f32.mrb[0].mxu0
        %v2985 = vadd.f32 0.0, %v2984
        %v2986 = vpop.f32.mrb[0].mxu0
        %2987 = vmatprep.mubr.f32.mxu0 0.0
        %2988 = vmatmul.mubr.f32.gmra.mrb[0].mxu0 %v1112
        %v2989 = vpop.f32.mrb[0].mxu0
        %v2990 = vadd.f32 0.0, %v2989
        %v2991 = vpop.f32.mrb[0].mxu0
        %2992 = vmatprep.mubr.f32.mxu0 0.0
        %2993 = vmatmul.mubr.f32.gmra.mrb[0].mxu0 %v1113
        %v2994 = vpop.f32.mrb[0].mxu0
        %v2995 = vadd.f32 0.0, %v2994
        %v2996 = vpop.f32.mrb[0].mxu0
        %2997 = vmatprep.mubr.f32.mxu0 0.0
        %2998 = vmatmul.mubr.f32.gmra.mrb[0].mxu0 %v1114
        %v2999 = vpop.f32.mrb[0].mxu0
        %v3000 = vadd.f32 0.0, %v2999
        %v3001 = vpop.f32.mrb[0].mxu0
        %3002 = vmatprep.mubr.f32.mxu0 0.0
        %3003 = vmatmul.mubr.f32.gmra.mrb[0].mxu0 %v1115
        %v3004 = vpop.f32.mrb[0].mxu0
        %v3005 = vadd.f32 0.0, %v3004
        %v3006 = vpop.f32.mrb[0].mxu0
        %3007 = vmatprep.mubr.f32.mxu0 0.0
        %3008 = vmatmul.mubr.f32.gmra.mrb[0].mxu0 %v1116
        %v3009 = vpop.f32.mrb[0].mxu0
        %v3010 = vadd.f32 0.0, %v3009
        %v3011 = vpop.f32.mrb[0].mxu0
        %3012 = vmatprep.mubr.f32.mxu0 0.0
        %3013 = vmatmul.mubr.f32.gmra.mrb[0].mxu0 %v1117
        %v3014 = vpop.f32.mrb[0].mxu0
        %v3015 = vadd.f32 0.0, %v3014
        %v3016 = vpop.f32.mrb[0].mxu0
        %3017 = vmatprep.mubr.f32.mxu0 0.0
        %3018 = vmatmul.mubr.f32.gmra.mrb[0].mxu0 %v1118
        %v3019 = vpop.f32.mrb[0].mxu0
        %v3020 = vadd.f32 0.0, %v3019
        %v3021 = vpop.f32.mrb[0].mxu0
        %3022 = vmatprep.mubr.f32.mxu0 0.0
        %3023 = vmatmul.mubr.f32.gmra.mrb[0].mxu0 %v1119
        %v3024 = vpop.f32.mrb[0].mxu0
        %v3025 = vadd.f32 0.0, %v3024
        %v3026 = vpop.f32.mrb[0].mxu0
        %3027 = vmatprep.mubr.f32.mxu0 0.0
        %3028 = vmatmul.mubr.f32.gmra.mrb[0].mxu0 %v1120
        %v3029 = vpop.f32.mrb[0].mxu0
        %v3030 = vadd.f32 0.0, %v3029
        %v3031 = vpop.f32.mrb[0].mxu0
        %3032 = vmatprep.mubr.f32.mxu0 0.0
        %3033 = vmatmul.mubr.f32.gmra.mrb[0].mxu0 %v1121
        %v3034 = vpop.f32.mrb[0].mxu0
        %v3035 = vadd.f32 0.0, %v3034
        %v3036 = vpop.f32.mrb[0].mxu0
        %3037 = vmatprep.mubr.f32.mxu0 0.0
        %3038 = vmatmul.mubr.f32.gmra.mrb[0].mxu0 %v1122
        %v3039 = vpop.f32.mrb[0].mxu0
        %v3040 = vadd.f32 0.0, %v3039
        %v3041 = vpop.f32.mrb[0].mxu0
        %3042 = vmatprep.mubr.f32.mxu0 0.0
        %3043 = vmatmul.mubr.f32.gmra.mrb[0].mxu0 %v1123
        %v3044 = vpop.f32.mrb[0].mxu0
        %v3045 = vadd.f32 0.0, %v3044
        %v3046 = vpop.f32.mrb[0].mxu0
        %3047 = vmatprep.mubr.f32.mxu0 0.0
        %3048 = vmatmul.mubr.f32.gmra.mrb[0].mxu0 %v1124
        %v3049 = vpop.f32.mrb[0].mxu0
        %v3050 = vadd.f32 0.0, %v3049
        %v3051 = vpop.f32.mrb[0].mxu0
        %3052 = vmatprep.mubr.f32.mxu0 0.0
        %3053 = vmatmul.mubr.f32.gmra.mrb[0].mxu0 %v1125
        %v3054 = vpop.f32.mrb[0].mxu0
        %v3055 = vadd.f32 0.0, %v3054
        %v3056 = vpop.f32.mrb[0].mxu0
        %3057 = vdwg.mxu0
        %v3058 = vadd.f32 %v2730, %v2855
        %v3059 = vadd.f32 %v2731, %v2860
        %v3060 = vadd.f32 %v2732, %v2865
        %v3061 = vadd.f32 %v2733, %v2870
        %v3062 = vadd.f32 %v2734, %v2875
        %v3063 = vadd.f32 %v2735, %v2880
        %v3064 = vadd.f32 %v2736, %v2885
        %v3065 = vadd.f32 %v2737, %v2890
        %v3066 = vadd.f32 %v2738, %v2895
        %v3067 = vadd.f32 %v2739, %v2900
        %v3068 = vadd.f32 %v2740, %v2905
        %v3069 = vadd.f32 %v2741, %v2910
        %v3070 = vadd.f32 %v2742, %v2915
        %v3071 = vadd.f32 %v2743, %v2920
        %v3072 = vadd.f32 %v2744, %v2925
        %v3073 = vadd.f32 %v2745, %v2930
        %v3074 = vadd.f32 %v2746, %v2935
        %v3075 = vadd.f32 %v2747, %v2940
        %v3076 = vadd.f32 %v2748, %v2945
        %v3077 = vadd.f32 %v2749, %v2950
        %v3078 = vadd.f32 %v2750, %v2955
        %v3079 = vadd.f32 %v2751, %v2960
        %v3080 = vadd.f32 %v2752, %v2965
        %v3081 = vadd.f32 %v2753, %v2970
        %v3082 = vadd.f32 %v2754, %v2975
        %v3083 = vadd.f32 %v2755, %v2980
        %v3084 = vadd.f32 %v2756, %v2985
        %v3085 = vadd.f32 %v2757, %v2990
        %v3086 = vadd.f32 %v2758, %v2995
        %v3087 = vadd.f32 %v2759, %v3000
        %v3088 = vadd.f32 %v2760, %v3005
        %v3089 = vadd.f32 %v2761, %v3010
        %v3090 = vadd.f32 %v2762, %v3015
        %v3091 = vadd.f32 %v2763, %v3020
        %v3092 = vadd.f32 %v2764, %v3025
        %v3093 = vadd.f32 %v2765, %v3030
        %v3094 = vadd.f32 %v2766, %v3035
        %v3095 = vadd.f32 %v2767, %v3040
        %v3096 = vadd.f32 %v2768, %v3045
        %v3097 = vadd.f32 %v2769, %v3050
        %v3098 = vadd.f32 %v2770, %v3055
        %vm3099 = vcmask 1046528
        %v3100 = vrot.slane %v1085, 1
        %v3101 = vrot.slane %v1086, 1
        %v3102 = vsel %vm3099, %v3100, %v3101
        %v3103 = vrot.slane %v1087, 1
        %v3104 = vsel %vm3099, %v3101, %v3103
        %v3105 = vrot.slane %v1088, 1
        %v3106 = vsel %vm3099, %v3103, %v3105
        %v3107 = vrot.slane %v1089, 1
        %v3108 = vsel %vm3099, %v3105, %v3107
        %v3109 = vrot.slane %v1090, 1
        %v3110 = vsel %vm3099, %v3107, %v3109
        %v3111 = vrot.slane %v1091, 1
        %v3112 = vsel %vm3099, %v3109, %v3111
        %v3113 = vrot.slane %v1092, 1
        %v3114 = vsel %vm3099, %v3111, %v3113
        %v3115 = vrot.slane %v1093, 1
        %v3116 = vsel %vm3099, %v3113, %v3115
        %v3117 = vrot.slane %v1094, 1
        %v3118 = vsel %vm3099, %v3115, %v3117
        %v3119 = vrot.slane %v1095, 1
        %v3120 = vsel %vm3099, %v3117, %v3119
        %v3121 = vrot.slane %v1096, 1
        %v3122 = vsel %vm3099, %v3119, %v3121
        %v3123 = vrot.slane %v1097, 1
        %v3124 = vsel %vm3099, %v3121, %v3123
        %v3125 = vrot.slane %v1098, 1
        %v3126 = vsel %vm3099, %v3123, %v3125
        %v3127 = vrot.slane %v1099, 1
        %v3128 = vsel %vm3099, %v3125, %v3127
        %v3129 = vrot.slane %v1100, 1
        %v3130 = vsel %vm3099, %v3127, %v3129
        %v3131 = vrot.slane %v1101, 1
        %v3132 = vsel %vm3099, %v3129, %v3131
        %v3133 = vrot.slane %v1102, 1
        %v3134 = vsel %vm3099, %v3131, %v3133
        %v3135 = vrot.slane %v1103, 1
        %v3136 = vsel %vm3099, %v3133, %v3135
        %v3137 = vrot.slane %v1104, 1
        %v3138 = vsel %vm3099, %v3135, %v3137
        %v3139 = vrot.slane %v1105, 1
        %v3140 = vsel %vm3099, %v3137, %v3139
        %v3141 = vrot.slane %v1106, 1
        %v3142 = vsel %vm3099, %v3139, %v3141
        %v3143 = vrot.slane %v1107, 1
        %v3144 = vsel %vm3099, %v3141, %v3143
        %v3145 = vrot.slane %v1108, 1
        %v3146 = vsel %vm3099, %v3143, %v3145
        %v3147 = vrot.slane %v1109, 1
        %v3148 = vsel %vm3099, %v3145, %v3147
        %v3149 = vrot.slane %v1110, 1
        %v3150 = vsel %vm3099, %v3147, %v3149
        %v3151 = vrot.slane %v1111, 1
        %v3152 = vsel %vm3099, %v3149, %v3151
        %v3153 = vrot.slane %v1112, 1
        %v3154 = vsel %vm3099, %v3151, %v3153
        %v3155 = vrot.slane %v1113, 1
        %v3156 = vsel %vm3099, %v3153, %v3155
        %v3157 = vrot.slane %v1114, 1
        %v3158 = vsel %vm3099, %v3155, %v3157
        %v3159 = vrot.slane %v1115, 1
        %v3160 = vsel %vm3099, %v3157, %v3159
        %v3161 = vrot.slane %v1116, 1
        %v3162 = vsel %vm3099, %v3159, %v3161
        %v3163 = vrot.slane %v1117, 1
        %v3164 = vsel %vm3099, %v3161, %v3163
        %v3165 = vrot.slane %v1118, 1
        %v3166 = vsel %vm3099, %v3163, %v3165
        %v3167 = vrot.slane %v1119, 1
        %v3168 = vsel %vm3099, %v3165, %v3167
        %v3169 = vrot.slane %v1120, 1
        %v3170 = vsel %vm3099, %v3167, %v3169
        %v3171 = vrot.slane %v1121, 1
        %v3172 = vsel %vm3099, %v3169, %v3171
        %v3173 = vrot.slane %v1122, 1
        %v3174 = vsel %vm3099, %v3171, %v3173
        %v3175 = vrot.slane %v1123, 1
        %v3176 = vsel %vm3099, %v3173, %v3175
        %v3177 = vrot.slane %v1124, 1
        %v3178 = vsel %vm3099, %v3175, %v3177
        %v3179 = vrot.slane %v1125, 1
        %v3180 = vsel %vm3099, %v3177, %v3179
        %v3223 = vsel %vm3099, %v3179, %v3100
        %s3224 = scalar_lea.vmem [#allocation5], 640
        %v3225 = vld [vmem:[%s3224] sm:$0xff]
        %v3226 = vld [vmem:[%s3224 + $0x8] sm:$0xff]
        %v3227 = vld [vmem:[%s3224 + $0x10] sm:$0xff]
        %v3228 = vld [vmem:[%s3224 + $0x18] sm:$0xff]
        %v3229 = vld [vmem:[%s3224 + $0x20] sm:$0xff]
        %v3230 = vld [vmem:[%s3224 + $0x28] sm:$0xff]
        %v3231 = vld [vmem:[%s3224 + $0x30] sm:$0xff]
        %v3232 = vld [vmem:[%s3224 + $0x38] sm:$0xff]
        %v3233 = vld [vmem:[%s3224 + $0x40] sm:$0xff]
        %v3234 = vld [vmem:[%s3224 + $0x48] sm:$0xff]
        %v3235 = vld [vmem:[%s3224 + $0x50] sm:$0xff]
        %v3236 = vld [vmem:[%s3224 + $0x58] sm:$0xff]
        %v3237 = vld [vmem:[%s3224 + $0x60] sm:$0xff]
        %v3238 = vld [vmem:[%s3224 + $0x68] sm:$0xff]
        %v3239 = vld [vmem:[%s3224 + $0x70] sm:$0xff]
        %v3240 = vld [vmem:[%s3224 + $0x78] sm:$0xff]
        %3241 = vmatprep.subr.mxu0 0.0
        %3242 = vmatpush1.msra.mxu0 %v3225
        %3243 = vmatprep.subr.mxu0 0.0
        %3244 = vmatpush1.msra.mxu0 %v3226
        %3245 = vmatprep.subr.mxu0 0.0
        %3246 = vmatpush1.msra.mxu0 %v3227
        %3247 = vmatprep.subr.mxu0 0.0
        %3248 = vmatpush1.msra.mxu0 %v3228
        %3249 = vmatprep.subr.mxu0 0.0
        %3250 = vmatpush1.msra.mxu0 %v3229
        %3251 = vmatprep.subr.mxu0 0.0
        %3252 = vmatpush1.msra.mxu0 %v3230
        %3253 = vmatprep.subr.mxu0 0.0
        %3254 = vmatpush1.msra.mxu0 %v3231
        %3255 = vmatprep.subr.mxu0 0.0
        %3256 = vmatpush1.msra.mxu0 %v3232
        %3257 = vmatprep.subr.mxu0 0.0
        %3258 = vmatpush1.msra.mxu0 %v3233
        %3259 = vmatprep.subr.mxu0 0.0
        %3260 = vmatpush1.msra.mxu0 %v3234
        %3261 = vmatprep.subr.mxu0 0.0
        %3262 = vmatpush1.msra.mxu0 %v3235
        %3263 = vmatprep.subr.mxu0 0.0
        %3264 = vmatpush1.msra.mxu0 %v3236
        %3265 = vmatprep.subr.mxu0 0.0
        %3266 = vmatpush1.msra.mxu0 %v3237
        %3267 = vmatprep.subr.mxu0 0.0
        %3268 = vmatpush1.msra.mxu0 %v3238
        %3269 = vmatprep.subr.mxu0 0.0
        %3270 = vmatpush1.msra.mxu0 %v3239
        %3271 = vmatprep.subr.mxu0 0.0
        %3272 = vmatpush1.msra.mxu0 %v3240
        %3273 = vmatprep.subr.mxu0 0.0
        %3274 = vmatpush1.msra.mxu0 0.0
        %3275 = vmatprep.subr.mxu0 0.0
        %3276 = vmatpush1.msra.mxu0 0.0
        %3277 = vmatprep.subr.mxu0 0.0
        %3278 = vmatpush1.msra.mxu0 0.0
        %3279 = vmatprep.subr.mxu0 0.0
        %3280 = vmatpush1.msra.mxu0 0.0
        %3281 = vmatprep.subr.mxu0 0.0
        %3282 = vmatpush1.msra.mxu0 0.0
        %3283 = vmatprep.subr.mxu0 0.0
        %3284 = vmatpush1.msra.mxu0 0.0
        %3285 = vmatprep.subr.mxu0 0.0
        %3286 = vmatpush1.msra.mxu0 0.0
        %3287 = vmatprep.subr.mxu0 0.0
        %3288 = vmatpush1.msra.mxu0 0.0
        %3289 = vmatprep.subr.mxu0 0.0
        %3290 = vmatpush1.msra.mxu0 0.0
        %3291 = vmatprep.subr.mxu0 0.0
        %3292 = vmatpush1.msra.mxu0 0.0
        %3293 = vmatprep.subr.mxu0 0.0
        %3294 = vmatpush1.msra.mxu0 0.0
        %3295 = vmatprep.subr.mxu0 0.0
        %3296 = vmatpush1.msra.mxu0 0.0
        %3297 = vmatprep.subr.mxu0 0.0
        %3298 = vmatpush1.msra.mxu0 0.0
        %3299 = vmatprep.subr.mxu0 0.0
        %3300 = vmatpush1.msra.mxu0 0.0
        %3301 = vmatprep.subr.mxu0 0.0
        %3302 = vmatpush1.msra.mxu0 0.0
        %3303 = vmatprep.subr.mxu0 0.0
        %3304 = vmatpush1.msra.mxu0 0.0
        %3305 = vmatprep.mubr.f32.mxu0 0.0
        %3306 = vmatmul.mubr.f32.gmra.mrb[0].mxu0 %v3102
        %v3307 = vpop.f32.mrb[0].mxu0
        %v3308 = vadd.f32 0.0, %v3307
        %v3309 = vpop.f32.mrb[0].mxu0
        %3310 = vmatprep.mubr.f32.mxu0 0.0
        %3311 = vmatmul.mubr.f32.gmra.mrb[0].mxu0 %v3104
        %v3312 = vpop.f32.mrb[0].mxu0
        %v3313 = vadd.f32 0.0, %v3312
        %v3314 = vpop.f32.mrb[0].mxu0
        %3315 = vmatprep.mubr.f32.mxu0 0.0
        %3316 = vmatmul.mubr.f32.gmra.mrb[0].mxu0 %v3106
        %v3317 = vpop.f32.mrb[0].mxu0
        %v3318 = vadd.f32 0.0, %v3317
        %v3319 = vpop.f32.mrb[0].mxu0
        %3320 = vmatprep.mubr.f32.mxu0 0.0
        %3321 = vmatmul.mubr.f32.gmra.mrb[0].mxu0 %v3108
        %v3322 = vpop.f32.mrb[0].mxu0
        %v3323 = vadd.f32 0.0, %v3322
        %v3324 = vpop.f32.mrb[0].mxu0
        %3325 = vmatprep.mubr.f32.mxu0 0.0
        %3326 = vmatmul.mubr.f32.gmra.mrb[0].mxu0 %v3110
        %v3327 = vpop.f32.mrb[0].mxu0
        %v3328 = vadd.f32 0.0, %v3327
        %v3329 = vpop.f32.mrb[0].mxu0
        %3330 = vmatprep.mubr.f32.mxu0 0.0
        %3331 = vmatmul.mubr.f32.gmra.mrb[0].mxu0 %v3112
        %v3332 = vpop.f32.mrb[0].mxu0
        %v3333 = vadd.f32 0.0, %v3332
        %v3334 = vpop.f32.mrb[0].mxu0
        %3335 = vmatprep.mubr.f32.mxu0 0.0
        %3336 = vmatmul.mubr.f32.gmra.mrb[0].mxu0 %v3114
        %v3337 = vpop.f32.mrb[0].mxu0
        %v3338 = vadd.f32 0.0, %v3337
        %v3339 = vpop.f32.mrb[0].mxu0
        %3340 = vmatprep.mubr.f32.mxu0 0.0
        %3341 = vmatmul.mubr.f32.gmra.mrb[0].mxu0 %v3116
        %v3342 = vpop.f32.mrb[0].mxu0
        %v3343 = vadd.f32 0.0, %v3342
        %v3344 = vpop.f32.mrb[0].mxu0
        %3345 = vmatprep.mubr.f32.mxu0 0.0
        %3346 = vmatmul.mubr.f32.gmra.mrb[0].mxu0 %v3118
        %v3347 = vpop.f32.mrb[0].mxu0
        %v3348 = vadd.f32 0.0, %v3347
        %v3349 = vpop.f32.mrb[0].mxu0
        %3350 = vmatprep.mubr.f32.mxu0 0.0
        %3351 = vmatmul.mubr.f32.gmra.mrb[0].mxu0 %v3120
        %v3352 = vpop.f32.mrb[0].mxu0
        %v3353 = vadd.f32 0.0, %v3352
        %v3354 = vpop.f32.mrb[0].mxu0
        %3355 = vmatprep.mubr.f32.mxu0 0.0
        %3356 = vmatmul.mubr.f32.gmra.mrb[0].mxu0 %v3122
        %v3357 = vpop.f32.mrb[0].mxu0
        %v3358 = vadd.f32 0.0, %v3357
        %v3359 = vpop.f32.mrb[0].mxu0
        %3360 = vmatprep.mubr.f32.mxu0 0.0
        %3361 = vmatmul.mubr.f32.gmra.mrb[0].mxu0 %v3124
        %v3362 = vpop.f32.mrb[0].mxu0
        %v3363 = vadd.f32 0.0, %v3362
        %v3364 = vpop.f32.mrb[0].mxu0
        %3365 = vmatprep.mubr.f32.mxu0 0.0
        %3366 = vmatmul.mubr.f32.gmra.mrb[0].mxu0 %v3126
        %v3367 = vpop.f32.mrb[0].mxu0
        %v3368 = vadd.f32 0.0, %v3367
        %v3369 = vpop.f32.mrb[0].mxu0
        %3370 = vmatprep.mubr.f32.mxu0 0.0
        %3371 = vmatmul.mubr.f32.gmra.mrb[0].mxu0 %v3128
        %v3372 = vpop.f32.mrb[0].mxu0
        %v3373 = vadd.f32 0.0, %v3372
        %v3374 = vpop.f32.mrb[0].mxu0
        %3375 = vmatprep.mubr.f32.mxu0 0.0
        %3376 = vmatmul.mubr.f32.gmra.mrb[0].mxu0 %v3130
        %v3377 = vpop.f32.mrb[0].mxu0
        %v3378 = vadd.f32 0.0, %v3377
        %v3379 = vpop.f32.mrb[0].mxu0
        %3380 = vmatprep.mubr.f32.mxu0 0.0
        %3381 = vmatmul.mubr.f32.gmra.mrb[0].mxu0 %v3132
        %v3382 = vpop.f32.mrb[0].mxu0
        %v3383 = vadd.f32 0.0, %v3382
        %v3384 = vpop.f32.mrb[0].mxu0
        %3385 = vmatprep.mubr.f32.mxu0 0.0
        %3386 = vmatmul.mubr.f32.gmra.mrb[0].mxu0 %v3134
        %v3387 = vpop.f32.mrb[0].mxu0
        %v3388 = vadd.f32 0.0, %v3387
        %v3389 = vpop.f32.mrb[0].mxu0
        %3390 = vmatprep.mubr.f32.mxu0 0.0
        %3391 = vmatmul.mubr.f32.gmra.mrb[0].mxu0 %v3136
        %v3392 = vpop.f32.mrb[0].mxu0
        %v3393 = vadd.f32 0.0, %v3392
        %v3394 = vpop.f32.mrb[0].mxu0
        %3395 = vmatprep.mubr.f32.mxu0 0.0
        %3396 = vmatmul.mubr.f32.gmra.mrb[0].mxu0 %v3138
        %v3397 = vpop.f32.mrb[0].mxu0
        %v3398 = vadd.f32 0.0, %v3397
        %v3399 = vpop.f32.mrb[0].mxu0
        %3400 = vmatprep.mubr.f32.mxu0 0.0
        %3401 = vmatmul.mubr.f32.gmra.mrb[0].mxu0 %v3140
        %v3402 = vpop.f32.mrb[0].mxu0
        %v3403 = vadd.f32 0.0, %v3402
        %v3404 = vpop.f32.mrb[0].mxu0
        %3405 = vmatprep.mubr.f32.mxu0 0.0
        %3406 = vmatmul.mubr.f32.gmra.mrb[0].mxu0 %v3142
        %v3407 = vpop.f32.mrb[0].mxu0
        %v3408 = vadd.f32 0.0, %v3407
        %v3409 = vpop.f32.mrb[0].mxu0
        %3410 = vmatprep.mubr.f32.mxu0 0.0
        %3411 = vmatmul.mubr.f32.gmra.mrb[0].mxu0 %v3144
        %v3412 = vpop.f32.mrb[0].mxu0
        %v3413 = vadd.f32 0.0, %v3412
        %v3414 = vpop.f32.mrb[0].mxu0
        %3415 = vmatprep.mubr.f32.mxu0 0.0
        %3416 = vmatmul.mubr.f32.gmra.mrb[0].mxu0 %v3146
        %v3417 = vpop.f32.mrb[0].mxu0
        %v3418 = vadd.f32 0.0, %v3417
        %v3419 = vpop.f32.mrb[0].mxu0
        %3420 = vmatprep.mubr.f32.mxu0 0.0
        %3421 = vmatmul.mubr.f32.gmra.mrb[0].mxu0 %v3148
        %v3422 = vpop.f32.mrb[0].mxu0
        %v3423 = vadd.f32 0.0, %v3422
        %v3424 = vpop.f32.mrb[0].mxu0
        %3425 = vmatprep.mubr.f32.mxu0 0.0
        %3426 = vmatmul.mubr.f32.gmra.mrb[0].mxu0 %v3150
        %v3427 = vpop.f32.mrb[0].mxu0
        %v3428 = vadd.f32 0.0, %v3427
        %v3429 = vpop.f32.mrb[0].mxu0
        %3430 = vmatprep.mubr.f32.mxu0 0.0
        %3431 = vmatmul.mubr.f32.gmra.mrb[0].mxu0 %v3152
        %v3432 = vpop.f32.mrb[0].mxu0
        %v3433 = vadd.f32 0.0, %v3432
        %v3434 = vpop.f32.mrb[0].mxu0
        %3435 = vmatprep.mubr.f32.mxu0 0.0
        %3436 = vmatmul.mubr.f32.gmra.mrb[0].mxu0 %v3154
        %v3437 = vpop.f32.mrb[0].mxu0
        %v3438 = vadd.f32 0.0, %v3437
        %v3439 = vpop.f32.mrb[0].mxu0
        %3440 = vmatprep.mubr.f32.mxu0 0.0
        %3441 = vmatmul.mubr.f32.gmra.mrb[0].mxu0 %v3156
        %v3442 = vpop.f32.mrb[0].mxu0
        %v3443 = vadd.f32 0.0, %v3442
        %v3444 = vpop.f32.mrb[0].mxu0
        %3445 = vmatprep.mubr.f32.mxu0 0.0
        %3446 = vmatmul.mubr.f32.gmra.mrb[0].mxu0 %v3158
        %v3447 = vpop.f32.mrb[0].mxu0
        %v3448 = vadd.f32 0.0, %v3447
        %v3449 = vpop.f32.mrb[0].mxu0
        %3450 = vmatprep.mubr.f32.mxu0 0.0
        %3451 = vmatmul.mubr.f32.gmra.mrb[0].mxu0 %v3160
        %v3452 = vpop.f32.mrb[0].mxu0
        %v3453 = vadd.f32 0.0, %v3452
        %v3454 = vpop.f32.mrb[0].mxu0
        %3455 = vmatprep.mubr.f32.mxu0 0.0
        %3456 = vmatmul.mubr.f32.gmra.mrb[0].mxu0 %v3162
        %v3457 = vpop.f32.mrb[0].mxu0
        %v3458 = vadd.f32 0.0, %v3457
        %v3459 = vpop.f32.mrb[0].mxu0
        %3460 = vmatprep.mubr.f32.mxu0 0.0
        %3461 = vmatmul.mubr.f32.gmra.mrb[0].mxu0 %v3164
        %v3462 = vpop.f32.mrb[0].mxu0
        %v3463 = vadd.f32 0.0, %v3462
        %v3464 = vpop.f32.mrb[0].mxu0
        %3465 = vmatprep.mubr.f32.mxu0 0.0
        %3466 = vmatmul.mubr.f32.gmra.mrb[0].mxu0 %v3166
        %v3467 = vpop.f32.mrb[0].mxu0
        %v3468 = vadd.f32 0.0, %v3467
        %v3469 = vpop.f32.mrb[0].mxu0
        %3470 = vmatprep.mubr.f32.mxu0 0.0
        %3471 = vmatmul.mubr.f32.gmra.mrb[0].mxu0 %v3168
        %v3472 = vpop.f32.mrb[0].mxu0
        %v3473 = vadd.f32 0.0, %v3472
        %v3474 = vpop.f32.mrb[0].mxu0
        %3475 = vmatprep.mubr.f32.mxu0 0.0
        %3476 = vmatmul.mubr.f32.gmra.mrb[0].mxu0 %v3170
        %v3477 = vpop.f32.mrb[0].mxu0
        %v3478 = vadd.f32 0.0, %v3477
        %v3479 = vpop.f32.mrb[0].mxu0
        %3480 = vmatprep.mubr.f32.mxu0 0.0
        %3481 = vmatmul.mubr.f32.gmra.mrb[0].mxu0 %v3172
        %v3482 = vpop.f32.mrb[0].mxu0
        %v3483 = vadd.f32 0.0, %v3482
        %v3484 = vpop.f32.mrb[0].mxu0
        %3485 = vmatprep.mubr.f32.mxu0 0.0
        %3486 = vmatmul.mubr.f32.gmra.mrb[0].mxu0 %v3174
        %v3487 = vpop.f32.mrb[0].mxu0
        %v3488 = vadd.f32 0.0, %v3487
        %v3489 = vpop.f32.mrb[0].mxu0
        %3490 = vmatprep.mubr.f32.mxu0 0.0
        %3491 = vmatmul.mubr.f32.gmra.mrb[0].mxu0 %v3176
        %v3492 = vpop.f32.mrb[0].mxu0
        %v3493 = vadd.f32 0.0, %v3492
        %v3494 = vpop.f32.mrb[0].mxu0
        %3495 = vmatprep.mubr.f32.mxu0 0.0
        %3496 = vmatmul.mubr.f32.gmra.mrb[0].mxu0 %v3178
        %v3497 = vpop.f32.mrb[0].mxu0
        %v3498 = vadd.f32 0.0, %v3497
        %v3499 = vpop.f32.mrb[0].mxu0
        %3500 = vmatprep.mubr.f32.mxu0 0.0
        %3501 = vmatmul.mubr.f32.gmra.mrb[0].mxu0 %v3180
        %v3502 = vpop.f32.mrb[0].mxu0
        %v3503 = vadd.f32 0.0, %v3502
        %v3504 = vpop.f32.mrb[0].mxu0
        %3505 = vmatprep.mubr.f32.mxu0 0.0
        %3506 = vmatmul.mubr.f32.gmra.mrb[0].mxu0 %v3223
        %v3507 = vpop.f32.mrb[0].mxu0
        %v3508 = vadd.f32 0.0, %v3507
        %v3509 = vpop.f32.mrb[0].mxu0
        %3510 = vdwg.mxu0
        %v3511 = vadd.f32 %v3058, %v3308
        %v3512 = vadd.f32 %v3059, %v3313
        %v3513 = vadd.f32 %v3060, %v3318
        %v3514 = vadd.f32 %v3061, %v3323
        %v3515 = vadd.f32 %v3062, %v3328
        %v3516 = vadd.f32 %v3063, %v3333
        %v3517 = vadd.f32 %v3064, %v3338
        %v3518 = vadd.f32 %v3065, %v3343
        %v3519 = vadd.f32 %v3066, %v3348
        %v3520 = vadd.f32 %v3067, %v3353
        %v3521 = vadd.f32 %v3068, %v3358
        %v3522 = vadd.f32 %v3069, %v3363
        %v3523 = vadd.f32 %v3070, %v3368
        %v3524 = vadd.f32 %v3071, %v3373
        %v3525 = vadd.f32 %v3072, %v3378
        %v3526 = vadd.f32 %v3073, %v3383
        %v3527 = vadd.f32 %v3074, %v3388
        %v3528 = vadd.f32 %v3075, %v3393
        %v3529 = vadd.f32 %v3076, %v3398
        %v3530 = vadd.f32 %v3077, %v3403
        %v3531 = vadd.f32 %v3078, %v3408
        %v3532 = vadd.f32 %v3079, %v3413
        %v3533 = vadd.f32 %v3080, %v3418
        %v3534 = vadd.f32 %v3081, %v3423
        %v3535 = vadd.f32 %v3082, %v3428
        %v3536 = vadd.f32 %v3083, %v3433
        %v3537 = vadd.f32 %v3084, %v3438
        %v3538 = vadd.f32 %v3085, %v3443
        %v3539 = vadd.f32 %v3086, %v3448
        %v3540 = vadd.f32 %v3087, %v3453
        %v3541 = vadd.f32 %v3088, %v3458
        %v3542 = vadd.f32 %v3089, %v3463
        %v3543 = vadd.f32 %v3090, %v3468
        %v3544 = vadd.f32 %v3091, %v3473
        %v3545 = vadd.f32 %v3092, %v3478
        %v3546 = vadd.f32 %v3093, %v3483
        %v3547 = vadd.f32 %v3094, %v3488
        %v3548 = vadd.f32 %v3095, %v3493
        %v3549 = vadd.f32 %v3096, %v3498
        %v3550 = vadd.f32 %v3097, %v3503
        %v3551 = vadd.f32 %v3098, %v3508
        %s3552 = scalar_lea.vmem [#allocation5], 768
        %v3553 = vld [vmem:[%s3552] sm:$0xff]
        %v3554 = vld [vmem:[%s3552 + $0x8] sm:$0xff]
        %v3555 = vld [vmem:[%s3552 + $0x10] sm:$0xff]
        %v3556 = vld [vmem:[%s3552 + $0x18] sm:$0xff]
        %v3557 = vld [vmem:[%s3552 + $0x20] sm:$0xff]
        %v3558 = vld [vmem:[%s3552 + $0x28] sm:$0xff]
        %v3559 = vld [vmem:[%s3552 + $0x30] sm:$0xff]
        %v3560 = vld [vmem:[%s3552 + $0x38] sm:$0xff]
        %v3561 = vld [vmem:[%s3552 + $0x40] sm:$0xff]
        %v3562 = vld [vmem:[%s3552 + $0x48] sm:$0xff]
        %v3563 = vld [vmem:[%s3552 + $0x50] sm:$0xff]
        %v3564 = vld [vmem:[%s3552 + $0x58] sm:$0xff]
        %v3565 = vld [vmem:[%s3552 + $0x60] sm:$0xff]
        %v3566 = vld [vmem:[%s3552 + $0x68] sm:$0xff]
        %v3567 = vld [vmem:[%s3552 + $0x70] sm:$0xff]
        %v3568 = vld [vmem:[%s3552 + $0x78] sm:$0xff]
        %3569 = vmatprep.subr.mxu0 0.0
        %3570 = vmatpush1.msra.mxu0 %v3553
        %3571 = vmatprep.subr.mxu0 0.0
        %3572 = vmatpush1.msra.mxu0 %v3554
        %3573 = vmatprep.subr.mxu0 0.0
        %3574 = vmatpush1.msra.mxu0 %v3555
        %3575 = vmatprep.subr.mxu0 0.0
        %3576 = vmatpush1.msra.mxu0 %v3556
        %3577 = vmatprep.subr.mxu0 0.0
        %3578 = vmatpush1.msra.mxu0 %v3557
        %3579 = vmatprep.subr.mxu0 0.0
        %3580 = vmatpush1.msra.mxu0 %v3558
        %3581 = vmatprep.subr.mxu0 0.0
        %3582 = vmatpush1.msra.mxu0 %v3559
        %3583 = vmatprep.subr.mxu0 0.0
        %3584 = vmatpush1.msra.mxu0 %v3560
        %3585 = vmatprep.subr.mxu0 0.0
        %3586 = vmatpush1.msra.mxu0 %v3561
        %3587 = vmatprep.subr.mxu0 0.0
        %3588 = vmatpush1.msra.mxu0 %v3562
        %3589 = vmatprep.subr.mxu0 0.0
        %3590 = vmatpush1.msra.mxu0 %v3563
        %3591 = vmatprep.subr.mxu0 0.0
        %3592 = vmatpush1.msra.mxu0 %v3564
        %3593 = vmatprep.subr.mxu0 0.0
        %3594 = vmatpush1.msra.mxu0 %v3565
        %3595 = vmatprep.subr.mxu0 0.0
        %3596 = vmatpush1.msra.mxu0 %v3566
        %3597 = vmatprep.subr.mxu0 0.0
        %3598 = vmatpush1.msra.mxu0 %v3567
        %3599 = vmatprep.subr.mxu0 0.0
        %3600 = vmatpush1.msra.mxu0 %v3568
        %3601 = vmatprep.subr.mxu0 0.0
        %3602 = vmatpush1.msra.mxu0 0.0
        %3603 = vmatprep.subr.mxu0 0.0
        %3604 = vmatpush1.msra.mxu0 0.0
        %3605 = vmatprep.subr.mxu0 0.0
        %3606 = vmatpush1.msra.mxu0 0.0
        %3607 = vmatprep.subr.mxu0 0.0
        %3608 = vmatpush1.msra.mxu0 0.0
        %3609 = vmatprep.subr.mxu0 0.0
        %3610 = vmatpush1.msra.mxu0 0.0
        %3611 = vmatprep.subr.mxu0 0.0
        %3612 = vmatpush1.msra.mxu0 0.0
        %3613 = vmatprep.subr.mxu0 0.0
        %3614 = vmatpush1.msra.mxu0 0.0
        %3615 = vmatprep.subr.mxu0 0.0
        %3616 = vmatpush1.msra.mxu0 0.0
        %3617 = vmatprep.subr.mxu0 0.0
        %3618 = vmatpush1.msra.mxu0 0.0
        %3619 = vmatprep.subr.mxu0 0.0
        %3620 = vmatpush1.msra.mxu0 0.0
        %3621 = vmatprep.subr.mxu0 0.0
        %3622 = vmatpush1.msra.mxu0 0.0
        %3623 = vmatprep.subr.mxu0 0.0
        %3624 = vmatpush1.msra.mxu0 0.0
        %3625 = vmatprep.subr.mxu0 0.0
        %3626 = vmatpush1.msra.mxu0 0.0
        %3627 = vmatprep.subr.mxu0 0.0
        %3628 = vmatpush1.msra.mxu0 0.0
        %3629 = vmatprep.subr.mxu0 0.0
        %3630 = vmatpush1.msra.mxu0 0.0
        %3631 = vmatprep.subr.mxu0 0.0
        %3632 = vmatpush1.msra.mxu0 0.0
        %3633 = vmatprep.mubr.f32.mxu0 0.0
        %3634 = vmatmul.mubr.f32.gmra.mrb[0].mxu0 %v3106
        %v3635 = vpop.f32.mrb[0].mxu0
        %v3636 = vadd.f32 0.0, %v3635
        %v3637 = vpop.f32.mrb[0].mxu0
        %3638 = vmatprep.mubr.f32.mxu0 0.0
        %3639 = vmatmul.mubr.f32.gmra.mrb[0].mxu0 %v3108
        %v3640 = vpop.f32.mrb[0].mxu0
        %v3641 = vadd.f32 0.0, %v3640
        %v3642 = vpop.f32.mrb[0].mxu0
        %3643 = vmatprep.mubr.f32.mxu0 0.0
        %3644 = vmatmul.mubr.f32.gmra.mrb[0].mxu0 %v3110
        %v3645 = vpop.f32.mrb[0].mxu0
        %v3646 = vadd.f32 0.0, %v3645
        %v3647 = vpop.f32.mrb[0].mxu0
        %3648 = vmatprep.mubr.f32.mxu0 0.0
        %3649 = vmatmul.mubr.f32.gmra.mrb[0].mxu0 %v3112
        %v3650 = vpop.f32.mrb[0].mxu0
        %v3651 = vadd.f32 0.0, %v3650
        %v3652 = vpop.f32.mrb[0].mxu0
        %3653 = vmatprep.mubr.f32.mxu0 0.0
        %3654 = vmatmul.mubr.f32.gmra.mrb[0].mxu0 %v3114
        %v3655 = vpop.f32.mrb[0].mxu0
        %v3656 = vadd.f32 0.0, %v3655
        %v3657 = vpop.f32.mrb[0].mxu0
        %3658 = vmatprep.mubr.f32.mxu0 0.0
        %3659 = vmatmul.mubr.f32.gmra.mrb[0].mxu0 %v3116
        %v3660 = vpop.f32.mrb[0].mxu0
        %v3661 = vadd.f32 0.0, %v3660
        %v3662 = vpop.f32.mrb[0].mxu0
        %3663 = vmatprep.mubr.f32.mxu0 0.0
        %3664 = vmatmul.mubr.f32.gmra.mrb[0].mxu0 %v3118
        %v3665 = vpop.f32.mrb[0].mxu0
        %v3666 = vadd.f32 0.0, %v3665
        %v3667 = vpop.f32.mrb[0].mxu0
        %3668 = vmatprep.mubr.f32.mxu0 0.0
        %3669 = vmatmul.mubr.f32.gmra.mrb[0].mxu0 %v3120
        %v3670 = vpop.f32.mrb[0].mxu0
        %v3671 = vadd.f32 0.0, %v3670
        %v3672 = vpop.f32.mrb[0].mxu0
        %3673 = vmatprep.mubr.f32.mxu0 0.0
        %3674 = vmatmul.mubr.f32.gmra.mrb[0].mxu0 %v3122
        %v3675 = vpop.f32.mrb[0].mxu0
        %v3676 = vadd.f32 0.0, %v3675
        %v3677 = vpop.f32.mrb[0].mxu0
        %3678 = vmatprep.mubr.f32.mxu0 0.0
        %3679 = vmatmul.mubr.f32.gmra.mrb[0].mxu0 %v3124
        %v3680 = vpop.f32.mrb[0].mxu0
        %v3681 = vadd.f32 0.0, %v3680
        %v3682 = vpop.f32.mrb[0].mxu0
        %3683 = vmatprep.mubr.f32.mxu0 0.0
        %3684 = vmatmul.mubr.f32.gmra.mrb[0].mxu0 %v3126
        %v3685 = vpop.f32.mrb[0].mxu0
        %v3686 = vadd.f32 0.0, %v3685
        %v3687 = vpop.f32.mrb[0].mxu0
        %3688 = vmatprep.mubr.f32.mxu0 0.0
        %3689 = vmatmul.mubr.f32.gmra.mrb[0].mxu0 %v3128
        %v3690 = vpop.f32.mrb[0].mxu0
        %v3691 = vadd.f32 0.0, %v3690
        %v3692 = vpop.f32.mrb[0].mxu0
        %3693 = vmatprep.mubr.f32.mxu0 0.0
        %3694 = vmatmul.mubr.f32.gmra.mrb[0].mxu0 %v3130
        %v3695 = vpop.f32.mrb[0].mxu0
        %v3696 = vadd.f32 0.0, %v3695
        %v3697 = vpop.f32.mrb[0].mxu0
        %3698 = vmatprep.mubr.f32.mxu0 0.0
        %3699 = vmatmul.mubr.f32.gmra.mrb[0].mxu0 %v3132
        %v3700 = vpop.f32.mrb[0].mxu0
        %v3701 = vadd.f32 0.0, %v3700
        %v3702 = vpop.f32.mrb[0].mxu0
        %3703 = vmatprep.mubr.f32.mxu0 0.0
        %3704 = vmatmul.mubr.f32.gmra.mrb[0].mxu0 %v3134
        %v3705 = vpop.f32.mrb[0].mxu0
        %v3706 = vadd.f32 0.0, %v3705
        %v3707 = vpop.f32.mrb[0].mxu0
        %3708 = vmatprep.mubr.f32.mxu0 0.0
        %3709 = vmatmul.mubr.f32.gmra.mrb[0].mxu0 %v3136
        %v3710 = vpop.f32.mrb[0].mxu0
        %v3711 = vadd.f32 0.0, %v3710
        %v3712 = vpop.f32.mrb[0].mxu0
        %3713 = vmatprep.mubr.f32.mxu0 0.0
        %3714 = vmatmul.mubr.f32.gmra.mrb[0].mxu0 %v3138
        %v3715 = vpop.f32.mrb[0].mxu0
        %v3716 = vadd.f32 0.0, %v3715
        %v3717 = vpop.f32.mrb[0].mxu0
        %3718 = vmatprep.mubr.f32.mxu0 0.0
        %3719 = vmatmul.mubr.f32.gmra.mrb[0].mxu0 %v3140
        %v3720 = vpop.f32.mrb[0].mxu0
        %v3721 = vadd.f32 0.0, %v3720
        %v3722 = vpop.f32.mrb[0].mxu0
        %3723 = vmatprep.mubr.f32.mxu0 0.0
        %3724 = vmatmul.mubr.f32.gmra.mrb[0].mxu0 %v3142
        %v3725 = vpop.f32.mrb[0].mxu0
        %v3726 = vadd.f32 0.0, %v3725
        %v3727 = vpop.f32.mrb[0].mxu0
        %3728 = vmatprep.mubr.f32.mxu0 0.0
        %3729 = vmatmul.mubr.f32.gmra.mrb[0].mxu0 %v3144
        %v3730 = vpop.f32.mrb[0].mxu0
        %v3731 = vadd.f32 0.0, %v3730
        %v3732 = vpop.f32.mrb[0].mxu0
        %3733 = vmatprep.mubr.f32.mxu0 0.0
        %3734 = vmatmul.mubr.f32.gmra.mrb[0].mxu0 %v3146
        %v3735 = vpop.f32.mrb[0].mxu0
        %v3736 = vadd.f32 0.0, %v3735
        %v3737 = vpop.f32.mrb[0].mxu0
        %3738 = vmatprep.mubr.f32.mxu0 0.0
        %3739 = vmatmul.mubr.f32.gmra.mrb[0].mxu0 %v3148
        %v3740 = vpop.f32.mrb[0].mxu0
        %v3741 = vadd.f32 0.0, %v3740
        %v3742 = vpop.f32.mrb[0].mxu0
        %3743 = vmatprep.mubr.f32.mxu0 0.0
        %3744 = vmatmul.mubr.f32.gmra.mrb[0].mxu0 %v3150
        %v3745 = vpop.f32.mrb[0].mxu0
        %v3746 = vadd.f32 0.0, %v3745
        %v3747 = vpop.f32.mrb[0].mxu0
        %3748 = vmatprep.mubr.f32.mxu0 0.0
        %3749 = vmatmul.mubr.f32.gmra.mrb[0].mxu0 %v3152
        %v3750 = vpop.f32.mrb[0].mxu0
        %v3751 = vadd.f32 0.0, %v3750
        %v3752 = vpop.f32.mrb[0].mxu0
        %3753 = vmatprep.mubr.f32.mxu0 0.0
        %3754 = vmatmul.mubr.f32.gmra.mrb[0].mxu0 %v3154
        %v3755 = vpop.f32.mrb[0].mxu0
        %v3756 = vadd.f32 0.0, %v3755
        %v3757 = vpop.f32.mrb[0].mxu0
        %3758 = vmatprep.mubr.f32.mxu0 0.0
        %3759 = vmatmul.mubr.f32.gmra.mrb[0].mxu0 %v3156
        %v3760 = vpop.f32.mrb[0].mxu0
        %v3761 = vadd.f32 0.0, %v3760
        %v3762 = vpop.f32.mrb[0].mxu0
        %3763 = vmatprep.mubr.f32.mxu0 0.0
        %3764 = vmatmul.mubr.f32.gmra.mrb[0].mxu0 %v3158
        %v3765 = vpop.f32.mrb[0].mxu0
        %v3766 = vadd.f32 0.0, %v3765
        %v3767 = vpop.f32.mrb[0].mxu0
        %3768 = vmatprep.mubr.f32.mxu0 0.0
        %3769 = vmatmul.mubr.f32.gmra.mrb[0].mxu0 %v3160
        %v3770 = vpop.f32.mrb[0].mxu0
        %v3771 = vadd.f32 0.0, %v3770
        %v3772 = vpop.f32.mrb[0].mxu0
        %3773 = vmatprep.mubr.f32.mxu0 0.0
        %3774 = vmatmul.mubr.f32.gmra.mrb[0].mxu0 %v3162
        %v3775 = vpop.f32.mrb[0].mxu0
        %v3776 = vadd.f32 0.0, %v3775
        %v3777 = vpop.f32.mrb[0].mxu0
        %3778 = vmatprep.mubr.f32.mxu0 0.0
        %3779 = vmatmul.mubr.f32.gmra.mrb[0].mxu0 %v3164
        %v3780 = vpop.f32.mrb[0].mxu0
        %v3781 = vadd.f32 0.0, %v3780
        %v3782 = vpop.f32.mrb[0].mxu0
        %3783 = vmatprep.mubr.f32.mxu0 0.0
        %3784 = vmatmul.mubr.f32.gmra.mrb[0].mxu0 %v3166
        %v3785 = vpop.f32.mrb[0].mxu0
        %v3786 = vadd.f32 0.0, %v3785
        %v3787 = vpop.f32.mrb[0].mxu0
        %3788 = vmatprep.mubr.f32.mxu0 0.0
        %3789 = vmatmul.mubr.f32.gmra.mrb[0].mxu0 %v3168
        %v3790 = vpop.f32.mrb[0].mxu0
        %v3791 = vadd.f32 0.0, %v3790
        %v3792 = vpop.f32.mrb[0].mxu0
        %3793 = vmatprep.mubr.f32.mxu0 0.0
        %3794 = vmatmul.mubr.f32.gmra.mrb[0].mxu0 %v3170
        %v3795 = vpop.f32.mrb[0].mxu0
        %v3796 = vadd.f32 0.0, %v3795
        %v3797 = vpop.f32.mrb[0].mxu0
        %3798 = vmatprep.mubr.f32.mxu0 0.0
        %3799 = vmatmul.mubr.f32.gmra.mrb[0].mxu0 %v3172
        %v3800 = vpop.f32.mrb[0].mxu0
        %v3801 = vadd.f32 0.0, %v3800
        %v3802 = vpop.f32.mrb[0].mxu0
        %3803 = vmatprep.mubr.f32.mxu0 0.0
        %3804 = vmatmul.mubr.f32.gmra.mrb[0].mxu0 %v3174
        %v3805 = vpop.f32.mrb[0].mxu0
        %v3806 = vadd.f32 0.0, %v3805
        %v3807 = vpop.f32.mrb[0].mxu0
        %3808 = vmatprep.mubr.f32.mxu0 0.0
        %3809 = vmatmul.mubr.f32.gmra.mrb[0].mxu0 %v3176
        %v3810 = vpop.f32.mrb[0].mxu0
        %v3811 = vadd.f32 0.0, %v3810
        %v3812 = vpop.f32.mrb[0].mxu0
        %3813 = vmatprep.mubr.f32.mxu0 0.0
        %3814 = vmatmul.mubr.f32.gmra.mrb[0].mxu0 %v3178
        %v3815 = vpop.f32.mrb[0].mxu0
        %v3816 = vadd.f32 0.0, %v3815
        %v3817 = vpop.f32.mrb[0].mxu0
        %3818 = vmatprep.mubr.f32.mxu0 0.0
        %3819 = vmatmul.mubr.f32.gmra.mrb[0].mxu0 %v3180
        %v3820 = vpop.f32.mrb[0].mxu0
        %v3821 = vadd.f32 0.0, %v3820
        %v3822 = vpop.f32.mrb[0].mxu0
        %3823 = vmatprep.mubr.f32.mxu0 0.0
        %3824 = vmatmul.mubr.f32.gmra.mrb[0].mxu0 %v3223
        %v3825 = vpop.f32.mrb[0].mxu0
        %v3826 = vadd.f32 0.0, %v3825
        %v3827 = vpop.f32.mrb[0].mxu0
        %3828 = vmatprep.mubr.f32.mxu0 0.0
        %3829 = vmatmul.mubr.f32.gmra.mrb[0].mxu0 %v3102
        %v3830 = vpop.f32.mrb[0].mxu0
        %v3831 = vadd.f32 0.0, %v3830
        %v3832 = vpop.f32.mrb[0].mxu0
        %3833 = vmatprep.mubr.f32.mxu0 0.0
        %3834 = vmatmul.mubr.f32.gmra.mrb[0].mxu0 %v3104
        %v3835 = vpop.f32.mrb[0].mxu0
        %v3836 = vadd.f32 0.0, %v3835
        %v3837 = vpop.f32.mrb[0].mxu0
        %3838 = vdwg.mxu0
        %v3839 = vadd.f32 %v3511, %v3636
        %v3840 = vadd.f32 %v3512, %v3641
        %v3841 = vadd.f32 %v3513, %v3646
        %v3842 = vadd.f32 %v3514, %v3651
        %v3843 = vadd.f32 %v3515, %v3656
        %v3844 = vadd.f32 %v3516, %v3661
        %v3845 = vadd.f32 %v3517, %v3666
        %v3846 = vadd.f32 %v3518, %v3671
        %v3847 = vadd.f32 %v3519, %v3676
        %v3848 = vadd.f32 %v3520, %v3681
        %v3849 = vadd.f32 %v3521, %v3686
        %v3850 = vadd.f32 %v3522, %v3691
        %v3851 = vadd.f32 %v3523, %v3696
        %v3852 = vadd.f32 %v3524, %v3701
        %v3853 = vadd.f32 %v3525, %v3706
        %v3854 = vadd.f32 %v3526, %v3711
        %v3855 = vadd.f32 %v3527, %v3716
        %v3856 = vadd.f32 %v3528, %v3721
        %v3857 = vadd.f32 %v3529, %v3726
        %v3858 = vadd.f32 %v3530, %v3731
        %v3859 = vadd.f32 %v3531, %v3736
        %v3860 = vadd.f32 %v3532, %v3741
        %v3861 = vadd.f32 %v3533, %v3746
        %v3862 = vadd.f32 %v3534, %v3751
        %v3863 = vadd.f32 %v3535, %v3756
        %v3864 = vadd.f32 %v3536, %v3761
        %v3865 = vadd.f32 %v3537, %v3766
        %v3866 = vadd.f32 %v3538, %v3771
        %v3867 = vadd.f32 %v3539, %v3776
        %v3868 = vadd.f32 %v3540, %v3781
        %v3869 = vadd.f32 %v3541, %v3786
        %v3870 = vadd.f32 %v3542, %v3791
        %v3871 = vadd.f32 %v3543, %v3796
        %v3872 = vadd.f32 %v3544, %v3801
        %v3873 = vadd.f32 %v3545, %v3806
        %v3874 = vadd.f32 %v3546, %v3811
        %v3875 = vadd.f32 %v3547, %v3816
        %v3876 = vadd.f32 %v3548, %v3821
        %v3877 = vadd.f32 %v3549, %v3826
        %v3878 = vadd.f32 %v3550, %v3831
        %v3879 = vadd.f32 %v3551, %v3836
        %vm3880 = vcmask 1045504
        %v3881 = vrot.slane %v1087, 2
        %v3882 = vrot.slane %v1088, 2
        %v3883 = vsel %vm3880, %v3881, %v3882
        %v3884 = vrot.slane %v1089, 2
        %v3885 = vsel %vm3880, %v3882, %v3884
        %v3886 = vrot.slane %v1090, 2
        %v3887 = vsel %vm3880, %v3884, %v3886
        %v3888 = vrot.slane %v1091, 2
        %v3889 = vsel %vm3880, %v3886, %v3888
        %v3890 = vrot.slane %v1092, 2
        %v3891 = vsel %vm3880, %v3888, %v3890
        %v3892 = vrot.slane %v1093, 2
        %v3893 = vsel %vm3880, %v3890, %v3892
        %v3894 = vrot.slane %v1094, 2
        %v3895 = vsel %vm3880, %v3892, %v3894
        %v3896 = vrot.slane %v1095, 2
        %v3897 = vsel %vm3880, %v3894, %v3896
        %v3898 = vrot.slane %v1096, 2
        %v3899 = vsel %vm3880, %v3896, %v3898
        %v3900 = vrot.slane %v1097, 2
        %v3901 = vsel %vm3880, %v3898, %v3900
        %v3902 = vrot.slane %v1098, 2
        %v3903 = vsel %vm3880, %v3900, %v3902
        %v3904 = vrot.slane %v1099, 2
        %v3905 = vsel %vm3880, %v3902, %v3904
        %v3906 = vrot.slane %v1100, 2
        %v3907 = vsel %vm3880, %v3904, %v3906
        %v3908 = vrot.slane %v1101, 2
        %v3909 = vsel %vm3880, %v3906, %v3908
        %v3910 = vrot.slane %v1102, 2
        %v3911 = vsel %vm3880, %v3908, %v3910
        %v3912 = vrot.slane %v1103, 2
        %v3913 = vsel %vm3880, %v3910, %v3912
        %v3914 = vrot.slane %v1104, 2
        %v3915 = vsel %vm3880, %v3912, %v3914
        %v3916 = vrot.slane %v1105, 2
        %v3917 = vsel %vm3880, %v3914, %v3916
        %v3918 = vrot.slane %v1106, 2
        %v3919 = vsel %vm3880, %v3916, %v3918
        %v3920 = vrot.slane %v1107, 2
        %v3921 = vsel %vm3880, %v3918, %v3920
        %v3922 = vrot.slane %v1108, 2
        %v3923 = vsel %vm3880, %v3920, %v3922
        %v3924 = vrot.slane %v1109, 2
        %v3925 = vsel %vm3880, %v3922, %v3924
        %v3926 = vrot.slane %v1110, 2
        %v3927 = vsel %vm3880, %v3924, %v3926
        %v3928 = vrot.slane %v1111, 2
        %v3929 = vsel %vm3880, %v3926, %v3928
        %v3930 = vrot.slane %v1112, 2
        %v3931 = vsel %vm3880, %v3928, %v3930
        %v3932 = vrot.slane %v1113, 2
        %v3933 = vsel %vm3880, %v3930, %v3932
        %v3934 = vrot.slane %v1114, 2
        %v3935 = vsel %vm3880, %v3932, %v3934
        %v3936 = vrot.slane %v1115, 2
        %v3937 = vsel %vm3880, %v3934, %v3936
        %v3938 = vrot.slane %v1116, 2
        %v3939 = vsel %vm3880, %v3936, %v3938
        %v3940 = vrot.slane %v1117, 2
        %v3941 = vsel %vm3880, %v3938, %v3940
        %v3942 = vrot.slane %v1118, 2
        %v3943 = vsel %vm3880, %v3940, %v3942
        %v3944 = vrot.slane %v1119, 2
        %v3945 = vsel %vm3880, %v3942, %v3944
        %v3946 = vrot.slane %v1120, 2
        %v3947 = vsel %vm3880, %v3944, %v3946
        %v3948 = vrot.slane %v1121, 2
        %v3949 = vsel %vm3880, %v3946, %v3948
        %v3950 = vrot.slane %v1122, 2
        %v3951 = vsel %vm3880, %v3948, %v3950
        %v3952 = vrot.slane %v1123, 2
        %v3953 = vsel %vm3880, %v3950, %v3952
        %v3954 = vrot.slane %v1124, 2
        %v3955 = vsel %vm3880, %v3952, %v3954
        %v3956 = vrot.slane %v1125, 2
        %v3957 = vsel %vm3880, %v3954, %v3956
        %v3997 = vrot.slane %v1085, 2
        %v3998 = vrot.slane %v1086, 2
        %v3999 = vsel %vm3880, %v3997, %v3998
        %v4000 = vsel %vm3880, %v3998, %v3881
        %v4004 = vsel %vm3880, %v3956, %v3997
        %s4005 = scalar_lea.vmem [#allocation5], 896
        %v4006 = vld [vmem:[%s4005] sm:$0xff]
        %v4007 = vld [vmem:[%s4005 + $0x8] sm:$0xff]
        %v4008 = vld [vmem:[%s4005 + $0x10] sm:$0xff]
        %v4009 = vld [vmem:[%s4005 + $0x18] sm:$0xff]
        %v4010 = vld [vmem:[%s4005 + $0x20] sm:$0xff]
        %v4011 = vld [vmem:[%s4005 + $0x28] sm:$0xff]
        %v4012 = vld [vmem:[%s4005 + $0x30] sm:$0xff]
        %v4013 = vld [vmem:[%s4005 + $0x38] sm:$0xff]
        %v4014 = vld [vmem:[%s4005 + $0x40] sm:$0xff]
        %v4015 = vld [vmem:[%s4005 + $0x48] sm:$0xff]
        %v4016 = vld [vmem:[%s4005 + $0x50] sm:$0xff]
        %v4017 = vld [vmem:[%s4005 + $0x58] sm:$0xff]
        %v4018 = vld [vmem:[%s4005 + $0x60] sm:$0xff]
        %v4019 = vld [vmem:[%s4005 + $0x68] sm:$0xff]
        %v4020 = vld [vmem:[%s4005 + $0x70] sm:$0xff]
        %v4021 = vld [vmem:[%s4005 + $0x78] sm:$0xff]
        %4022 = vmatprep.subr.mxu0 0.0
        %4023 = vmatpush1.msra.mxu0 %v4006
        %4024 = vmatprep.subr.mxu0 0.0
        %4025 = vmatpush1.msra.mxu0 %v4007
        %4026 = vmatprep.subr.mxu0 0.0
        %4027 = vmatpush1.msra.mxu0 %v4008
        %4028 = vmatprep.subr.mxu0 0.0
        %4029 = vmatpush1.msra.mxu0 %v4009
        %4030 = vmatprep.subr.mxu0 0.0
        %4031 = vmatpush1.msra.mxu0 %v4010
        %4032 = vmatprep.subr.mxu0 0.0
        %4033 = vmatpush1.msra.mxu0 %v4011
        %4034 = vmatprep.subr.mxu0 0.0
        %4035 = vmatpush1.msra.mxu0 %v4012
        %4036 = vmatprep.subr.mxu0 0.0
        %4037 = vmatpush1.msra.mxu0 %v4013
        %4038 = vmatprep.subr.mxu0 0.0
        %4039 = vmatpush1.msra.mxu0 %v4014
        %4040 = vmatprep.subr.mxu0 0.0
        %4041 = vmatpush1.msra.mxu0 %v4015
        %4042 = vmatprep.subr.mxu0 0.0
        %4043 = vmatpush1.msra.mxu0 %v4016
        %4044 = vmatprep.subr.mxu0 0.0
        %4045 = vmatpush1.msra.mxu0 %v4017
        %4046 = vmatprep.subr.mxu0 0.0
        %4047 = vmatpush1.msra.mxu0 %v4018
        %4048 = vmatprep.subr.mxu0 0.0
        %4049 = vmatpush1.msra.mxu0 %v4019
        %4050 = vmatprep.subr.mxu0 0.0
        %4051 = vmatpush1.msra.mxu0 %v4020
        %4052 = vmatprep.subr.mxu0 0.0
        %4053 = vmatpush1.msra.mxu0 %v4021
        %4054 = vmatprep.subr.mxu0 0.0
        %4055 = vmatpush1.msra.mxu0 0.0
        %4056 = vmatprep.subr.mxu0 0.0
        %4057 = vmatpush1.msra.mxu0 0.0
        %4058 = vmatprep.subr.mxu0 0.0
        %4059 = vmatpush1.msra.mxu0 0.0
        %4060 = vmatprep.subr.mxu0 0.0
        %4061 = vmatpush1.msra.mxu0 0.0
        %4062 = vmatprep.subr.mxu0 0.0
        %4063 = vmatpush1.msra.mxu0 0.0
        %4064 = vmatprep.subr.mxu0 0.0
        %4065 = vmatpush1.msra.mxu0 0.0
        %4066 = vmatprep.subr.mxu0 0.0
        %4067 = vmatpush1.msra.mxu0 0.0
        %4068 = vmatprep.subr.mxu0 0.0
        %4069 = vmatpush1.msra.mxu0 0.0
        %4070 = vmatprep.subr.mxu0 0.0
        %4071 = vmatpush1.msra.mxu0 0.0
        %4072 = vmatprep.subr.mxu0 0.0
        %4073 = vmatpush1.msra.mxu0 0.0
        %4074 = vmatprep.subr.mxu0 0.0
        %4075 = vmatpush1.msra.mxu0 0.0
        %4076 = vmatprep.subr.mxu0 0.0
        %4077 = vmatpush1.msra.mxu0 0.0
        %4078 = vmatprep.subr.mxu0 0.0
        %4079 = vmatpush1.msra.mxu0 0.0
        %4080 = vmatprep.subr.mxu0 0.0
        %4081 = vmatpush1.msra.mxu0 0.0
        %4082 = vmatprep.subr.mxu0 0.0
        %4083 = vmatpush1.msra.mxu0 0.0
        %4084 = vmatprep.subr.mxu0 0.0
        %4085 = vmatpush1.msra.mxu0 0.0
        %4086 = vmatprep.mubr.f32.mxu0 0.0
        %4087 = vmatmul.mubr.f32.gmra.mrb[0].mxu0 %v3883
        %v4088 = vpop.f32.mrb[0].mxu0
        %v4089 = vadd.f32 0.0, %v4088
        %v4090 = vpop.f32.mrb[0].mxu0
        %4091 = vmatprep.mubr.f32.mxu0 0.0
        %4092 = vmatmul.mubr.f32.gmra.mrb[0].mxu0 %v3885
        %v4093 = vpop.f32.mrb[0].mxu0
        %v4094 = vadd.f32 0.0, %v4093
        %v4095 = vpop.f32.mrb[0].mxu0
        %4096 = vmatprep.mubr.f32.mxu0 0.0
        %4097 = vmatmul.mubr.f32.gmra.mrb[0].mxu0 %v3887
        %v4098 = vpop.f32.mrb[0].mxu0
        %v4099 = vadd.f32 0.0, %v4098
        %v4100 = vpop.f32.mrb[0].mxu0
        %4101 = vmatprep.mubr.f32.mxu0 0.0
        %4102 = vmatmul.mubr.f32.gmra.mrb[0].mxu0 %v3889
        %v4103 = vpop.f32.mrb[0].mxu0
        %v4104 = vadd.f32 0.0, %v4103
        %v4105 = vpop.f32.mrb[0].mxu0
        %4106 = vmatprep.mubr.f32.mxu0 0.0
        %4107 = vmatmul.mubr.f32.gmra.mrb[0].mxu0 %v3891
        %v4108 = vpop.f32.mrb[0].mxu0
        %v4109 = vadd.f32 0.0, %v4108
        %v4110 = vpop.f32.mrb[0].mxu0
        %4111 = vmatprep.mubr.f32.mxu0 0.0
        %4112 = vmatmul.mubr.f32.gmra.mrb[0].mxu0 %v3893
        %v4113 = vpop.f32.mrb[0].mxu0
        %v4114 = vadd.f32 0.0, %v4113
        %v4115 = vpop.f32.mrb[0].mxu0
        %4116 = vmatprep.mubr.f32.mxu0 0.0
        %4117 = vmatmul.mubr.f32.gmra.mrb[0].mxu0 %v3895
        %v4118 = vpop.f32.mrb[0].mxu0
        %v4119 = vadd.f32 0.0, %v4118
        %v4120 = vpop.f32.mrb[0].mxu0
        %4121 = vmatprep.mubr.f32.mxu0 0.0
        %4122 = vmatmul.mubr.f32.gmra.mrb[0].mxu0 %v3897
        %v4123 = vpop.f32.mrb[0].mxu0
        %v4124 = vadd.f32 0.0, %v4123
        %v4125 = vpop.f32.mrb[0].mxu0
        %4126 = vmatprep.mubr.f32.mxu0 0.0
        %4127 = vmatmul.mubr.f32.gmra.mrb[0].mxu0 %v3899
        %v4128 = vpop.f32.mrb[0].mxu0
        %v4129 = vadd.f32 0.0, %v4128
        %v4130 = vpop.f32.mrb[0].mxu0
        %4131 = vmatprep.mubr.f32.mxu0 0.0
        %4132 = vmatmul.mubr.f32.gmra.mrb[0].mxu0 %v3901
        %v4133 = vpop.f32.mrb[0].mxu0
        %v4134 = vadd.f32 0.0, %v4133
        %v4135 = vpop.f32.mrb[0].mxu0
        %4136 = vmatprep.mubr.f32.mxu0 0.0
        %4137 = vmatmul.mubr.f32.gmra.mrb[0].mxu0 %v3903
        %v4138 = vpop.f32.mrb[0].mxu0
        %v4139 = vadd.f32 0.0, %v4138
        %v4140 = vpop.f32.mrb[0].mxu0
        %4141 = vmatprep.mubr.f32.mxu0 0.0
        %4142 = vmatmul.mubr.f32.gmra.mrb[0].mxu0 %v3905
        %v4143 = vpop.f32.mrb[0].mxu0
        %v4144 = vadd.f32 0.0, %v4143
        %v4145 = vpop.f32.mrb[0].mxu0
        %4146 = vmatprep.mubr.f32.mxu0 0.0
        %4147 = vmatmul.mubr.f32.gmra.mrb[0].mxu0 %v3907
        %v4148 = vpop.f32.mrb[0].mxu0
        %v4149 = vadd.f32 0.0, %v4148
        %v4150 = vpop.f32.mrb[0].mxu0
        %4151 = vmatprep.mubr.f32.mxu0 0.0
        %4152 = vmatmul.mubr.f32.gmra.mrb[0].mxu0 %v3909
        %v4153 = vpop.f32.mrb[0].mxu0
        %v4154 = vadd.f32 0.0, %v4153
        %v4155 = vpop.f32.mrb[0].mxu0
        %4156 = vmatprep.mubr.f32.mxu0 0.0
        %4157 = vmatmul.mubr.f32.gmra.mrb[0].mxu0 %v3911
        %v4158 = vpop.f32.mrb[0].mxu0
        %v4159 = vadd.f32 0.0, %v4158
        %v4160 = vpop.f32.mrb[0].mxu0
        %4161 = vmatprep.mubr.f32.mxu0 0.0
        %4162 = vmatmul.mubr.f32.gmra.mrb[0].mxu0 %v3913
        %v4163 = vpop.f32.mrb[0].mxu0
        %v4164 = vadd.f32 0.0, %v4163
        %v4165 = vpop.f32.mrb[0].mxu0
        %4166 = vmatprep.mubr.f32.mxu0 0.0
        %4167 = vmatmul.mubr.f32.gmra.mrb[0].mxu0 %v3915
        %v4168 = vpop.f32.mrb[0].mxu0
        %v4169 = vadd.f32 0.0, %v4168
        %v4170 = vpop.f32.mrb[0].mxu0
        %4171 = vmatprep.mubr.f32.mxu0 0.0
        %4172 = vmatmul.mubr.f32.gmra.mrb[0].mxu0 %v3917
        %v4173 = vpop.f32.mrb[0].mxu0
        %v4174 = vadd.f32 0.0, %v4173
        %v4175 = vpop.f32.mrb[0].mxu0
        %4176 = vmatprep.mubr.f32.mxu0 0.0
        %4177 = vmatmul.mubr.f32.gmra.mrb[0].mxu0 %v3919
        %v4178 = vpop.f32.mrb[0].mxu0
        %v4179 = vadd.f32 0.0, %v4178
        %v4180 = vpop.f32.mrb[0].mxu0
        %4181 = vmatprep.mubr.f32.mxu0 0.0
        %4182 = vmatmul.mubr.f32.gmra.mrb[0].mxu0 %v3921
        %v4183 = vpop.f32.mrb[0].mxu0
        %v4184 = vadd.f32 0.0, %v4183
        %v4185 = vpop.f32.mrb[0].mxu0
        %4186 = vmatprep.mubr.f32.mxu0 0.0
        %4187 = vmatmul.mubr.f32.gmra.mrb[0].mxu0 %v3923
        %v4188 = vpop.f32.mrb[0].mxu0
        %v4189 = vadd.f32 0.0, %v4188
        %v4190 = vpop.f32.mrb[0].mxu0
        %4191 = vmatprep.mubr.f32.mxu0 0.0
        %4192 = vmatmul.mubr.f32.gmra.mrb[0].mxu0 %v3925
        %v4193 = vpop.f32.mrb[0].mxu0
        %v4194 = vadd.f32 0.0, %v4193
        %v4195 = vpop.f32.mrb[0].mxu0
        %4196 = vmatprep.mubr.f32.mxu0 0.0
        %4197 = vmatmul.mubr.f32.gmra.mrb[0].mxu0 %v3927
        %v4198 = vpop.f32.mrb[0].mxu0
        %v4199 = vadd.f32 0.0, %v4198
        %v4200 = vpop.f32.mrb[0].mxu0
        %4201 = vmatprep.mubr.f32.mxu0 0.0
        %4202 = vmatmul.mubr.f32.gmra.mrb[0].mxu0 %v3929
        %v4203 = vpop.f32.mrb[0].mxu0
        %v4204 = vadd.f32 0.0, %v4203
        %v4205 = vpop.f32.mrb[0].mxu0
        %4206 = vmatprep.mubr.f32.mxu0 0.0
        %4207 = vmatmul.mubr.f32.gmra.mrb[0].mxu0 %v3931
        %v4208 = vpop.f32.mrb[0].mxu0
        %v4209 = vadd.f32 0.0, %v4208
        %v4210 = vpop.f32.mrb[0].mxu0
        %4211 = vmatprep.mubr.f32.mxu0 0.0
        %4212 = vmatmul.mubr.f32.gmra.mrb[0].mxu0 %v3933
        %v4213 = vpop.f32.mrb[0].mxu0
        %v4214 = vadd.f32 0.0, %v4213
        %v4215 = vpop.f32.mrb[0].mxu0
        %4216 = vmatprep.mubr.f32.mxu0 0.0
        %4217 = vmatmul.mubr.f32.gmra.mrb[0].mxu0 %v3935
        %v4218 = vpop.f32.mrb[0].mxu0
        %v4219 = vadd.f32 0.0, %v4218
        %v4220 = vpop.f32.mrb[0].mxu0
        %4221 = vmatprep.mubr.f32.mxu0 0.0
        %4222 = vmatmul.mubr.f32.gmra.mrb[0].mxu0 %v3937
        %v4223 = vpop.f32.mrb[0].mxu0
        %v4224 = vadd.f32 0.0, %v4223
        %v4225 = vpop.f32.mrb[0].mxu0
        %4226 = vmatprep.mubr.f32.mxu0 0.0
        %4227 = vmatmul.mubr.f32.gmra.mrb[0].mxu0 %v3939
        %v4228 = vpop.f32.mrb[0].mxu0
        %v4229 = vadd.f32 0.0, %v4228
        %v4230 = vpop.f32.mrb[0].mxu0
        %4231 = vmatprep.mubr.f32.mxu0 0.0
        %4232 = vmatmul.mubr.f32.gmra.mrb[0].mxu0 %v3941
        %v4233 = vpop.f32.mrb[0].mxu0
        %v4234 = vadd.f32 0.0, %v4233
        %v4235 = vpop.f32.mrb[0].mxu0
        %4236 = vmatprep.mubr.f32.mxu0 0.0
        %4237 = vmatmul.mubr.f32.gmra.mrb[0].mxu0 %v3943
        %v4238 = vpop.f32.mrb[0].mxu0
        %v4239 = vadd.f32 0.0, %v4238
        %v4240 = vpop.f32.mrb[0].mxu0
        %4241 = vmatprep.mubr.f32.mxu0 0.0
        %4242 = vmatmul.mubr.f32.gmra.mrb[0].mxu0 %v3945
        %v4243 = vpop.f32.mrb[0].mxu0
        %v4244 = vadd.f32 0.0, %v4243
        %v4245 = vpop.f32.mrb[0].mxu0
        %4246 = vmatprep.mubr.f32.mxu0 0.0
        %4247 = vmatmul.mubr.f32.gmra.mrb[0].mxu0 %v3947
        %v4248 = vpop.f32.mrb[0].mxu0
        %v4249 = vadd.f32 0.0, %v4248
        %v4250 = vpop.f32.mrb[0].mxu0
        %4251 = vmatprep.mubr.f32.mxu0 0.0
        %4252 = vmatmul.mubr.f32.gmra.mrb[0].mxu0 %v3949
        %v4253 = vpop.f32.mrb[0].mxu0
        %v4254 = vadd.f32 0.0, %v4253
        %v4255 = vpop.f32.mrb[0].mxu0
        %4256 = vmatprep.mubr.f32.mxu0 0.0
        %4257 = vmatmul.mubr.f32.gmra.mrb[0].mxu0 %v3951
        %v4258 = vpop.f32.mrb[0].mxu0
        %v4259 = vadd.f32 0.0, %v4258
        %v4260 = vpop.f32.mrb[0].mxu0
        %4261 = vmatprep.mubr.f32.mxu0 0.0
        %4262 = vmatmul.mubr.f32.gmra.mrb[0].mxu0 %v3953
        %v4263 = vpop.f32.mrb[0].mxu0
        %v4264 = vadd.f32 0.0, %v4263
        %v4265 = vpop.f32.mrb[0].mxu0
        %4266 = vmatprep.mubr.f32.mxu0 0.0
        %4267 = vmatmul.mubr.f32.gmra.mrb[0].mxu0 %v3955
        %v4268 = vpop.f32.mrb[0].mxu0
        %v4269 = vadd.f32 0.0, %v4268
        %v4270 = vpop.f32.mrb[0].mxu0
        %4271 = vmatprep.mubr.f32.mxu0 0.0
        %4272 = vmatmul.mubr.f32.gmra.mrb[0].mxu0 %v3957
        %v4273 = vpop.f32.mrb[0].mxu0
        %v4274 = vadd.f32 0.0, %v4273
        %v4275 = vpop.f32.mrb[0].mxu0
        %4276 = vmatprep.mubr.f32.mxu0 0.0
        %4277 = vmatmul.mubr.f32.gmra.mrb[0].mxu0 %v4004
        %v4278 = vpop.f32.mrb[0].mxu0
        %v4279 = vadd.f32 0.0, %v4278
        %v4280 = vpop.f32.mrb[0].mxu0
        %4281 = vmatprep.mubr.f32.mxu0 0.0
        %4282 = vmatmul.mubr.f32.gmra.mrb[0].mxu0 %v3999
        %v4283 = vpop.f32.mrb[0].mxu0
        %v4284 = vadd.f32 0.0, %v4283
        %v4285 = vpop.f32.mrb[0].mxu0
        %4286 = vmatprep.mubr.f32.mxu0 0.0
        %4287 = vmatmul.mubr.f32.gmra.mrb[0].mxu0 %v4000
        %v4288 = vpop.f32.mrb[0].mxu0
        %v4289 = vadd.f32 0.0, %v4288
        %v4290 = vpop.f32.mrb[0].mxu0
        %4291 = vdwg.mxu0
        %v4292 = vadd.f32 %v3839, %v4089
        %v4293 = vadd.f32 %v3840, %v4094
        %v4294 = vadd.f32 %v3841, %v4099
        %v4295 = vadd.f32 %v3842, %v4104
        %v4296 = vadd.f32 %v3843, %v4109
        %v4297 = vadd.f32 %v3844, %v4114
        %v4298 = vadd.f32 %v3845, %v4119
        %v4299 = vadd.f32 %v3846, %v4124
        %v4300 = vadd.f32 %v3847, %v4129
        %v4301 = vadd.f32 %v3848, %v4134
        %v4302 = vadd.f32 %v3849, %v4139
        %v4303 = vadd.f32 %v3850, %v4144
        %v4304 = vadd.f32 %v3851, %v4149
        %v4305 = vadd.f32 %v3852, %v4154
        %v4306 = vadd.f32 %v3853, %v4159
        %v4307 = vadd.f32 %v3854, %v4164
        %v4308 = vadd.f32 %v3855, %v4169
        %v4309 = vadd.f32 %v3856, %v4174
        %v4310 = vadd.f32 %v3857, %v4179
        %v4311 = vadd.f32 %v3858, %v4184
        %v4312 = vadd.f32 %v3859, %v4189
        %v4313 = vadd.f32 %v3860, %v4194
        %v4314 = vadd.f32 %v3861, %v4199
        %v4315 = vadd.f32 %v3862, %v4204
        %v4316 = vadd.f32 %v3863, %v4209
        %v4317 = vadd.f32 %v3864, %v4214
        %v4318 = vadd.f32 %v3865, %v4219
        %v4319 = vadd.f32 %v3866, %v4224
        %v4320 = vadd.f32 %v3867, %v4229
        %v4321 = vadd.f32 %v3868, %v4234
        %v4322 = vadd.f32 %v3869, %v4239
        %v4323 = vadd.f32 %v3870, %v4244
        %v4324 = vadd.f32 %v3871, %v4249
        %v4325 = vadd.f32 %v3872, %v4254
        %v4326 = vadd.f32 %v3873, %v4259
        %v4327 = vadd.f32 %v3874, %v4264
        %v4328 = vadd.f32 %v3875, %v4269
        %v4329 = vadd.f32 %v3876, %v4274
        %v4330 = vadd.f32 %v3877, %v4279
        %v4331 = vadd.f32 %v3878, %v4284
        %v4332 = vadd.f32 %v3879, %v4289
        %vm4333 = vcmask 1044480
        %v4334 = vrot.slane %v1087, 3
        %v4335 = vrot.slane %v1088, 3
        %v4336 = vsel %vm4333, %v4334, %v4335
        %v4337 = vrot.slane %v1089, 3
        %v4338 = vsel %vm4333, %v4335, %v4337
        %v4339 = vrot.slane %v1090, 3
        %v4340 = vsel %vm4333, %v4337, %v4339
        %v4341 = vrot.slane %v1091, 3
        %v4342 = vsel %vm4333, %v4339, %v4341
        %v4343 = vrot.slane %v1092, 3
        %v4344 = vsel %vm4333, %v4341, %v4343
        %v4345 = vrot.slane %v1093, 3
        %v4346 = vsel %vm4333, %v4343, %v4345
        %v4347 = vrot.slane %v1094, 3
        %v4348 = vsel %vm4333, %v4345, %v4347
        %v4349 = vrot.slane %v1095, 3
        %v4350 = vsel %vm4333, %v4347, %v4349
        %v4351 = vrot.slane %v1096, 3
        %v4352 = vsel %vm4333, %v4349, %v4351
        %v4353 = vrot.slane %v1097, 3
        %v4354 = vsel %vm4333, %v4351, %v4353
        %v4355 = vrot.slane %v1098, 3
        %v4356 = vsel %vm4333, %v4353, %v4355
        %v4357 = vrot.slane %v1099, 3
        %v4358 = vsel %vm4333, %v4355, %v4357
        %v4359 = vrot.slane %v1100, 3
        %v4360 = vsel %vm4333, %v4357, %v4359
        %v4361 = vrot.slane %v1101, 3
        %v4362 = vsel %vm4333, %v4359, %v4361
        %v4363 = vrot.slane %v1102, 3
        %v4364 = vsel %vm4333, %v4361, %v4363
        %v4365 = vrot.slane %v1103, 3
        %v4366 = vsel %vm4333, %v4363, %v4365
        %v4367 = vrot.slane %v1104, 3
        %v4368 = vsel %vm4333, %v4365, %v4367
        %v4369 = vrot.slane %v1105, 3
        %v4370 = vsel %vm4333, %v4367, %v4369
        %v4371 = vrot.slane %v1106, 3
        %v4372 = vsel %vm4333, %v4369, %v4371
        %v4373 = vrot.slane %v1107, 3
        %v4374 = vsel %vm4333, %v4371, %v4373
        %v4375 = vrot.slane %v1108, 3
        %v4376 = vsel %vm4333, %v4373, %v4375
        %v4377 = vrot.slane %v1109, 3
        %v4378 = vsel %vm4333, %v4375, %v4377
        %v4379 = vrot.slane %v1110, 3
        %v4380 = vsel %vm4333, %v4377, %v4379
        %v4381 = vrot.slane %v1111, 3
        %v4382 = vsel %vm4333, %v4379, %v4381
        %v4383 = vrot.slane %v1112, 3
        %v4384 = vsel %vm4333, %v4381, %v4383
        %v4385 = vrot.slane %v1113, 3
        %v4386 = vsel %vm4333, %v4383, %v4385
        %v4387 = vrot.slane %v1114, 3
        %v4388 = vsel %vm4333, %v4385, %v4387
        %v4389 = vrot.slane %v1115, 3
        %v4390 = vsel %vm4333, %v4387, %v4389
        %v4391 = vrot.slane %v1116, 3
        %v4392 = vsel %vm4333, %v4389, %v4391
        %v4393 = vrot.slane %v1117, 3
        %v4394 = vsel %vm4333, %v4391, %v4393
        %v4395 = vrot.slane %v1118, 3
        %v4396 = vsel %vm4333, %v4393, %v4395
        %v4397 = vrot.slane %v1119, 3
        %v4398 = vsel %vm4333, %v4395, %v4397
        %v4399 = vrot.slane %v1120, 3
        %v4400 = vsel %vm4333, %v4397, %v4399
        %v4401 = vrot.slane %v1121, 3
        %v4402 = vsel %vm4333, %v4399, %v4401
        %v4403 = vrot.slane %v1122, 3
        %v4404 = vsel %vm4333, %v4401, %v4403
        %v4405 = vrot.slane %v1123, 3
        %v4406 = vsel %vm4333, %v4403, %v4405
        %v4407 = vrot.slane %v1124, 3
        %v4408 = vsel %vm4333, %v4405, %v4407
        %v4409 = vrot.slane %v1125, 3
        %v4410 = vsel %vm4333, %v4407, %v4409
        %v4450 = vrot.slane %v1085, 3
        %v4451 = vrot.slane %v1086, 3
        %v4452 = vsel %vm4333, %v4450, %v4451
        %v4453 = vsel %vm4333, %v4451, %v4334
        %v4457 = vsel %vm4333, %v4409, %v4450
        %s4458 = scalar_lea.vmem [#allocation5], 1024
        %v4459 = vld [vmem:[%s4458] sm:$0xff]
        %v4460 = vld [vmem:[%s4458 + $0x8] sm:$0xff]
        %v4461 = vld [vmem:[%s4458 + $0x10] sm:$0xff]
        %v4462 = vld [vmem:[%s4458 + $0x18] sm:$0xff]
        %v4463 = vld [vmem:[%s4458 + $0x20] sm:$0xff]
        %v4464 = vld [vmem:[%s4458 + $0x28] sm:$0xff]
        %v4465 = vld [vmem:[%s4458 + $0x30] sm:$0xff]
        %v4466 = vld [vmem:[%s4458 + $0x38] sm:$0xff]
        %v4467 = vld [vmem:[%s4458 + $0x40] sm:$0xff]
        %v4468 = vld [vmem:[%s4458 + $0x48] sm:$0xff]
        %v4469 = vld [vmem:[%s4458 + $0x50] sm:$0xff]
        %v4470 = vld [vmem:[%s4458 + $0x58] sm:$0xff]
        %v4471 = vld [vmem:[%s4458 + $0x60] sm:$0xff]
        %v4472 = vld [vmem:[%s4458 + $0x68] sm:$0xff]
        %v4473 = vld [vmem:[%s4458 + $0x70] sm:$0xff]
        %v4474 = vld [vmem:[%s4458 + $0x78] sm:$0xff]
        %4475 = vmatprep.subr.mxu0 0.0
        %4476 = vmatpush1.msra.mxu0 %v4459
        %4477 = vmatprep.subr.mxu0 0.0
        %4478 = vmatpush1.msra.mxu0 %v4460
        %4479 = vmatprep.subr.mxu0 0.0
        %4480 = vmatpush1.msra.mxu0 %v4461
        %4481 = vmatprep.subr.mxu0 0.0
        %4482 = vmatpush1.msra.mxu0 %v4462
        %4483 = vmatprep.subr.mxu0 0.0
        %4484 = vmatpush1.msra.mxu0 %v4463
        %4485 = vmatprep.subr.mxu0 0.0
        %4486 = vmatpush1.msra.mxu0 %v4464
        %4487 = vmatprep.subr.mxu0 0.0
        %4488 = vmatpush1.msra.mxu0 %v4465
        %4489 = vmatprep.subr.mxu0 0.0
        %4490 = vmatpush1.msra.mxu0 %v4466
        %4491 = vmatprep.subr.mxu0 0.0
        %4492 = vmatpush1.msra.mxu0 %v4467
        %4493 = vmatprep.subr.mxu0 0.0
        %4494 = vmatpush1.msra.mxu0 %v4468
        %4495 = vmatprep.subr.mxu0 0.0
        %4496 = vmatpush1.msra.mxu0 %v4469
        %4497 = vmatprep.subr.mxu0 0.0
        %4498 = vmatpush1.msra.mxu0 %v4470
        %4499 = vmatprep.subr.mxu0 0.0
        %4500 = vmatpush1.msra.mxu0 %v4471
        %4501 = vmatprep.subr.mxu0 0.0
        %4502 = vmatpush1.msra.mxu0 %v4472
        %4503 = vmatprep.subr.mxu0 0.0
        %4504 = vmatpush1.msra.mxu0 %v4473
        %4505 = vmatprep.subr.mxu0 0.0
        %4506 = vmatpush1.msra.mxu0 %v4474
        %4507 = vmatprep.subr.mxu0 0.0
        %4508 = vmatpush1.msra.mxu0 0.0
        %4509 = vmatprep.subr.mxu0 0.0
        %4510 = vmatpush1.msra.mxu0 0.0
        %4511 = vmatprep.subr.mxu0 0.0
        %4512 = vmatpush1.msra.mxu0 0.0
        %4513 = vmatprep.subr.mxu0 0.0
        %4514 = vmatpush1.msra.mxu0 0.0
        %4515 = vmatprep.subr.mxu0 0.0
        %4516 = vmatpush1.msra.mxu0 0.0
        %4517 = vmatprep.subr.mxu0 0.0
        %4518 = vmatpush1.msra.mxu0 0.0
        %4519 = vmatprep.subr.mxu0 0.0
        %4520 = vmatpush1.msra.mxu0 0.0
        %4521 = vmatprep.subr.mxu0 0.0
        %4522 = vmatpush1.msra.mxu0 0.0
        %4523 = vmatprep.subr.mxu0 0.0
        %4524 = vmatpush1.msra.mxu0 0.0
        %4525 = vmatprep.subr.mxu0 0.0
        %4526 = vmatpush1.msra.mxu0 0.0
        %4527 = vmatprep.subr.mxu0 0.0
        %4528 = vmatpush1.msra.mxu0 0.0
        %4529 = vmatprep.subr.mxu0 0.0
        %4530 = vmatpush1.msra.mxu0 0.0
        %4531 = vmatprep.subr.mxu0 0.0
        %4532 = vmatpush1.msra.mxu0 0.0
        %4533 = vmatprep.subr.mxu0 0.0
        %4534 = vmatpush1.msra.mxu0 0.0
        %4535 = vmatprep.subr.mxu0 0.0
        %4536 = vmatpush1.msra.mxu0 0.0
        %4537 = vmatprep.subr.mxu0 0.0
        %4538 = vmatpush1.msra.mxu0 0.0
        %4539 = vmatprep.mubr.f32.mxu0 0.0
        %4540 = vmatmul.mubr.f32.gmra.mrb[0].mxu0 %v4336
        %v4541 = vpop.f32.mrb[0].mxu0
        %v4542 = vadd.f32 0.0, %v4541
        %v4543 = vpop.f32.mrb[0].mxu0
        %4544 = vmatprep.mubr.f32.mxu0 0.0
        %4545 = vmatmul.mubr.f32.gmra.mrb[0].mxu0 %v4338
        %v4546 = vpop.f32.mrb[0].mxu0
        %v4547 = vadd.f32 0.0, %v4546
        %v4548 = vpop.f32.mrb[0].mxu0
        %4549 = vmatprep.mubr.f32.mxu0 0.0
        %4550 = vmatmul.mubr.f32.gmra.mrb[0].mxu0 %v4340
        %v4551 = vpop.f32.mrb[0].mxu0
        %v4552 = vadd.f32 0.0, %v4551
        %v4553 = vpop.f32.mrb[0].mxu0
        %4554 = vmatprep.mubr.f32.mxu0 0.0
        %4555 = vmatmul.mubr.f32.gmra.mrb[0].mxu0 %v4342
        %v4556 = vpop.f32.mrb[0].mxu0
        %v4557 = vadd.f32 0.0, %v4556
        %v4558 = vpop.f32.mrb[0].mxu0
        %4559 = vmatprep.mubr.f32.mxu0 0.0
        %4560 = vmatmul.mubr.f32.gmra.mrb[0].mxu0 %v4344
        %v4561 = vpop.f32.mrb[0].mxu0
        %v4562 = vadd.f32 0.0, %v4561
        %v4563 = vpop.f32.mrb[0].mxu0
        %4564 = vmatprep.mubr.f32.mxu0 0.0
        %4565 = vmatmul.mubr.f32.gmra.mrb[0].mxu0 %v4346
        %v4566 = vpop.f32.mrb[0].mxu0
        %v4567 = vadd.f32 0.0, %v4566
        %v4568 = vpop.f32.mrb[0].mxu0
        %4569 = vmatprep.mubr.f32.mxu0 0.0
        %4570 = vmatmul.mubr.f32.gmra.mrb[0].mxu0 %v4348
        %v4571 = vpop.f32.mrb[0].mxu0
        %v4572 = vadd.f32 0.0, %v4571
        %v4573 = vpop.f32.mrb[0].mxu0
        %4574 = vmatprep.mubr.f32.mxu0 0.0
        %4575 = vmatmul.mubr.f32.gmra.mrb[0].mxu0 %v4350
        %v4576 = vpop.f32.mrb[0].mxu0
        %v4577 = vadd.f32 0.0, %v4576
        %v4578 = vpop.f32.mrb[0].mxu0
        %4579 = vmatprep.mubr.f32.mxu0 0.0
        %4580 = vmatmul.mubr.f32.gmra.mrb[0].mxu0 %v4352
        %v4581 = vpop.f32.mrb[0].mxu0
        %v4582 = vadd.f32 0.0, %v4581
        %v4583 = vpop.f32.mrb[0].mxu0
        %4584 = vmatprep.mubr.f32.mxu0 0.0
        %4585 = vmatmul.mubr.f32.gmra.mrb[0].mxu0 %v4354
        %v4586 = vpop.f32.mrb[0].mxu0
        %v4587 = vadd.f32 0.0, %v4586
        %v4588 = vpop.f32.mrb[0].mxu0
        %4589 = vmatprep.mubr.f32.mxu0 0.0
        %4590 = vmatmul.mubr.f32.gmra.mrb[0].mxu0 %v4356
        %v4591 = vpop.f32.mrb[0].mxu0
        %v4592 = vadd.f32 0.0, %v4591
        %v4593 = vpop.f32.mrb[0].mxu0
        %4594 = vmatprep.mubr.f32.mxu0 0.0
        %4595 = vmatmul.mubr.f32.gmra.mrb[0].mxu0 %v4358
        %v4596 = vpop.f32.mrb[0].mxu0
        %v4597 = vadd.f32 0.0, %v4596
        %v4598 = vpop.f32.mrb[0].mxu0
        %4599 = vmatprep.mubr.f32.mxu0 0.0
        %4600 = vmatmul.mubr.f32.gmra.mrb[0].mxu0 %v4360
        %v4601 = vpop.f32.mrb[0].mxu0
        %v4602 = vadd.f32 0.0, %v4601
        %v4603 = vpop.f32.mrb[0].mxu0
        %4604 = vmatprep.mubr.f32.mxu0 0.0
        %4605 = vmatmul.mubr.f32.gmra.mrb[0].mxu0 %v4362
        %v4606 = vpop.f32.mrb[0].mxu0
        %v4607 = vadd.f32 0.0, %v4606
        %v4608 = vpop.f32.mrb[0].mxu0
        %4609 = vmatprep.mubr.f32.mxu0 0.0
        %4610 = vmatmul.mubr.f32.gmra.mrb[0].mxu0 %v4364
        %v4611 = vpop.f32.mrb[0].mxu0
        %v4612 = vadd.f32 0.0, %v4611
        %v4613 = vpop.f32.mrb[0].mxu0
        %4614 = vmatprep.mubr.f32.mxu0 0.0
        %4615 = vmatmul.mubr.f32.gmra.mrb[0].mxu0 %v4366
        %v4616 = vpop.f32.mrb[0].mxu0
        %v4617 = vadd.f32 0.0, %v4616
        %v4618 = vpop.f32.mrb[0].mxu0
        %4619 = vmatprep.mubr.f32.mxu0 0.0
        %4620 = vmatmul.mubr.f32.gmra.mrb[0].mxu0 %v4368
        %v4621 = vpop.f32.mrb[0].mxu0
        %v4622 = vadd.f32 0.0, %v4621
        %v4623 = vpop.f32.mrb[0].mxu0
        %4624 = vmatprep.mubr.f32.mxu0 0.0
        %4625 = vmatmul.mubr.f32.gmra.mrb[0].mxu0 %v4370
        %v4626 = vpop.f32.mrb[0].mxu0
        %v4627 = vadd.f32 0.0, %v4626
        %v4628 = vpop.f32.mrb[0].mxu0
        %4629 = vmatprep.mubr.f32.mxu0 0.0
        %4630 = vmatmul.mubr.f32.gmra.mrb[0].mxu0 %v4372
        %v4631 = vpop.f32.mrb[0].mxu0
        %v4632 = vadd.f32 0.0, %v4631
        %v4633 = vpop.f32.mrb[0].mxu0
        %4634 = vmatprep.mubr.f32.mxu0 0.0
        %4635 = vmatmul.mubr.f32.gmra.mrb[0].mxu0 %v4374
        %v4636 = vpop.f32.mrb[0].mxu0
        %v4637 = vadd.f32 0.0, %v4636
        %v4638 = vpop.f32.mrb[0].mxu0
        %4639 = vmatprep.mubr.f32.mxu0 0.0
        %4640 = vmatmul.mubr.f32.gmra.mrb[0].mxu0 %v4376
        %v4641 = vpop.f32.mrb[0].mxu0
        %v4642 = vadd.f32 0.0, %v4641
        %v4643 = vpop.f32.mrb[0].mxu0
        %4644 = vmatprep.mubr.f32.mxu0 0.0
        %4645 = vmatmul.mubr.f32.gmra.mrb[0].mxu0 %v4378
        %v4646 = vpop.f32.mrb[0].mxu0
        %v4647 = vadd.f32 0.0, %v4646
        %v4648 = vpop.f32.mrb[0].mxu0
        %4649 = vmatprep.mubr.f32.mxu0 0.0
        %4650 = vmatmul.mubr.f32.gmra.mrb[0].mxu0 %v4380
        %v4651 = vpop.f32.mrb[0].mxu0
        %v4652 = vadd.f32 0.0, %v4651
        %v4653 = vpop.f32.mrb[0].mxu0
        %4654 = vmatprep.mubr.f32.mxu0 0.0
        %4655 = vmatmul.mubr.f32.gmra.mrb[0].mxu0 %v4382
        %v4656 = vpop.f32.mrb[0].mxu0
        %v4657 = vadd.f32 0.0, %v4656
        %v4658 = vpop.f32.mrb[0].mxu0
        %4659 = vmatprep.mubr.f32.mxu0 0.0
        %4660 = vmatmul.mubr.f32.gmra.mrb[0].mxu0 %v4384
        %v4661 = vpop.f32.mrb[0].mxu0
        %v4662 = vadd.f32 0.0, %v4661
        %v4663 = vpop.f32.mrb[0].mxu0
        %4664 = vmatprep.mubr.f32.mxu0 0.0
        %4665 = vmatmul.mubr.f32.gmra.mrb[0].mxu0 %v4386
        %v4666 = vpop.f32.mrb[0].mxu0
        %v4667 = vadd.f32 0.0, %v4666
        %v4668 = vpop.f32.mrb[0].mxu0
        %4669 = vmatprep.mubr.f32.mxu0 0.0
        %4670 = vmatmul.mubr.f32.gmra.mrb[0].mxu0 %v4388
        %v4671 = vpop.f32.mrb[0].mxu0
        %v4672 = vadd.f32 0.0, %v4671
        %v4673 = vpop.f32.mrb[0].mxu0
        %4674 = vmatprep.mubr.f32.mxu0 0.0
        %4675 = vmatmul.mubr.f32.gmra.mrb[0].mxu0 %v4390
        %v4676 = vpop.f32.mrb[0].mxu0
        %v4677 = vadd.f32 0.0, %v4676
        %v4678 = vpop.f32.mrb[0].mxu0
        %4679 = vmatprep.mubr.f32.mxu0 0.0
        %4680 = vmatmul.mubr.f32.gmra.mrb[0].mxu0 %v4392
        %v4681 = vpop.f32.mrb[0].mxu0
        %v4682 = vadd.f32 0.0, %v4681
        %v4683 = vpop.f32.mrb[0].mxu0
        %4684 = vmatprep.mubr.f32.mxu0 0.0
        %4685 = vmatmul.mubr.f32.gmra.mrb[0].mxu0 %v4394
        %v4686 = vpop.f32.mrb[0].mxu0
        %v4687 = vadd.f32 0.0, %v4686
        %v4688 = vpop.f32.mrb[0].mxu0
        %4689 = vmatprep.mubr.f32.mxu0 0.0
        %4690 = vmatmul.mubr.f32.gmra.mrb[0].mxu0 %v4396
        %v4691 = vpop.f32.mrb[0].mxu0
        %v4692 = vadd.f32 0.0, %v4691
        %v4693 = vpop.f32.mrb[0].mxu0
        %4694 = vmatprep.mubr.f32.mxu0 0.0
        %4695 = vmatmul.mubr.f32.gmra.mrb[0].mxu0 %v4398
        %v4696 = vpop.f32.mrb[0].mxu0
        %v4697 = vadd.f32 0.0, %v4696
        %v4698 = vpop.f32.mrb[0].mxu0
        %4699 = vmatprep.mubr.f32.mxu0 0.0
        %4700 = vmatmul.mubr.f32.gmra.mrb[0].mxu0 %v4400
        %v4701 = vpop.f32.mrb[0].mxu0
        %v4702 = vadd.f32 0.0, %v4701
        %v4703 = vpop.f32.mrb[0].mxu0
        %4704 = vmatprep.mubr.f32.mxu0 0.0
        %4705 = vmatmul.mubr.f32.gmra.mrb[0].mxu0 %v4402
        %v4706 = vpop.f32.mrb[0].mxu0
        %v4707 = vadd.f32 0.0, %v4706
        %v4708 = vpop.f32.mrb[0].mxu0
        %4709 = vmatprep.mubr.f32.mxu0 0.0
        %4710 = vmatmul.mubr.f32.gmra.mrb[0].mxu0 %v4404
        %v4711 = vpop.f32.mrb[0].mxu0
        %v4712 = vadd.f32 0.0, %v4711
        %v4713 = vpop.f32.mrb[0].mxu0
        %4714 = vmatprep.mubr.f32.mxu0 0.0
        %4715 = vmatmul.mubr.f32.gmra.mrb[0].mxu0 %v4406
        %v4716 = vpop.f32.mrb[0].mxu0
        %v4717 = vadd.f32 0.0, %v4716
        %v4718 = vpop.f32.mrb[0].mxu0
        %4719 = vmatprep.mubr.f32.mxu0 0.0
        %4720 = vmatmul.mubr.f32.gmra.mrb[0].mxu0 %v4408
        %v4721 = vpop.f32.mrb[0].mxu0
        %v4722 = vadd.f32 0.0, %v4721
        %v4723 = vpop.f32.mrb[0].mxu0
        %4724 = vmatprep.mubr.f32.mxu0 0.0
        %4725 = vmatmul.mubr.f32.gmra.mrb[0].mxu0 %v4410
        %v4726 = vpop.f32.mrb[0].mxu0
        %v4727 = vadd.f32 0.0, %v4726
        %v4728 = vpop.f32.mrb[0].mxu0
        %4729 = vmatprep.mubr.f32.mxu0 0.0
        %4730 = vmatmul.mubr.f32.gmra.mrb[0].mxu0 %v4457
        %v4731 = vpop.f32.mrb[0].mxu0
        %v4732 = vadd.f32 0.0, %v4731
        %v4733 = vpop.f32.mrb[0].mxu0
        %4734 = vmatprep.mubr.f32.mxu0 0.0
        %4735 = vmatmul.mubr.f32.gmra.mrb[0].mxu0 %v4452
        %v4736 = vpop.f32.mrb[0].mxu0
        %v4737 = vadd.f32 0.0, %v4736
        %v4738 = vpop.f32.mrb[0].mxu0
        %4739 = vmatprep.mubr.f32.mxu0 0.0
        %4740 = vmatmul.mubr.f32.gmra.mrb[0].mxu0 %v4453
        %v4741 = vpop.f32.mrb[0].mxu0
        %v4742 = vadd.f32 0.0, %v4741
        %v4743 = vpop.f32.mrb[0].mxu0
        %4744 = vdwg.mxu0
        %v4745 = vadd.f32 %v4292, %v4542
        %v4746 = vadd.f32 %v4293, %v4547
        %v4747 = vadd.f32 %v4294, %v4552
        %v4748 = vadd.f32 %v4295, %v4557
        %v4749 = vadd.f32 %v4296, %v4562
        %v4750 = vadd.f32 %v4297, %v4567
        %v4751 = vadd.f32 %v4298, %v4572
        %v4752 = vadd.f32 %v4299, %v4577
        %v4753 = vadd.f32 %v4300, %v4582
        %v4754 = vadd.f32 %v4301, %v4587
        %v4755 = vadd.f32 %v4302, %v4592
        %v4756 = vadd.f32 %v4303, %v4597
        %v4757 = vadd.f32 %v4304, %v4602
        %v4758 = vadd.f32 %v4305, %v4607
        %v4759 = vadd.f32 %v4306, %v4612
        %v4760 = vadd.f32 %v4307, %v4617
        %v4761 = vadd.f32 %v4308, %v4622
        %v4762 = vadd.f32 %v4309, %v4627
        %v4763 = vadd.f32 %v4310, %v4632
        %v4764 = vadd.f32 %v4311, %v4637
        %v4765 = vadd.f32 %v4312, %v4642
        %v4766 = vadd.f32 %v4313, %v4647
        %v4767 = vadd.f32 %v4314, %v4652
        %v4768 = vadd.f32 %v4315, %v4657
        %v4769 = vadd.f32 %v4316, %v4662
        %v4770 = vadd.f32 %v4317, %v4667
        %v4771 = vadd.f32 %v4318, %v4672
        %v4772 = vadd.f32 %v4319, %v4677
        %v4773 = vadd.f32 %v4320, %v4682
        %v4774 = vadd.f32 %v4321, %v4687
        %v4775 = vadd.f32 %v4322, %v4692
        %v4776 = vadd.f32 %v4323, %v4697
        %v4777 = vadd.f32 %v4324, %v4702
        %v4778 = vadd.f32 %v4325, %v4707
        %v4779 = vadd.f32 %v4326, %v4712
        %v4780 = vadd.f32 %v4327, %v4717
        %v4781 = vadd.f32 %v4328, %v4722
        %v4782 = vadd.f32 %v4329, %v4727
        %v4783 = vadd.f32 %v4330, %v4732
        %v4784 = vadd.f32 %v4331, %v4737
        %v4785 = vadd.f32 %v4332, %v4742
        %v4786 = vmul.f32 %v4745, %v1044
        %v4787 = vmul.f32 %v4746, %v1045
        %v4788 = vmul.f32 %v4747, %v1046
        %v4789 = vmul.f32 %v4748, %v1047
        %v4790 = vmul.f32 %v4749, %v1048
        %v4791 = vmul.f32 %v4750, %v1049
        %v4792 = vmul.f32 %v4751, %v1050
        %v4793 = vmul.f32 %v4752, %v1051
        %v4794 = vmul.f32 %v4753, %v1052
        %v4795 = vmul.f32 %v4754, %v1053
        %v4796 = vmul.f32 %v4755, %v1054
        %v4797 = vmul.f32 %v4756, %v1055
        %v4798 = vmul.f32 %v4757, %v1056
        %v4799 = vmul.f32 %v4758, %v1057
        %v4800 = vmul.f32 %v4759, %v1058
        %v4801 = vmul.f32 %v4760, %v1059
        %v4802 = vmul.f32 %v4761, %v1060
        %v4803 = vmul.f32 %v4762, %v1061
        %v4804 = vmul.f32 %v4763, %v1062
        %v4805 = vmul.f32 %v4764, %v1063
        %v4806 = vmul.f32 %v4765, %v1064
        %v4807 = vmul.f32 %v4766, %v1065
        %v4808 = vmul.f32 %v4767, %v1066
        %v4809 = vmul.f32 %v4768, %v1067
        %v4810 = vmul.f32 %v4769, %v1068
        %v4811 = vmul.f32 %v4770, %v1069
        %v4812 = vmul.f32 %v4771, %v1070
        %v4813 = vmul.f32 %v4772, %v1071
        %v4814 = vmul.f32 %v4773, %v1072
        %v4815 = vmul.f32 %v4774, %v1073
        %v4816 = vmul.f32 %v4775, %v1074
        %v4817 = vmul.f32 %v4776, %v1075
        %v4818 = vmul.f32 %v4777, %v1076
        %v4819 = vmul.f32 %v4778, %v1077
        %v4820 = vmul.f32 %v4779, %v1078
        %v4821 = vmul.f32 %v4780, %v1079
        %v4822 = vmul.f32 %v4781, %v1080
        %v4823 = vmul.f32 %v4782, %v1081
        %v4824 = vmul.f32 %v4783, %v1082
        %v4825 = vmul.f32 %v4784, %v1083
        %v4826 = vmul.f32 %v4785, %v1084
        %v4827 = vadd.f32 %v4786, %v4787
        %v4828 = vadd.f32 %v4827, %v4788
        %v4829 = vadd.f32 %v4828, %v4789
        %v4830 = vadd.f32 %v4829, %v4790
        %v4831 = vadd.f32 %v4830, %v4791
        %v4832 = vadd.f32 %v4831, %v4792
        %v4833 = vadd.f32 %v4832, %v4793
        %v4834 = vadd.f32 %v4833, %v4794
        %v4835 = vadd.f32 %v4834, %v4795
        %v4836 = vadd.f32 %v4835, %v4796
        %v4837 = vadd.f32 %v4836, %v4797
        %v4838 = vadd.f32 %v4837, %v4798
        %v4839 = vadd.f32 %v4838, %v4799
        %v4840 = vadd.f32 %v4839, %v4800
        %v4841 = vadd.f32 %v4840, %v4801
        %v4842 = vadd.f32 %v4841, %v4802
        %v4843 = vadd.f32 %v4842, %v4803
        %v4844 = vadd.f32 %v4843, %v4804
        %v4845 = vadd.f32 %v4844, %v4805
        %v4846 = vadd.f32 %v4845, %v4806
        %v4847 = vadd.f32 %v4846, %v4807
        %v4848 = vadd.f32 %v4847, %v4808
        %v4849 = vadd.f32 %v4848, %v4809
        %v4850 = vadd.f32 %v4849, %v4810
        %v4851 = vadd.f32 %v4850, %v4811
        %v4852 = vadd.f32 %v4851, %v4812
        %v4853 = vadd.f32 %v4852, %v4813
        %v4854 = vadd.f32 %v4853, %v4814
        %v4855 = vadd.f32 %v4854, %v4815
        %v4856 = vadd.f32 %v4855, %v4816
        %v4857 = vadd.f32 %v4856, %v4817
        %v4858 = vadd.f32 %v4857, %v4818
        %v4859 = vadd.f32 %v4858, %v4819
        %v4860 = vadd.f32 %v4859, %v4820
        %v4861 = vadd.f32 %v4860, %v4821
        %v4862 = vadd.f32 %v4861, %v4822
        %v4863 = vadd.f32 %v4862, %v4823
        %v4864 = vadd.f32 %v4863, %v4824
        %v4865 = vadd.f32 %v4864, %v4825
        %v4866 = vadd.f32 %v4865, %v4826
        %v4867 = vrot.slane %v4866, 4
        %v4868 = vadd.f32 %v4866, %v4867
        %v4869 = vrot.slane %v4868, 2
        %v4870 = vadd.f32 %v4868, %v4869
        %v4871 = vrot.slane %v4870, 1
        %v4872 = vadd.f32 %v4870, %v4871
        %v4873 = vmul.f32 %v4786, %v4786
        %v4874 = vmul.f32 %v4787, %v4787
        %v4875 = vmul.f32 %v4788, %v4788
        %v4876 = vmul.f32 %v4789, %v4789
        %v4877 = vmul.f32 %v4790, %v4790
        %v4878 = vmul.f32 %v4791, %v4791
        %v4879 = vmul.f32 %v4792, %v4792
        %v4880 = vmul.f32 %v4793, %v4793
        %v4881 = vmul.f32 %v4794, %v4794
        %v4882 = vmul.f32 %v4795, %v4795
        %v4883 = vmul.f32 %v4796, %v4796
        %v4884 = vmul.f32 %v4797, %v4797
        %v4885 = vmul.f32 %v4798, %v4798
        %v4886 = vmul.f32 %v4799, %v4799
        %v4887 = vmul.f32 %v4800, %v4800
        %v4888 = vmul.f32 %v4801, %v4801
        %v4889 = vmul.f32 %v4802, %v4802
        %v4890 = vmul.f32 %v4803, %v4803
        %v4891 = vmul.f32 %v4804, %v4804
        %v4892 = vmul.f32 %v4805, %v4805
        %v4893 = vmul.f32 %v4806, %v4806
        %v4894 = vmul.f32 %v4807, %v4807
        %v4895 = vmul.f32 %v4808, %v4808
        %v4896 = vmul.f32 %v4809, %v4809
        %v4897 = vmul.f32 %v4810, %v4810
        %v4898 = vmul.f32 %v4811, %v4811
        %v4899 = vmul.f32 %v4812, %v4812
        %v4900 = vmul.f32 %v4813, %v4813
        %v4901 = vmul.f32 %v4814, %v4814
        %v4902 = vmul.f32 %v4815, %v4815
        %v4903 = vmul.f32 %v4816, %v4816
        %v4904 = vmul.f32 %v4817, %v4817
        %v4905 = vmul.f32 %v4818, %v4818
        %v4906 = vmul.f32 %v4819, %v4819
        %v4907 = vmul.f32 %v4820, %v4820
        %v4908 = vmul.f32 %v4821, %v4821
        %v4909 = vmul.f32 %v4822, %v4822
        %v4910 = vmul.f32 %v4823, %v4823
        %v4911 = vmul.f32 %v4824, %v4824
        %v4912 = vmul.f32 %v4825, %v4825
        %v4913 = vmul.f32 %v4826, %v4826
        %v4914 = vadd.f32 %v4873, %v4874
        %v4915 = vadd.f32 %v4914, %v4875
        %v4916 = vadd.f32 %v4915, %v4876
        %v4917 = vadd.f32 %v4916, %v4877
        %v4918 = vadd.f32 %v4917, %v4878
        %v4919 = vadd.f32 %v4918, %v4879
        %v4920 = vadd.f32 %v4919, %v4880
        %v4921 = vadd.f32 %v4920, %v4881
        %v4922 = vadd.f32 %v4921, %v4882
        %v4923 = vadd.f32 %v4922, %v4883
        %v4924 = vadd.f32 %v4923, %v4884
        %v4925 = vadd.f32 %v4924, %v4885
        %v4926 = vadd.f32 %v4925, %v4886
        %v4927 = vadd.f32 %v4926, %v4887
        %v4928 = vadd.f32 %v4927, %v4888
        %v4929 = vadd.f32 %v4928, %v4889
        %v4930 = vadd.f32 %v4929, %v4890
        %v4931 = vadd.f32 %v4930, %v4891
        %v4932 = vadd.f32 %v4931, %v4892
        %v4933 = vadd.f32 %v4932, %v4893
        %v4934 = vadd.f32 %v4933, %v4894
        %v4935 = vadd.f32 %v4934, %v4895
        %v4936 = vadd.f32 %v4935, %v4896
        %v4937 = vadd.f32 %v4936, %v4897
        %v4938 = vadd.f32 %v4937, %v4898
        %v4939 = vadd.f32 %v4938, %v4899
        %v4940 = vadd.f32 %v4939, %v4900
        %v4941 = vadd.f32 %v4940, %v4901
        %v4942 = vadd.f32 %v4941, %v4902
        %v4943 = vadd.f32 %v4942, %v4903
        %v4944 = vadd.f32 %v4943, %v4904
        %v4945 = vadd.f32 %v4944, %v4905
        %v4946 = vadd.f32 %v4945, %v4906
        %v4947 = vadd.f32 %v4946, %v4907
        %v4948 = vadd.f32 %v4947, %v4908
        %v4949 = vadd.f32 %v4948, %v4909
        %v4950 = vadd.f32 %v4949, %v4910
        %v4951 = vadd.f32 %v4950, %v4911
        %v4952 = vadd.f32 %v4951, %v4912
        %v4953 = vadd.f32 %v4952, %v4913
        %v4954 = vrot.slane %v4953, 4
        %v4955 = vadd.f32 %v4953, %v4954
        %v4956 = vrot.slane %v4955, 2
        %v4957 = vadd.f32 %v4955, %v4956
        %v4958 = vrot.slane %v4957, 1
        %v4959 = vadd.f32 %v4957, %v4958
        %v4960 = vsel %vm1990, %v4872, %v4959
        %4961 = vst [vmem:[%s176] sm:$0x3] %v4960
        %s4962 = sand.u32 %s75, 1
        %s4963 = scalar_lea.sflag [#allocation4], %s4962
        %s4964 = sand.u32 %s75, 1
        %s4965 = smul.addr %s4964, 2
        %s4966 = scalar_lea.vmem [#allocation7], %s4965
        // Predicated region
        $region37: #{tpu_custom_call.1} parent=27 // pred_check
          %p4967 = pneg %p85
        $region38: #{tpu_custom_call.1} parent=27 // pred_check_branch
          %4969 = sbr.rel (%p4967) target = $region40
        $region39: #{tpu_custom_call.1} parent=27 // pred_region
          %s4971 = ssub.s32 32, 32
          %4972 = vsyncadd %s4963, %s4971
          %s4973 = smul.addr %s20, 32
          %s4974 = scalar_lea.hbm %s2, %s4973
          %s4976 = sshll.u32 %s4966, 4
          %s4977 = int_to_ptr.vmem [resolvable:$true] %s4976
          %4979 = dma.vmem_to_hbm [thread:$0]  %s4977, 32, %s4974, %s4963
        $region40: #{tpu_custom_call.1} parent=27 // pred_fallthru
          _
      $region28: #{tpu_custom_call.1} parent=5 // pred_fallthru
        _
      %p4980 = scmp.le.s32.totalorder 2, %s15
      // Predicated region
      $region41: #{tpu_custom_call.1} parent=5 // pred_check
        %p4981 = pneg %p4980
      $region42: #{tpu_custom_call.1} parent=5 // pred_check_branch
        %4983 = sbr.rel (%p4981) target = $region44
      $region43: #{tpu_custom_call.1} parent=5 // pred_region
        %s4984 = ssub.s32 %s15, 2
        // Predicated region
        $region45: #{tpu_custom_call.1} parent=43 // pred_check
          %p4985 = pneg %p91
        $region46: #{tpu_custom_call.1} parent=43 // pred_check_branch
          %4987 = sbr.rel (%p4985) target = $region48
        $region47: #{tpu_custom_call.1} parent=43 // pred_region
          %s4988 = sand.u32 %s76, 1
          %s4989 = scalar_lea.sflag [#allocation4], %s4988
          %s4990 = sand.u32 %s76, 1
          %s4991 = smul.addr %s4990, 2
          %s4992 = scalar_lea.vmem [#allocation7], %s4991
          %4993 = dma.done %s4989, 32
        $region48: #{tpu_custom_call.1} parent=43 // pred_fallthru
          _
      $region44: #{tpu_custom_call.1} parent=5 // pred_fallthru
        _
    $region6: #{tpu_custom_call.1} parent=1 // loop_footer
      %s19 = sadd.s32 1, %s15
    $region7: #{tpu_custom_call.1} parent=1 // loop_footer_branch
      %14 = sbr.rel target = $region3
    $region8: #{tpu_custom_call.1} parent=1 // loop_exit
      _
    %4994 = vsyncpa [#allocation3], 1
    %s4995 = scalar_lea.sflag [#allocation3], 1
    %4996 = vsyncpa %s4995, 1
    %4997 = vsyncpa [#allocation6], 1
    %4998 = vsyncpa [#allocation4], 1
    %s4999 = scalar_lea.sflag [#allocation4], 1
    %5000 = vsyncpa %s4999, 1

</llo_original>
